<compile_context>
chip_gen: v5e
topology: v5e:2x2
jax: 0.10.0
libtpu: 0.0.40
codegen_flags: <defaults>
</compile_context>

<pallas_src>
import jax
import jax.numpy as jnp
import numpy as np
from jax import lax
from jax.experimental import pallas as pl
from jax.experimental.pallas import tpu as pltpu


def _make_kernel(H, W, Cin, Cout, downsample, first, has_sc):
    HW = H * W
    L = (H + 2) * W + 2          # 1 guard + W top-pad + H*W data + W bottom-pad + 1 guard
    Ho = H // 2 if downsample else H
    Wo = W // 2 if downsample else W

    def kernel(*refs):
        it = iter(refs)
        xf_ref = next(it)                            # (1, L, Cin)    bf16 padded flat input
        w1_ref = next(it)                            # (9*Cin, Cout)  bf16
        b1_ref = next(it)                            # (1, Cout)      f32
        w2_ref = next(it)                            # (9*Cout, Cout) bf16
        b2_ref = next(it)                            # (1, Cout)      f32
        wsc_ref = next(it) if has_sc else None       # (Cin, Cout)    bf16
        bsc_ref = next(it) if has_sc else None       # (1, Cout)      f32
        out_ref = next(it)
        h1pad_ref = next(it)                         # (L, Cout) bf16 scratch (conv2 staging)
        pool_ref = next(it) if downsample else None  # (Ho, 2*W, Cout) f32 scratch

        # Hoisted wrap-around masks: computed once per step, (HW, 1) bool, broadcast over
        # the narrow channel axis inside jnp.where.
        col = lax.broadcasted_iota(jnp.int32, (HW, 1), 0) % W
        not_left = col != 0            # kills W-wraparound for the dw = -1 taps
        not_right = col != (W - 1)     # kills W-wraparound for the dw = +1 taps

        def conv3x3(src, w_ref, b_ref):
            """src: (L, C) bf16 zero-padded flat image -> (HW, Cout) f32 (single matmul)."""
            pieces = []
            for dh in range(3):
                for dw in range(3):
                    start = dh * W + dw                     # static shift in flat row index
                    p = src[start:start + HW, :]
                    if dw == 0:
                        p = jnp.where(not_left, p, 0)
                    elif dw == 2:
                        p = jnp.where(not_right, p, 0)
                    pieces.append(p)
            patches = jnp.concatenate(pieces, axis=-1)      # (HW, 9*C) bf16 im2col
            y = jnp.dot(patches, w_ref[...], preferred_element_type=jnp.float32)
            return y + b_ref[...]

        # Zero only the halo rows of the conv2 staging buffer; the interior is fully
        # overwritten below before it is read.
        zpad = jnp.zeros((W + 1, Cout), jnp.bfloat16)
        h1pad_ref[0:W + 1, :] = zpad
        h1pad_ref[W + 1 + HW:L, :] = zpad

        xf = xf_ref[0]                              # (L, Cin) bf16
        x_int = xf[W + 1:W + 1 + HW, :]             # un-activated input rows (shortcut path)

        # conv1 (input goes through ReLU unless `first`; ReLU(0)=0 keeps the padding valid)
        src1 = xf if first else jnp.maximum(xf, 0)
        h1 = jnp.maximum(conv3x3(src1, w1_ref, b1_ref), 0.0)         # relu(conv1(x)), f32

        # NOTE: in the PyTorch forward, `s = self.bn(x)` is computed but never used,
        # so it has no effect on the returned tensor and is omitted here.

        # conv2: stage relu(conv1) into the zero-padded flat buffer (bf16), im2col again.
        h1pad_ref[W + 1:W + 1 + HW, :] = h1.astype(jnp.bfloat16)
        y2 = conv3x3(h1pad_ref[...], w2_ref, b2_ref)                 # (HW, Cout) f32

        # Shortcut. The 1x1 conv is linear and per-pixel, so it commutes exactly with 2x2
        # average pooling: conv1x1(avg_pool(x)) == avg_pool(conv1x1(x)). Apply it at full
        # resolution so one pooling pass handles the whole residual sum.
        if has_sc:
            sc = jnp.dot(x_int, wsc_ref[...],
                         preferred_element_type=jnp.float32) + bsc_ref[...]
        else:
            sc = x_int.astype(jnp.float32)
        t = y2 + sc                                                  # (HW, Cout) f32

        if downsample:
            # 2x2 avg pool as 4 strided reads + VPU adds (no pooling-matrix matmul).
            # pool_ref[p, j, :] = t[2*p*W + j, :] for j in [0, 2W)  (row-pair-major staging)
            for p in range(Ho):
                pool_ref[p] = t[2 * p * W:(2 * p + 2) * W, :]
            pooled = (pool_ref[:, pl.ds(0, Wo, 2), :]
                      + pool_ref[:, pl.ds(1, Wo, 2), :]
                      + pool_ref[:, pl.ds(W, Wo, 2), :]
                      + pool_ref[:, pl.ds(W + 1, Wo, 2), :]) * 0.25
            out_ref[0] = pooled.astype(out_ref.dtype)                # (Ho, Wo, Cout)
        else:
            out_ref[0] = t.astype(out_ref.dtype)                     # (HW, Cout)

    return kernel


def discriminator_block(x_nchw, params, *, downsample=False, first=False):
    """Pallas implementation of DiscriminatorBlock.forward. x_nchw: (B, Cin, H, W)."""
    x_nchw = x_nchw.astype(jnp.float32)
    B, Cin, H, W = x_nchw.shape
    Cout = params["w1"].shape[0]
    has_sc = "wsc" in params
    HW = H * W
    L = (H + 2) * W + 2
    if downsample:
        assert H % 2 == 0 and W % 2 == 0
        Ho, Wo = H // 2, W // 2
    else:
        Ho, Wo = H, W

    # NCHW -> NHWC -> flat (B, HW, Cin) in bf16, placed inside a zero-padded flat buffer.
    x_flat = jnp.transpose(x_nchw, (0, 2, 3, 1)).reshape(B, HW, Cin).astype(jnp.bfloat16)
    xf = jnp.zeros((B, L, Cin), jnp.bfloat16).at[:, W + 1:W + 1 + HW, :].set(x_flat)

    # 3x3 weights: (Cout, Cin, 3, 3) -> (kh, kw, cin, cout) -> (9*Cin, Cout), bf16.
    # Row order matches the tap order of the in-kernel im2col concatenation.
    w1 = jnp.transpose(params["w1"], (2, 3, 1, 0)).reshape(9 * Cin, Cout).astype(jnp.bfloat16)
    b1 = params["b1"].reshape(1, Cout).astype(jnp.float32)
    w2 = jnp.transpose(params["w2"], (2, 3, 1, 0)).reshape(9 * Cout, Cout).astype(jnp.bfloat16)
    b2 = params["b2"].reshape(1, Cout).astype(jnp.float32)

    inputs = [xf, w1, b1, w2, b2]
    in_specs = [
        pl.BlockSpec((1, L, Cin), lambda b: (b, 0, 0)),
        pl.BlockSpec((9 * Cin, Cout), lambda b: (0, 0)),
        pl.BlockSpec((1, Cout), lambda b: (0, 0)),
        pl.BlockSpec((9 * Cout, Cout), lambda b: (0, 0)),
        pl.BlockSpec((1, Cout), lambda b: (0, 0)),
    ]
    if has_sc:
        wsc = params["wsc"].reshape(Cout, Cin).T.astype(jnp.bfloat16)   # (Cin, Cout)
        bsc = params["bsc"].reshape(1, Cout).astype(jnp.float32)
        inputs += [wsc, bsc]
        in_specs += [pl.BlockSpec((Cin, Cout), lambda b: (0, 0)),
                     pl.BlockSpec((1, Cout), lambda b: (0, 0))]

    scratch_shapes = [pltpu.VMEM((L, Cout), jnp.bfloat16)]      # bf16 conv2 staging (halved)
    if downsample:
        scratch_shapes.append(pltpu.VMEM((Ho, 2 * W, Cout), jnp.float32))
        out_shape = jax.ShapeDtypeStruct((B, Ho, Wo, Cout), jnp.float32)
        out_spec = pl.BlockSpec((1, Ho, Wo, Cout), lambda b: (b, 0, 0, 0))
        n_out_rows = Ho * Wo
    else:
        out_shape = jax.ShapeDtypeStruct((B, HW, Cout), jnp.float32)
        out_spec = pl.BlockSpec((1, HW, Cout), lambda b: (b, 0, 0))
        n_out_rows = HW

    # VMEM limit sized from the actual per-step footprint (x2 for double buffering),
    # capped below v7x's 64 MiB physical VMEM.
    bf, f4 = 2, 4
    blk_bytes = (L * Cin * bf
                 + (9 * Cin + 9 * Cout + (Cin if has_sc else 0)) * Cout * bf
                 + (2 + (1 if has_sc else 0)) * Cout * f4
                 + n_out_rows * Cout * f4)
    scratch_bytes = L * Cout * bf + (Ho * 2 * W * Cout * f4 if downsample else 0)
    work_bytes = 9 * HW * max(Cin, Cout) * bf + 4 * HW * Cout * f4   # im2col + f32 temps
    vmem_limit = int(min(64 << 20,
                         max(32 << 20, 2 * (2 * blk_bytes + scratch_bytes + work_bytes))))

    kernel = _make_kernel(H, W, Cin, Cout, downsample, first, has_sc)

    out = pl.pallas_call(
        kernel,
        out_shape=out_shape,
        grid_spec=pltpu.PrefetchScalarGridSpec(
            num_scalar_prefetch=0,
            grid=(B,),
            in_specs=in_specs,
            out_specs=out_spec,
            scratch_shapes=scratch_shapes,
        ),
        compiler_params=pltpu.CompilerParams(
            dimension_semantics=("parallel",),
            vmem_limit_bytes=vmem_limit,
        ),
    )(*inputs)

    if not downsample:
        out = out.reshape(B, H, W, Cout)
    return jnp.transpose(out, (0, 3, 1, 2))   # NHWC -> NCHW


def ref_forward(x, params, *, downsample=False, first=False):
    """Pure-JAX reference mirroring the PyTorch forward (NCHW)."""
    def conv(h, w, b, pad):
        y = lax.conv_general_dilated(h, w, (1, 1), [(pad, pad), (pad, pad)],
                                     dimension_numbers=("NCHW", "OIHW", "NCHW"))
        return y + b.reshape(1, -1, 1, 1)

    def pool(h):
        return (h[:, :, ::2, ::2] + h[:, :, 1::2, ::2] +
                h[:, :, ::2, 1::2] + h[:, :, 1::2, 1::2]) / 4

    shortcut = pool(x) if downsample else x
    if "wsc" in params:
        shortcut = conv(shortcut, params["wsc"], params["bsc"], 0)
    h = x if first else jax.nn.relu(x)
    h = conv(h, params["w1"], params["b1"], 1)
    h = jax.nn.relu(h)
    # BatchNorm output `s` is unused in the PyTorch forward
    h = conv(h, params["w2"], params["b2"], 1)
    if downsample:
        h = pool(h)
    return h + shortcut


if __name__ == "__main__":
    key = jax.random.PRNGKey(0)
    B, Cin, Cout, H, W = 2, 4, 8, 16, 16   # in_chans != out_chans -> shortcut 1x1 conv active
    ks = jax.random.split(key, 11)
    x = jax.random.normal(ks[0], (B, Cin, H, W), jnp.float32)
    params = {
        "w1": jax.random.normal(ks[1], (Cout, Cin, 3, 3), jnp.float32) * 0.1,
        "b1": jax.random.normal(ks[2], (Cout,), jnp.float32) * 0.1,
        "w2": jax.random.normal(ks[3], (Cout, Cout, 3, 3), jnp.float32) * 0.1,
        "b2": jax.random.normal(ks[4], (Cout,), jnp.float32) * 0.1,
        "wsc": jax.random.normal(ks[5], (Cout, Cin, 1, 1), jnp.float32) * 0.1,
        "bsc": jax.random.normal(ks[6], (Cout,), jnp.float32) * 0.1,
    }

    # Config 1: downsample + 1x1 shortcut conv (in_chans != out_chans)
    out = jax.block_until_ready(discriminator_block(x, params, downsample=True, first=False))
    ref = ref_forward(x, params, downsample=True, first=False)
    assert out.shape == (B, Cout, H // 2, W // 2)
    np.testing.assert_allclose(np.asarray(out), np.asarray(ref), rtol=3e-2, atol=3e-2)

    # Config 2: first block, equal channels (identity shortcut), no downsample
    C2 = 8
    x2 = jax.random.normal(ks[7], (B, C2, H, W), jnp.float32)
    params2 = {
        "w1": jax.random.normal(ks[8], (C2, C2, 3, 3), jnp.float32) * 0.1,
        "b1": jax.random.normal(ks[9], (C2,), jnp.float32) * 0.1,
        "w2": jax.random.normal(ks[10], (C2, C2, 3, 3), jnp.float32) * 0.1,
        "b2": jnp.zeros((C2,), jnp.float32),
    }
    out2 = jax.block_until_ready(discriminator_block(x2, params2, downsample=False, first=True))
    ref2 = ref_forward(x2, params2, downsample=False, first=True)
    assert out2.shape == (B, C2, H, W)
    np.testing.assert_allclose(np.asarray(out2), np.asarray(ref2), rtol=3e-2, atol=3e-2)

    print("KERNEL_OK")
</pallas_src>

<mosaic_0001>
module attributes {stable_mosaic.version = 11 : i64} {
  func.func @kernel(%arg0: i32, %arg1: memref<1x290x4xbf16, #tpu.memory_space<vmem>>, %arg2: memref<36x8xbf16, #tpu.memory_space<vmem>>, %arg3: memref<1x8xf32, #tpu.memory_space<vmem>>, %arg4: memref<72x8xbf16, #tpu.memory_space<vmem>>, %arg5: memref<1x8xf32, #tpu.memory_space<vmem>>, %arg6: memref<4x8xbf16, #tpu.memory_space<vmem>>, %arg7: memref<1x8xf32, #tpu.memory_space<vmem>>, %arg8: memref<1x8x8x8xf32, #tpu.memory_space<vmem>>, %arg9: memref<290x8xbf16, #tpu.memory_space<vmem>>, %arg10: memref<8x32x8xf32, #tpu.memory_space<vmem>>) attributes {dimension_semantics = [#tpu.dimension_semantics<parallel>], iteration_bounds = array<i64: 2>, scalar_prefetch = 0 : i64, scratch_operands = 2 : i64, tpu.core_type = #tpu.core_type<tc>, window_params = [{transform_indices = @transform_0, window_bounds = array<i64: 1, 290, 4>}, {pipeline_mode = #tpu.pipeline_mode<synchronous>, transform_indices = @transform_1, window_bounds = array<i64: 36, 8>}, {pipeline_mode = #tpu.pipeline_mode<synchronous>, transform_indices = @transform_2, window_bounds = array<i64: 1, 8>}, {pipeline_mode = #tpu.pipeline_mode<synchronous>, transform_indices = @transform_3, window_bounds = array<i64: 72, 8>}, {pipeline_mode = #tpu.pipeline_mode<synchronous>, transform_indices = @transform_4, window_bounds = array<i64: 1, 8>}, {pipeline_mode = #tpu.pipeline_mode<synchronous>, transform_indices = @transform_5, window_bounds = array<i64: 4, 8>}, {pipeline_mode = #tpu.pipeline_mode<synchronous>, transform_indices = @transform_6, window_bounds = array<i64: 1, 8>}, {transform_indices = @transform_7, window_bounds = array<i64: 1, 8, 8, 8>}]} {
    %0 = tpu.iota {dimensions = array<i32: 0>} : vector<256x1xi32>
    %c16_i32 = arith.constant 16 : i32
    %c0_i32 = arith.constant 0 : i32
    %1 = arith.cmpi eq, %c16_i32, %c0_i32 : i32
    %c1_i32 = arith.constant 1 : i32
    %2 = arith.select %1, %c1_i32, %c16_i32 : i32
    %3 = vector.broadcast %2 : i32 to vector<256x1xi32>
    %4 = arith.remsi %0, %3 : vector<256x1xi32>
    %c0_i32_0 = arith.constant 0 : i32
    %5 = vector.broadcast %c0_i32_0 : i32 to vector<256x1xi32>
    %6 = arith.cmpi ne, %4, %5 : vector<256x1xi32>
    %c0_i32_1 = arith.constant 0 : i32
    %7 = vector.broadcast %c0_i32_1 : i32 to vector<256x1xi32>
    %8 = arith.cmpi slt, %4, %7 : vector<256x1xi32>
    %c0_i32_2 = arith.constant 0 : i32
    %9 = arith.cmpi slt, %2, %c0_i32_2 : i32
    %10 = vector.broadcast %9 : i1 to vector<256x1xi1>
    %11 = vector.broadcast %10 : vector<256x1xi1> to vector<256x1xi1>
    %12 = arith.xori %8, %11 : vector<256x1xi1>
    %13 = arith.andi %12, %6 : vector<256x1xi1>
    %14 = vector.broadcast %2 : i32 to vector<256x1xi32>
    %15 = arith.addi %4, %14 : vector<256x1xi32>
    %16 = arith.select %13, %15, %4 : vector<256x1xi1>, vector<256x1xi32>
    %c0_i32_3 = arith.constant 0 : i32
    %17 = vector.broadcast %c0_i32_3 : i32 to vector<256x1xi32>
    %18 = arith.cmpi ne, %16, %17 : vector<256x1xi32>
    %c15_i32 = arith.constant 15 : i32
    %19 = vector.broadcast %c15_i32 : i32 to vector<256x1xi32>
    %20 = arith.cmpi ne, %16, %19 : vector<256x1xi32>
    %cst = arith.constant 0.000000e+00 : bf16
    %21 = vector.broadcast %cst : bf16 to vector<17x8xbf16>
    %c0 = arith.constant 0 : index
    %c0_4 = arith.constant 0 : index
    %22 = vector.load %arg9[%c0, %c0_4] : memref<290x8xbf16, #tpu.memory_space<vmem>>, vector<17x8xbf16>
    tpu.vector_store %arg9[%c0, %c0_4], %21 {strides = array<i32>} : memref<290x8xbf16, #tpu.memory_space<vmem>>, vector<17x8xbf16>,
    %c273 = arith.constant 273 : index
    %c0_5 = arith.constant 0 : index
    %23 = vector.load %arg9[%c273, %c0_5] : memref<290x8xbf16, #tpu.memory_space<vmem>>, vector<17x8xbf16>
    tpu.vector_store %arg9[%c273, %c0_5], %21 {strides = array<i32>} : memref<290x8xbf16, #tpu.memory_space<vmem>>, vector<17x8xbf16>,
    %c0_6 = arith.constant 0 : index
    %c0_7 = arith.constant 0 : index
    %c0_8 = arith.constant 0 : index
    %24 = vector.load %arg1[%c0_6, %c0_7, %c0_8] : memref<1x290x4xbf16, #tpu.memory_space<vmem>>, vector<1x290x4xbf16>
    %25 = vector.shape_cast %24 : vector<1x290x4xbf16> to vector<290x4xbf16>
    %26 = vector.extract_strided_slice %25 {offsets = [17, 0], sizes = [256, 4], strides = [1, 1]} : vector<290x4xbf16> to vector<256x4xbf16>
    %cst_9 = arith.constant 0.000000e+00 : bf16
    %27 = vector.broadcast %cst_9 : bf16 to vector<290x4xbf16>
    %28 = arith.maximumf %25, %27 : vector<290x4xbf16>
    %29 = vector.extract_strided_slice %28 {offsets = [0, 0], sizes = [256, 4], strides = [1, 1]} : vector<290x4xbf16> to vector<256x4xbf16>
    %c0_i32_10 = arith.constant 0 : i32
    %30 = arith.sitofp %c0_i32_10 : i32 to bf16
    %31 = vector.shape_cast %18 : vector<256x1xi1> to vector<256x1xi1>
    %32 = vector.broadcast %31 : vector<256x1xi1> to vector<256x4xi1>
    %33 = vector.broadcast %30 : bf16 to vector<256x4xbf16>
    %34 = arith.select %32, %29, %33 : vector<256x4xi1>, vector<256x4xbf16>
    %35 = vector.extract_strided_slice %28 {offsets = [1, 0], sizes = [256, 4], strides = [1, 1]} : vector<290x4xbf16> to vector<256x4xbf16>
    %36 = vector.extract_strided_slice %28 {offsets = [2, 0], sizes = [256, 4], strides = [1, 1]} : vector<290x4xbf16> to vector<256x4xbf16>
    %c0_i32_11 = arith.constant 0 : i32
    %37 = arith.sitofp %c0_i32_11 : i32 to bf16
    %38 = vector.shape_cast %20 : vector<256x1xi1> to vector<256x1xi1>
    %39 = vector.broadcast %38 : vector<256x1xi1> to vector<256x4xi1>
    %40 = vector.broadcast %37 : bf16 to vector<256x4xbf16>
    %41 = arith.select %39, %36, %40 : vector<256x4xi1>, vector<256x4xbf16>
    %42 = vector.extract_strided_slice %28 {offsets = [16, 0], sizes = [256, 4], strides = [1, 1]} : vector<290x4xbf16> to vector<256x4xbf16>
    %c0_i32_12 = arith.constant 0 : i32
    %43 = arith.sitofp %c0_i32_12 : i32 to bf16
    %44 = vector.shape_cast %18 : vector<256x1xi1> to vector<256x1xi1>
    %45 = vector.broadcast %44 : vector<256x1xi1> to vector<256x4xi1>
    %46 = vector.broadcast %43 : bf16 to vector<256x4xbf16>
    %47 = arith.select %45, %42, %46 : vector<256x4xi1>, vector<256x4xbf16>
    %48 = vector.extract_strided_slice %28 {offsets = [17, 0], sizes = [256, 4], strides = [1, 1]} : vector<290x4xbf16> to vector<256x4xbf16>
    %49 = vector.extract_strided_slice %28 {offsets = [18, 0], sizes = [256, 4], strides = [1, 1]} : vector<290x4xbf16> to vector<256x4xbf16>
    %c0_i32_13 = arith.constant 0 : i32
    %50 = arith.sitofp %c0_i32_13 : i32 to bf16
    %51 = vector.shape_cast %20 : vector<256x1xi1> to vector<256x1xi1>
    %52 = vector.broadcast %51 : vector<256x1xi1> to vector<256x4xi1>
    %53 = vector.broadcast %50 : bf16 to vector<256x4xbf16>
    %54 = arith.select %52, %49, %53 : vector<256x4xi1>, vector<256x4xbf16>
    %55 = vector.extract_strided_slice %28 {offsets = [32, 0], sizes = [256, 4], strides = [1, 1]} : vector<290x4xbf16> to vector<256x4xbf16>
    %c0_i32_14 = arith.constant 0 : i32
    %56 = arith.sitofp %c0_i32_14 : i32 to bf16
    %57 = vector.shape_cast %18 : vector<256x1xi1> to vector<256x1xi1>
    %58 = vector.broadcast %57 : vector<256x1xi1> to vector<256x4xi1>
    %59 = vector.broadcast %56 : bf16 to vector<256x4xbf16>
    %60 = arith.select %58, %55, %59 : vector<256x4xi1>, vector<256x4xbf16>
    %61 = vector.extract_strided_slice %28 {offsets = [33, 0], sizes = [256, 4], strides = [1, 1]} : vector<290x4xbf16> to vector<256x4xbf16>
    %62 = vector.extract_strided_slice %28 {offsets = [34, 0], sizes = [256, 4], strides = [1, 1]} : vector<290x4xbf16> to vector<256x4xbf16>
    %c0_i32_15 = arith.constant 0 : i32
    %63 = arith.sitofp %c0_i32_15 : i32 to bf16
    %64 = vector.shape_cast %20 : vector<256x1xi1> to vector<256x1xi1>
    %65 = vector.broadcast %64 : vector<256x1xi1> to vector<256x4xi1>
    %66 = vector.broadcast %63 : bf16 to vector<256x4xbf16>
    %67 = arith.select %65, %62, %66 : vector<256x4xi1>, vector<256x4xbf16>
    %68 = tpu.concatenate %34, %35, %41, %47, %48, %54, %60, %61, %67 in 1 : vector<256x4xbf16>, vector<256x4xbf16>, vector<256x4xbf16>, vector<256x4xbf16>, vector<256x4xbf16>, vector<256x4xbf16>, vector<256x4xbf16>, vector<256x4xbf16>, vector<256x4xbf16> -> vector<256x36xbf16>
    %c0_16 = arith.constant 0 : index
    %c0_17 = arith.constant 0 : index
    %69 = vector.load %arg2[%c0_16, %c0_17] : memref<36x8xbf16, #tpu.memory_space<vmem>>, vector<36x8xbf16>
    %cst_18 = arith.constant dense<0.000000e+00> : vector<256x8xf32>
    %70 = tpu.matmul %68, %69, %cst_18 {dimension_numbers = #tpu.dot_dimension_numbers<[1], [0], [0], [1], [0, 0, 1, 1], [], []>} : vector<256x36xbf16>, vector<36x8xbf16>, vector<256x8xf32> -> vector<256x8xf32>
    %c0_19 = arith.constant 0 : index
    %c0_20 = arith.constant 0 : index
    %71 = vector.load %arg3[%c0_19, %c0_20] : memref<1x8xf32, #tpu.memory_space<vmem>>, vector<1x8xf32>
    %72 = vector.broadcast %71 : vector<1x8xf32> to vector<256x8xf32>
    %73 = arith.addf %70, %72 : vector<256x8xf32>
    %cst_21 = arith.constant 0.000000e+00 : f32
    %74 = vector.broadcast %cst_21 : f32 to vector<256x8xf32>
    %75 = arith.maximumf %73, %74 : vector<256x8xf32>
    %76 = arith.truncf %75 : vector<256x8xf32> to vector<256x8xbf16>
    %c17 = arith.constant 17 : index
    %c0_22 = arith.constant 0 : index
    %77 = vector.load %arg9[%c17, %c0_22] : memref<290x8xbf16, #tpu.memory_space<vmem>>, vector<256x8xbf16>
    tpu.vector_store %arg9[%c17, %c0_22], %76 {strides = array<i32>} : memref<290x8xbf16, #tpu.memory_space<vmem>>, vector<256x8xbf16>,
    %c0_23 = arith.constant 0 : index
    %c0_24 = arith.constant 0 : index
    %78 = vector.load %arg9[%c0_23, %c0_24] : memref<290x8xbf16, #tpu.memory_space<vmem>>, vector<290x8xbf16>
    %79 = vector.extract_strided_slice %78 {offsets = [0, 0], sizes = [256, 8], strides = [1, 1]} : vector<290x8xbf16> to vector<256x8xbf16>
    %c0_i32_25 = arith.constant 0 : i32
    %80 = arith.sitofp %c0_i32_25 : i32 to bf16
    %81 = vector.shape_cast %18 : vector<256x1xi1> to vector<256x1xi1>
    %82 = vector.broadcast %81 : vector<256x1xi1> to vector<256x8xi1>
    %83 = vector.broadcast %80 : bf16 to vector<256x8xbf16>
    %84 = arith.select %82, %79, %83 : vector<256x8xi1>, vector<256x8xbf16>
    %85 = vector.extract_strided_slice %78 {offsets = [1, 0], sizes = [256, 8], strides = [1, 1]} : vector<290x8xbf16> to vector<256x8xbf16>
    %86 = vector.extract_strided_slice %78 {offsets = [2, 0], sizes = [256, 8], strides = [1, 1]} : vector<290x8xbf16> to vector<256x8xbf16>
    %c0_i32_26 = arith.constant 0 : i32
    %87 = arith.sitofp %c0_i32_26 : i32 to bf16
    %88 = vector.shape_cast %20 : vector<256x1xi1> to vector<256x1xi1>
    %89 = vector.broadcast %88 : vector<256x1xi1> to vector<256x8xi1>
    %90 = vector.broadcast %87 : bf16 to vector<256x8xbf16>
    %91 = arith.select %89, %86, %90 : vector<256x8xi1>, vector<256x8xbf16>
    %92 = vector.extract_strided_slice %78 {offsets = [16, 0], sizes = [256, 8], strides = [1, 1]} : vector<290x8xbf16> to vector<256x8xbf16>
    %c0_i32_27 = arith.constant 0 : i32
    %93 = arith.sitofp %c0_i32_27 : i32 to bf16
    %94 = vector.shape_cast %18 : vector<256x1xi1> to vector<256x1xi1>
    %95 = vector.broadcast %94 : vector<256x1xi1> to vector<256x8xi1>
    %96 = vector.broadcast %93 : bf16 to vector<256x8xbf16>
    %97 = arith.select %95, %92, %96 : vector<256x8xi1>, vector<256x8xbf16>
    %98 = vector.extract_strided_slice %78 {offsets = [17, 0], sizes = [256, 8], strides = [1, 1]} : vector<290x8xbf16> to vector<256x8xbf16>
    %99 = vector.extract_strided_slice %78 {offsets = [18, 0], sizes = [256, 8], strides = [1, 1]} : vector<290x8xbf16> to vector<256x8xbf16>
    %c0_i32_28 = arith.constant 0 : i32
    %100 = arith.sitofp %c0_i32_28 : i32 to bf16
    %101 = vector.shape_cast %20 : vector<256x1xi1> to vector<256x1xi1>
    %102 = vector.broadcast %101 : vector<256x1xi1> to vector<256x8xi1>
    %103 = vector.broadcast %100 : bf16 to vector<256x8xbf16>
    %104 = arith.select %102, %99, %103 : vector<256x8xi1>, vector<256x8xbf16>
    %105 = vector.extract_strided_slice %78 {offsets = [32, 0], sizes = [256, 8], strides = [1, 1]} : vector<290x8xbf16> to vector<256x8xbf16>
    %c0_i32_29 = arith.constant 0 : i32
    %106 = arith.sitofp %c0_i32_29 : i32 to bf16
    %107 = vector.shape_cast %18 : vector<256x1xi1> to vector<256x1xi1>
    %108 = vector.broadcast %107 : vector<256x1xi1> to vector<256x8xi1>
    %109 = vector.broadcast %106 : bf16 to vector<256x8xbf16>
    %110 = arith.select %108, %105, %109 : vector<256x8xi1>, vector<256x8xbf16>
    %111 = vector.extract_strided_slice %78 {offsets = [33, 0], sizes = [256, 8], strides = [1, 1]} : vector<290x8xbf16> to vector<256x8xbf16>
    %112 = vector.extract_strided_slice %78 {offsets = [34, 0], sizes = [256, 8], strides = [1, 1]} : vector<290x8xbf16> to vector<256x8xbf16>
    %c0_i32_30 = arith.constant 0 : i32
    %113 = arith.sitofp %c0_i32_30 : i32 to bf16
    %114 = vector.shape_cast %20 : vector<256x1xi1> to vector<256x1xi1>
    %115 = vector.broadcast %114 : vector<256x1xi1> to vector<256x8xi1>
    %116 = vector.broadcast %113 : bf16 to vector<256x8xbf16>
    %117 = arith.select %115, %112, %116 : vector<256x8xi1>, vector<256x8xbf16>
    %118 = tpu.concatenate %84, %85, %91, %97, %98, %104, %110, %111, %117 in 1 : vector<256x8xbf16>, vector<256x8xbf16>, vector<256x8xbf16>, vector<256x8xbf16>, vector<256x8xbf16>, vector<256x8xbf16>, vector<256x8xbf16>, vector<256x8xbf16>, vector<256x8xbf16> -> vector<256x72xbf16>
    %c0_31 = arith.constant 0 : index
    %c0_32 = arith.constant 0 : index
    %119 = vector.load %arg4[%c0_31, %c0_32] : memref<72x8xbf16, #tpu.memory_space<vmem>>, vector<72x8xbf16>
    %cst_33 = arith.constant dense<0.000000e+00> : vector<256x8xf32>
    %120 = tpu.matmul %118, %119, %cst_33 {dimension_numbers = #tpu.dot_dimension_numbers<[1], [0], [0], [1], [0, 0, 1, 1], [], []>} : vector<256x72xbf16>, vector<72x8xbf16>, vector<256x8xf32> -> vector<256x8xf32>
    %c0_34 = arith.constant 0 : index
    %c0_35 = arith.constant 0 : index
    %121 = vector.load %arg5[%c0_34, %c0_35] : memref<1x8xf32, #tpu.memory_space<vmem>>, vector<1x8xf32>
    %122 = vector.broadcast %121 : vector<1x8xf32> to vector<256x8xf32>
    %123 = arith.addf %120, %122 : vector<256x8xf32>
    %c0_36 = arith.constant 0 : index
    %c0_37 = arith.constant 0 : index
    %124 = vector.load %arg6[%c0_36, %c0_37] : memref<4x8xbf16, #tpu.memory_space<vmem>>, vector<4x8xbf16>
    %cst_38 = arith.constant dense<0.000000e+00> : vector<256x8xf32>
    %125 = tpu.matmul %26, %124, %cst_38 {dimension_numbers = #tpu.dot_dimension_numbers<[1], [0], [0], [1], [0, 0, 1, 1], [], []>} : vector<256x4xbf16>, vector<4x8xbf16>, vector<256x8xf32> -> vector<256x8xf32>
    %c0_39 = arith.constant 0 : index
    %c0_40 = arith.constant 0 : index
    %126 = vector.load %arg7[%c0_39, %c0_40] : memref<1x8xf32, #tpu.memory_space<vmem>>, vector<1x8xf32>
    %127 = vector.broadcast %126 : vector<1x8xf32> to vector<256x8xf32>
    %128 = arith.addf %125, %127 : vector<256x8xf32>
    %129 = arith.addf %123, %128 : vector<256x8xf32>
    %130 = vector.extract_strided_slice %129 {offsets = [0, 0], sizes = [32, 8], strides = [1, 1]} : vector<256x8xf32> to vector<32x8xf32>
    %c0_41 = arith.constant 0 : index
    %c0_42 = arith.constant 0 : index
    %c0_43 = arith.constant 0 : index
    %131 = vector.load %arg10[%c0_41, %c0_42, %c0_43] : memref<8x32x8xf32, #tpu.memory_space<vmem>>, vector<1x32x8xf32>
    %132 = vector.shape_cast %131 : vector<1x32x8xf32> to vector<32x8xf32>
    %133 = vector.shape_cast %130 : vector<32x8xf32> to vector<1x32x8xf32>
    tpu.vector_store %arg10[%c0_41, %c0_42, %c0_43], %133 {strides = array<i32>} : memref<8x32x8xf32, #tpu.memory_space<vmem>>, vector<1x32x8xf32>,
    %134 = vector.extract_strided_slice %129 {offsets = [32, 0], sizes = [32, 8], strides = [1, 1]} : vector<256x8xf32> to vector<32x8xf32>
    %c1 = arith.constant 1 : index
    %c0_44 = arith.constant 0 : index
    %c0_45 = arith.constant 0 : index
    %135 = vector.load %arg10[%c1, %c0_44, %c0_45] : memref<8x32x8xf32, #tpu.memory_space<vmem>>, vector<1x32x8xf32>
    %136 = vector.shape_cast %135 : vector<1x32x8xf32> to vector<32x8xf32>
    %137 = vector.shape_cast %134 : vector<32x8xf32> to vector<1x32x8xf32>
    tpu.vector_store %arg10[%c1, %c0_44, %c0_45], %137 {strides = array<i32>} : memref<8x32x8xf32, #tpu.memory_space<vmem>>, vector<1x32x8xf32>,
    %138 = vector.extract_strided_slice %129 {offsets = [64, 0], sizes = [32, 8], strides = [1, 1]} : vector<256x8xf32> to vector<32x8xf32>
    %c2 = arith.constant 2 : index
    %c0_46 = arith.constant 0 : index
    %c0_47 = arith.constant 0 : index
    %139 = vector.load %arg10[%c2, %c0_46, %c0_47] : memref<8x32x8xf32, #tpu.memory_space<vmem>>, vector<1x32x8xf32>
    %140 = vector.shape_cast %139 : vector<1x32x8xf32> to vector<32x8xf32>
    %141 = vector.shape_cast %138 : vector<32x8xf32> to vector<1x32x8xf32>
    tpu.vector_store %arg10[%c2, %c0_46, %c0_47], %141 {strides = array<i32>} : memref<8x32x8xf32, #tpu.memory_space<vmem>>, vector<1x32x8xf32>,
    %142 = vector.extract_strided_slice %129 {offsets = [96, 0], sizes = [32, 8], strides = [1, 1]} : vector<256x8xf32> to vector<32x8xf32>
    %c3 = arith.constant 3 : index
    %c0_48 = arith.constant 0 : index
    %c0_49 = arith.constant 0 : index
    %143 = vector.load %arg10[%c3, %c0_48, %c0_49] : memref<8x32x8xf32, #tpu.memory_space<vmem>>, vector<1x32x8xf32>
    %144 = vector.shape_cast %143 : vector<1x32x8xf32> to vector<32x8xf32>
    %145 = vector.shape_cast %142 : vector<32x8xf32> to vector<1x32x8xf32>
    tpu.vector_store %arg10[%c3, %c0_48, %c0_49], %145 {strides = array<i32>} : memref<8x32x8xf32, #tpu.memory_space<vmem>>, vector<1x32x8xf32>,
    %146 = vector.extract_strided_slice %129 {offsets = [128, 0], sizes = [32, 8], strides = [1, 1]} : vector<256x8xf32> to vector<32x8xf32>
    %c4 = arith.constant 4 : index
    %c0_50 = arith.constant 0 : index
    %c0_51 = arith.constant 0 : index
    %147 = vector.load %arg10[%c4, %c0_50, %c0_51] : memref<8x32x8xf32, #tpu.memory_space<vmem>>, vector<1x32x8xf32>
    %148 = vector.shape_cast %147 : vector<1x32x8xf32> to vector<32x8xf32>
    %149 = vector.shape_cast %146 : vector<32x8xf32> to vector<1x32x8xf32>
    tpu.vector_store %arg10[%c4, %c0_50, %c0_51], %149 {strides = array<i32>} : memref<8x32x8xf32, #tpu.memory_space<vmem>>, vector<1x32x8xf32>,
    %150 = vector.extract_strided_slice %129 {offsets = [160, 0], sizes = [32, 8], strides = [1, 1]} : vector<256x8xf32> to vector<32x8xf32>
    %c5 = arith.constant 5 : index
    %c0_52 = arith.constant 0 : index
    %c0_53 = arith.constant 0 : index
    %151 = vector.load %arg10[%c5, %c0_52, %c0_53] : memref<8x32x8xf32, #tpu.memory_space<vmem>>, vector<1x32x8xf32>
    %152 = vector.shape_cast %151 : vector<1x32x8xf32> to vector<32x8xf32>
    %153 = vector.shape_cast %150 : vector<32x8xf32> to vector<1x32x8xf32>
    tpu.vector_store %arg10[%c5, %c0_52, %c0_53], %153 {strides = array<i32>} : memref<8x32x8xf32, #tpu.memory_space<vmem>>, vector<1x32x8xf32>,
    %154 = vector.extract_strided_slice %129 {offsets = [192, 0], sizes = [32, 8], strides = [1, 1]} : vector<256x8xf32> to vector<32x8xf32>
    %c6 = arith.constant 6 : index
    %c0_54 = arith.constant 0 : index
    %c0_55 = arith.constant 0 : index
    %155 = vector.load %arg10[%c6, %c0_54, %c0_55] : memref<8x32x8xf32, #tpu.memory_space<vmem>>, vector<1x32x8xf32>
    %156 = vector.shape_cast %155 : vector<1x32x8xf32> to vector<32x8xf32>
    %157 = vector.shape_cast %154 : vector<32x8xf32> to vector<1x32x8xf32>
    tpu.vector_store %arg10[%c6, %c0_54, %c0_55], %157 {strides = array<i32>} : memref<8x32x8xf32, #tpu.memory_space<vmem>>, vector<1x32x8xf32>,
    %158 = vector.extract_strided_slice %129 {offsets = [224, 0], sizes = [32, 8], strides = [1, 1]} : vector<256x8xf32> to vector<32x8xf32>
    %c7 = arith.constant 7 : index
    %c0_56 = arith.constant 0 : index
    %c0_57 = arith.constant 0 : index
    %159 = vector.load %arg10[%c7, %c0_56, %c0_57] : memref<8x32x8xf32, #tpu.memory_space<vmem>>, vector<1x32x8xf32>
    %160 = vector.shape_cast %159 : vector<1x32x8xf32> to vector<32x8xf32>
    %161 = vector.shape_cast %158 : vector<32x8xf32> to vector<1x32x8xf32>
    tpu.vector_store %arg10[%c7, %c0_56, %c0_57], %161 {strides = array<i32>} : memref<8x32x8xf32, #tpu.memory_space<vmem>>, vector<1x32x8xf32>,
    %c0_58 = arith.constant 0 : index
    %c0_59 = arith.constant 0 : index
    %c0_60 = arith.constant 0 : index
    %162 = tpu.strided_load %arg10[%c0_58, %c0_59, %c0_60] {strides = array<i32: 1, 2, 1>} : memref<8x32x8xf32, #tpu.memory_space<vmem>>, vector<8x8x8xf32>
    %c0_61 = arith.constant 0 : index
    %c1_62 = arith.constant 1 : index
    %c0_63 = arith.constant 0 : index
    %163 = tpu.strided_load %arg10[%c0_61, %c1_62, %c0_63] {strides = array<i32: 1, 2, 1>} : memref<8x32x8xf32, #tpu.memory_space<vmem>>, vector<8x8x8xf32>
    %164 = arith.addf %162, %163 : vector<8x8x8xf32>
    %c0_64 = arith.constant 0 : index
    %c16 = arith.constant 16 : index
    %c0_65 = arith.constant 0 : index
    %165 = tpu.strided_load %arg10[%c0_64, %c16, %c0_65] {strides = array<i32: 1, 2, 1>} : memref<8x32x8xf32, #tpu.memory_space<vmem>>, vector<8x8x8xf32>
    %166 = arith.addf %164, %165 : vector<8x8x8xf32>
    %c0_66 = arith.constant 0 : index
    %c17_67 = arith.constant 17 : index
    %c0_68 = arith.constant 0 : index
    %167 = tpu.strided_load %arg10[%c0_66, %c17_67, %c0_68] {strides = array<i32: 1, 2, 1>} : memref<8x32x8xf32, #tpu.memory_space<vmem>>, vector<8x8x8xf32>
    %168 = arith.addf %166, %167 : vector<8x8x8xf32>
    %cst_69 = arith.constant 2.500000e-01 : f32
    %169 = vector.broadcast %cst_69 : f32 to vector<8x8x8xf32>
    %170 = arith.mulf %168, %169 : vector<8x8x8xf32>
    %c0_70 = arith.constant 0 : index
    %c0_71 = arith.constant 0 : index
    %c0_72 = arith.constant 0 : index
    %c0_73 = arith.constant 0 : index
    %171 = vector.load %arg8[%c0_70, %c0_71, %c0_72, %c0_73] : memref<1x8x8x8xf32, #tpu.memory_space<vmem>>, vector<1x8x8x8xf32>
    %172 = vector.shape_cast %171 : vector<1x8x8x8xf32> to vector<8x8x8xf32>
    %173 = vector.shape_cast %170 : vector<8x8x8xf32> to vector<1x8x8x8xf32>
    tpu.vector_store %arg8[%c0_70, %c0_71, %c0_72, %c0_73], %173 {strides = array<i32>} : memref<1x8x8x8xf32, #tpu.memory_space<vmem>>, vector<1x8x8x8xf32>,
    return
  }
  func.func @transform_0(%arg0: i32) -> (i32, i32, i32) {
    %c0_i32 = arith.constant 0 : i32
    %c0_i32_0 = arith.constant 0 : i32
    %c0_i32_1 = arith.constant 0 : i32
    return %arg0, %c0_i32, %c0_i32_0 : i32, i32, i32
  }
  func.func @transform_1(%arg0: i32) -> (i32, i32) {
    %c0_i32 = arith.constant 0 : i32
    %c0_i32_0 = arith.constant 0 : i32
    %c0_i32_1 = arith.constant 0 : i32
    return %c0_i32, %c0_i32_0 : i32, i32
  }
  func.func @transform_2(%arg0: i32) -> (i32, i32) {
    %c0_i32 = arith.constant 0 : i32
    %c0_i32_0 = arith.constant 0 : i32
    %c0_i32_1 = arith.constant 0 : i32
    return %c0_i32, %c0_i32_0 : i32, i32
  }
  func.func @transform_3(%arg0: i32) -> (i32, i32) {
    %c0_i32 = arith.constant 0 : i32
    %c0_i32_0 = arith.constant 0 : i32
    %c0_i32_1 = arith.constant 0 : i32
    return %c0_i32, %c0_i32_0 : i32, i32
  }
  func.func @transform_4(%arg0: i32) -> (i32, i32) {
    %c0_i32 = arith.constant 0 : i32
    %c0_i32_0 = arith.constant 0 : i32
    %c0_i32_1 = arith.constant 0 : i32
    return %c0_i32, %c0_i32_0 : i32, i32
  }
  func.func @transform_5(%arg0: i32) -> (i32, i32) {
    %c0_i32 = arith.constant 0 : i32
    %c0_i32_0 = arith.constant 0 : i32
    %c0_i32_1 = arith.constant 0 : i32
    return %c0_i32, %c0_i32_0 : i32, i32
  }
  func.func @transform_6(%arg0: i32) -> (i32, i32) {
    %c0_i32 = arith.constant 0 : i32
    %c0_i32_0 = arith.constant 0 : i32
    %c0_i32_1 = arith.constant 0 : i32
    return %c0_i32, %c0_i32_0 : i32, i32
  }
  func.func @transform_7(%arg0: i32) -> (i32, i32, i32, i32) {
    %c0_i32 = arith.constant 0 : i32
    %c0_i32_0 = arith.constant 0 : i32
    %c0_i32_1 = arith.constant 0 : i32
    %c0_i32_2 = arith.constant 0 : i32
    return %arg0, %c0_i32, %c0_i32_0, %c0_i32_1 : i32, i32, i32, i32
  }
}

</mosaic_0001>

<llo_original>
// kernel: tpu_custom_call.1
$region0: #{tpu_custom_call.1}
  #allocation0 [shape = 'u32[]', space=smem, size = 0x4, offset = 0x4, fixed_abs, tag = 'smem constant byte address 0x4 - core index']
  #allocation1 [shape = 'u32[72,128]{1,0:T(1,128)}', space=vmem, size = 0x9000, scoped, tag = 'internal scratch']
  #allocation2 [shape = 'bf16[290,8]{1,0:T(8,128)(2,1)}', space=vmem, size = 0x12800, scoped, tag = 'scratch operand']
  #allocation3 [shape = 'f32[8,32,8]{2,1,0:T(8,128)}', space=vmem, size = 0x20000, scoped, tag = 'scratch operand']
  %s0 = inlined_call_operand.vmem [shape: bf16[2,290,4], index: 0, kind: input, shape index: {}]
  %s1 = inlined_call_operand.vmem [shape: bf16[36,8], index: 1, kind: input, shape index: {}]
  %s2 = inlined_call_operand.vmem [shape: f32[1,8], index: 2, kind: input, shape index: {}]
  %s3 = inlined_call_operand.vmem [shape: bf16[72,8], index: 3, kind: input, shape index: {}]
  %s4 = inlined_call_operand.vmem [shape: f32[1,8], index: 4, kind: input, shape index: {}]
  %s5 = inlined_call_operand.vmem [shape: bf16[4,8], index: 5, kind: input, shape index: {}]
  %s6 = inlined_call_operand.vmem [shape: f32[1,8], index: 6, kind: input, shape index: {}]
  %s7 = inlined_call_operand.hbm [shape: f32[2,8,8,8], index: 7, kind: output, shape index: {}]
  %s8 = sld [smem:[#allocation0]]
  $region61: #{tpu_custom_call.1} parent=0
    _
  %s10 = ssub.s32 1, %s8
  %s11 = scalar_select 0, %s10, %s8
  $region1: #{tpu_custom_call.1} parent=0
    #allocation4 [shape = 'u8[65536]{0}', space=vmem, size = 0x10000, scoped, tag = 'output window, operand 0']
    #allocation5 [shape = 's32[2]{0}', space=sflag, size = 0x8, scoped, tag = 'scoped memory for tpu_custom_call.1']
    %12 = vsyncpa [#allocation5], 0
    %s13 = scalar_lea.sflag [#allocation5], 1
    %14 = vsyncpa %s13, 0
    loop: start=0, step=1, limit=4
    $region2: #{tpu_custom_call.1} parent=1 // loop_pre_header
      _
    $region3: #{tpu_custom_call.1} parent=1 // loop_header
      %s16 = sphi 0, %s20
      %p17 = scmp.ge.s32.totalorder %s16, 4
      %s26 = sphi 0, %s28
      %s29 = sphi 0, %s26
      %s30 = sphi 0, %s29
      %s46 = sphi 0, %s30
      %s50 = sphi 0, %s50
      %s52 = sphi 0, %s50
      %s53 = sphi 0, %s52
      %s67 = sphi 0, %s53
      %s71 = sphi 0, %s71
      %s73 = sphi 0, %s71
      %s74 = sphi 0, %s73
      %s88 = sphi 0, %s74
      %s92 = sphi 0, %s92
      %s94 = sphi 0, %s92
      %s95 = sphi 0, %s94
      %s109 = sphi 0, %s95
      %s113 = sphi 0, %s113
      %s115 = sphi 0, %s113
      %s116 = sphi 0, %s115
      %s130 = sphi 0, %s116
      %s134 = sphi 0, %s134
      %s136 = sphi 0, %s134
      %s137 = sphi 0, %s136
      %s151 = sphi 0, %s137
      %s155 = sphi 0, %s155
      %s157 = sphi 0, %s155
      %s158 = sphi 0, %s157
      %s172 = sphi 0, %s158
      %s178 = sphi 0, %s180
      %s181 = sphi 0, %s178
      %s182 = sphi 0, %s181
      %s198 = sphi 0, %s182
    $region4: #{tpu_custom_call.1} parent=1 // loop_header_branch
      %19 = sbr.rel (%p17) target = $region8
    $region5: #{tpu_custom_call.1} parent=1 // loop_body
      %s21 = ssub.s32 %s16, 1
      %s22 = ssub.s32 %s16, 2
      %s23 = sadd.s32 %s16, 1
      %s24 = ssub.s32 %s16, %s23
      %p25 = scmp.eq.s32.totalorder %s24, 0
      %s27 = sadd.s32 %s26, 1
      %s28 = scalar_select %p25, %s26, %s27
      %p31 = pneg %p25
      %p32 = scmp.eq.s32.totalorder %s16, 1
      %p33 = por %p31, %p32
      %p34 = scmp.ne.s32.totalorder %s26, %s29
      %p35 = scmp.eq.s32.totalorder %s16, 0
      %p36 = por %p34, %p35
      %p37 = scmp.ne.s32.totalorder %s26, %s29
      %p38 = scmp.eq.s32.totalorder %s21, 1
      %p39 = por %p37, %p38
      %p40 = scmp.ne.s32.totalorder %s29, %s30
      %p41 = scmp.eq.s32.totalorder %s21, 0
      %p42 = por %p40, %p41
      %p43 = scmp.ne.s32.totalorder %s29, %s30
      %p44 = scmp.eq.s32.totalorder %s22, 1
      %p45 = por %p43, %p44
      %p47 = scmp.ne.s32.totalorder %s30, %s46
      %p48 = scmp.eq.s32.totalorder %s22, 0
      %p49 = por %p47, %p48
      %s51 = sadd.s32 %s50, 1
      %p54 = scmp.eq.s32.totalorder %s16, 1
      %p55 = scmp.ne.s32.totalorder %s50, %s52
      %p56 = scmp.eq.s32.totalorder %s16, 0
      %p57 = por %p55, %p56
      %p58 = scmp.ne.s32.totalorder %s50, %s52
      %p59 = scmp.eq.s32.totalorder %s21, 1
      %p60 = por %p58, %p59
      %p61 = scmp.ne.s32.totalorder %s52, %s53
      %p62 = scmp.eq.s32.totalorder %s21, 0
      %p63 = por %p61, %p62
      %p64 = scmp.ne.s32.totalorder %s52, %s53
      %p65 = scmp.eq.s32.totalorder %s22, 1
      %p66 = por %p64, %p65
      %p68 = scmp.ne.s32.totalorder %s53, %s67
      %p69 = scmp.eq.s32.totalorder %s22, 0
      %p70 = por %p68, %p69
      %s72 = sadd.s32 %s71, 1
      %p75 = scmp.eq.s32.totalorder %s16, 1
      %p76 = scmp.ne.s32.totalorder %s71, %s73
      %p77 = scmp.eq.s32.totalorder %s16, 0
      %p78 = por %p76, %p77
      %p79 = scmp.ne.s32.totalorder %s71, %s73
      %p80 = scmp.eq.s32.totalorder %s21, 1
      %p81 = por %p79, %p80
      %p82 = scmp.ne.s32.totalorder %s73, %s74
      %p83 = scmp.eq.s32.totalorder %s21, 0
      %p84 = por %p82, %p83
      %p85 = scmp.ne.s32.totalorder %s73, %s74
      %p86 = scmp.eq.s32.totalorder %s22, 1
      %p87 = por %p85, %p86
      %p89 = scmp.ne.s32.totalorder %s74, %s88
      %p90 = scmp.eq.s32.totalorder %s22, 0
      %p91 = por %p89, %p90
      %s93 = sadd.s32 %s92, 1
      %p96 = scmp.eq.s32.totalorder %s16, 1
      %p97 = scmp.ne.s32.totalorder %s92, %s94
      %p98 = scmp.eq.s32.totalorder %s16, 0
      %p99 = por %p97, %p98
      %p100 = scmp.ne.s32.totalorder %s92, %s94
      %p101 = scmp.eq.s32.totalorder %s21, 1
      %p102 = por %p100, %p101
      %p103 = scmp.ne.s32.totalorder %s94, %s95
      %p104 = scmp.eq.s32.totalorder %s21, 0
      %p105 = por %p103, %p104
      %p106 = scmp.ne.s32.totalorder %s94, %s95
      %p107 = scmp.eq.s32.totalorder %s22, 1
      %p108 = por %p106, %p107
      %p110 = scmp.ne.s32.totalorder %s95, %s109
      %p111 = scmp.eq.s32.totalorder %s22, 0
      %p112 = por %p110, %p111
      %s114 = sadd.s32 %s113, 1
      %p117 = scmp.eq.s32.totalorder %s16, 1
      %p118 = scmp.ne.s32.totalorder %s113, %s115
      %p119 = scmp.eq.s32.totalorder %s16, 0
      %p120 = por %p118, %p119
      %p121 = scmp.ne.s32.totalorder %s113, %s115
      %p122 = scmp.eq.s32.totalorder %s21, 1
      %p123 = por %p121, %p122
      %p124 = scmp.ne.s32.totalorder %s115, %s116
      %p125 = scmp.eq.s32.totalorder %s21, 0
      %p126 = por %p124, %p125
      %p127 = scmp.ne.s32.totalorder %s115, %s116
      %p128 = scmp.eq.s32.totalorder %s22, 1
      %p129 = por %p127, %p128
      %p131 = scmp.ne.s32.totalorder %s116, %s130
      %p132 = scmp.eq.s32.totalorder %s22, 0
      %p133 = por %p131, %p132
      %s135 = sadd.s32 %s134, 1
      %p138 = scmp.eq.s32.totalorder %s16, 1
      %p139 = scmp.ne.s32.totalorder %s134, %s136
      %p140 = scmp.eq.s32.totalorder %s16, 0
      %p141 = por %p139, %p140
      %p142 = scmp.ne.s32.totalorder %s134, %s136
      %p143 = scmp.eq.s32.totalorder %s21, 1
      %p144 = por %p142, %p143
      %p145 = scmp.ne.s32.totalorder %s136, %s137
      %p146 = scmp.eq.s32.totalorder %s21, 0
      %p147 = por %p145, %p146
      %p148 = scmp.ne.s32.totalorder %s136, %s137
      %p149 = scmp.eq.s32.totalorder %s22, 1
      %p150 = por %p148, %p149
      %p152 = scmp.ne.s32.totalorder %s137, %s151
      %p153 = scmp.eq.s32.totalorder %s22, 0
      %p154 = por %p152, %p153
      %s156 = sadd.s32 %s155, 1
      %p159 = scmp.eq.s32.totalorder %s16, 1
      %p160 = scmp.ne.s32.totalorder %s155, %s157
      %p161 = scmp.eq.s32.totalorder %s16, 0
      %p162 = por %p160, %p161
      %p163 = scmp.ne.s32.totalorder %s155, %s157
      %p164 = scmp.eq.s32.totalorder %s21, 1
      %p165 = por %p163, %p164
      %p166 = scmp.ne.s32.totalorder %s157, %s158
      %p167 = scmp.eq.s32.totalorder %s21, 0
      %p168 = por %p166, %p167
      %p169 = scmp.ne.s32.totalorder %s157, %s158
      %p170 = scmp.eq.s32.totalorder %s22, 1
      %p171 = por %p169, %p170
      %p173 = scmp.ne.s32.totalorder %s158, %s172
      %p174 = scmp.eq.s32.totalorder %s22, 0
      %p175 = por %p173, %p174
      %s176 = ssub.s32 %s16, %s23
      %p177 = scmp.eq.s32.totalorder %s176, 0
      %s179 = sadd.s32 %s178, 1
      %s180 = scalar_select %p177, %s178, %s179
      %p183 = pneg %p177
      %p184 = scmp.eq.s32.totalorder %s16, 1
      %p185 = por %p183, %p184
      %p186 = scmp.ne.s32.totalorder %s178, %s181
      %p187 = scmp.eq.s32.totalorder %s16, 0
      %p188 = por %p186, %p187
      %p189 = scmp.ne.s32.totalorder %s178, %s181
      %p190 = scmp.eq.s32.totalorder %s21, 1
      %p191 = por %p189, %p190
      %p192 = scmp.ne.s32.totalorder %s181, %s182
      %p193 = scmp.eq.s32.totalorder %s21, 0
      %p194 = por %p192, %p193
      %p195 = scmp.ne.s32.totalorder %s181, %s182
      %p196 = scmp.eq.s32.totalorder %s22, 1
      %p197 = por %p195, %p196
      %p199 = scmp.ne.s32.totalorder %s182, %s198
      %p200 = scmp.eq.s32.totalorder %s22, 0
      %p201 = por %p199, %p200
      %p202 = scmp.le.s32.totalorder 1, %s16
      %p203 = scmp.lt.s32.totalorder %s16, 3
      %p204 = pnand %p202, %p203
      %p205 = pneg %p204
      // Predicated region
      $region9: #{tpu_custom_call.1} parent=5 // pred_check
        _
      $region10: #{tpu_custom_call.1} parent=5 // pred_check_branch
        %207 = sbr.rel (%p204) target = $region12
      $region11: #{tpu_custom_call.1} parent=5 // pred_region
        %s208 = ssub.s32 %s16, 1
        // Predicated region
        $region13: #{tpu_custom_call.1} parent=11 // pred_check
          %p209 = pneg %p63
        $region14: #{tpu_custom_call.1} parent=11 // pred_check_branch
          %211 = sbr.rel (%p209) target = $region16
        $region15: #{tpu_custom_call.1} parent=11 // pred_region
          _
        $region16: #{tpu_custom_call.1} parent=11 // pred_fallthru
          _
        // Predicated region
        $region17: #{tpu_custom_call.1} parent=11 // pred_check
          %p212 = pneg %p84
        $region18: #{tpu_custom_call.1} parent=11 // pred_check_branch
          %214 = sbr.rel (%p212) target = $region20
        $region19: #{tpu_custom_call.1} parent=11 // pred_region
          _
        $region20: #{tpu_custom_call.1} parent=11 // pred_fallthru
          _
        // Predicated region
        $region21: #{tpu_custom_call.1} parent=11 // pred_check
          %p215 = pneg %p105
        $region22: #{tpu_custom_call.1} parent=11 // pred_check_branch
          %217 = sbr.rel (%p215) target = $region24
        $region23: #{tpu_custom_call.1} parent=11 // pred_region
          _
        $region24: #{tpu_custom_call.1} parent=11 // pred_fallthru
          _
        // Predicated region
        $region25: #{tpu_custom_call.1} parent=11 // pred_check
          %p218 = pneg %p126
        $region26: #{tpu_custom_call.1} parent=11 // pred_check_branch
          %220 = sbr.rel (%p218) target = $region28
        $region27: #{tpu_custom_call.1} parent=11 // pred_region
          _
        $region28: #{tpu_custom_call.1} parent=11 // pred_fallthru
          _
        // Predicated region
        $region29: #{tpu_custom_call.1} parent=11 // pred_check
          %p221 = pneg %p147
        $region30: #{tpu_custom_call.1} parent=11 // pred_check_branch
          %223 = sbr.rel (%p221) target = $region32
        $region31: #{tpu_custom_call.1} parent=11 // pred_region
          _
        $region32: #{tpu_custom_call.1} parent=11 // pred_fallthru
          _
        // Predicated region
        $region33: #{tpu_custom_call.1} parent=11 // pred_check
          %p224 = pneg %p168
        $region34: #{tpu_custom_call.1} parent=11 // pred_check_branch
          %226 = sbr.rel (%p224) target = $region36
        $region35: #{tpu_custom_call.1} parent=11 // pred_region
          _
        $region36: #{tpu_custom_call.1} parent=11 // pred_fallthru
          _
      $region12: #{tpu_custom_call.1} parent=5 // pred_fallthru
        _
      %p227 = scmp.lt.s32.totalorder %s16, 2
      // Predicated region
      $region37: #{tpu_custom_call.1} parent=5 // pred_check
        %p228 = pneg %p227
      $region38: #{tpu_custom_call.1} parent=5 // pred_check_branch
        %230 = sbr.rel (%p228) target = $region40
      $region39: #{tpu_custom_call.1} parent=5 // pred_region
        // Predicated region
        $region41: #{tpu_custom_call.1} parent=39 // pred_check
          %p231 = pneg %p36
        $region42: #{tpu_custom_call.1} parent=39 // pred_check_branch
          %233 = sbr.rel (%p231) target = $region44
        $region43: #{tpu_custom_call.1} parent=39 // pred_region
          %p234 = scmp.lt.s32.totalorder %s16, 1
          %s235 = scalar_select %p234, %s16, 1
          %s236 = smul.addr %s235, 37
          %s237 = smul.addr %s236, 4
          %s238 = scalar_lea.vmem %s0, %s237
        $region44: #{tpu_custom_call.1} parent=39 // pred_fallthru
          _
      $region40: #{tpu_custom_call.1} parent=5 // pred_fallthru
        _
      %p239 = scmp.le.s32.totalorder 1, %s16
      %p240 = scmp.lt.s32.totalorder %s16, 3
      %p241 = pnand %p239, %p240
      %p242 = pneg %p241
      // Predicated region
      $region45: #{tpu_custom_call.1} parent=5 // pred_check
        _
      $region46: #{tpu_custom_call.1} parent=5 // pred_check_branch
        %244 = sbr.rel (%p241) target = $region48
      $region47: #{tpu_custom_call.1} parent=5 // pred_region
        %s245 = ssub.s32 %s16, 1
        %p246 = scmp.lt.s32.totalorder %s21, 1
        %s247 = scalar_select %p246, %s21, 1
        %s248 = smul.addr %s247, 37
        %s249 = smul.addr %s248, 4
        %s250 = scalar_lea.vmem %s0, %s249
        %p251 = pneg %p42
        %p252 = pneg %p39
        %p253 = pneg %p63
        %p254 = pneg %p60
        %p255 = pneg %p84
        %p256 = pneg %p81
        %p257 = pneg %p105
        %p258 = pneg %p102
        %p259 = pneg %p126
        %p260 = pneg %p123
        %p261 = pneg %p147
        %p262 = pneg %p144
        %p263 = pneg %p168
        %p264 = pneg %p165
        %p265 = pneg %p194
        %p266 = pneg %p191
        %s267 = sand.u32 %s181, 1
        %s268 = scalar_lea.sflag [#allocation5], %s267
        %s269 = sand.u32 %s181, 1
        %s270 = smul.addr %s269, 64
        %s271 = scalar_lea.vmem [#allocation4], %s270
        %p272 = scmp.lt.s32.totalorder %s21, 1
        %s273 = scalar_select %p272, %s21, 1
        %s274 = smul.addr %s273, 37
        %s275 = smul.addr %s274, 4
        %s276 = scalar_lea.vmem %s0, %s275
        %v280 = vlaneseq
        %v281 = vshrl.u32 %v280, 7
        %v282 = vadd.s32 %v281, 8
        %v283 = vadd.s32 %v281, 16
        %v284 = vadd.s32 %v281, 24
        %v285 = vadd.s32 %v281, 32
        %v286 = vadd.s32 %v281, 40
        %v287 = vadd.s32 %v281, 48
        %v288 = vadd.s32 %v281, 56
        %v289 = vadd.s32 %v281, 64
        %v290 = vadd.s32 %v281, 72
        %v291 = vadd.s32 %v281, 80
        %v292 = vadd.s32 %v281, 88
        %v293 = vadd.s32 %v281, 96
        %v294 = vadd.s32 %v281, 104
        %v295 = vadd.s32 %v281, 112
        %v296 = vadd.s32 %v281, 120
        %v297 = vadd.s32 %v281, 128
        %v298 = vadd.s32 %v281, 136
        %v299 = vadd.s32 %v281, 144
        %v300 = vadd.s32 %v281, 152
        %v301 = vadd.s32 %v281, 160
        %v302 = vadd.s32 %v281, 168
        %v303 = vadd.s32 %v281, 176
        %v304 = vadd.s32 %v281, 184
        %v305 = vadd.s32 %v281, 192
        %v306 = vadd.s32 %v281, 200
        %v307 = vadd.s32 %v281, 208
        %v308 = vadd.s32 %v281, 216
        %v309 = vadd.s32 %v281, 224
        %v310 = vadd.s32 %v281, 232
        %v311 = vadd.s32 %v281, 240
        %v312 = vadd.s32 %v281, 248
        %vm313 = vcmp.lt.s32.totalorder %v281, 0
        %v314 = vsub.s32 0, %v281
        %v315 = vsel %vm313, %v314, %v281
        %v316 = vshrl.u32 %v315, 4
        %v317 = vand.u32 %v315, 15
        %v318 = vsub.s32 0, %v317
        %v319 = vsel %vm313, %v318, %v317
        %vm320 = vcmp.lt.s32.totalorder %v282, 0
        %v321 = vsub.s32 0, %v282
        %v322 = vsel %vm320, %v321, %v282
        %v323 = vshrl.u32 %v322, 4
        %v324 = vand.u32 %v322, 15
        %v325 = vsub.s32 0, %v324
        %v326 = vsel %vm320, %v325, %v324
        %vm327 = vcmp.lt.s32.totalorder %v283, 0
        %v328 = vsub.s32 0, %v283
        %v329 = vsel %vm327, %v328, %v283
        %v330 = vshrl.u32 %v329, 4
        %v331 = vand.u32 %v329, 15
        %v332 = vsub.s32 0, %v331
        %v333 = vsel %vm327, %v332, %v331
        %vm334 = vcmp.lt.s32.totalorder %v284, 0
        %v335 = vsub.s32 0, %v284
        %v336 = vsel %vm334, %v335, %v284
        %v337 = vshrl.u32 %v336, 4
        %v338 = vand.u32 %v336, 15
        %v339 = vsub.s32 0, %v338
        %v340 = vsel %vm334, %v339, %v338
        %vm341 = vcmp.lt.s32.totalorder %v285, 0
        %v342 = vsub.s32 0, %v285
        %v343 = vsel %vm341, %v342, %v285
        %v344 = vshrl.u32 %v343, 4
        %v345 = vand.u32 %v343, 15
        %v346 = vsub.s32 0, %v345
        %v347 = vsel %vm341, %v346, %v345
        %vm348 = vcmp.lt.s32.totalorder %v286, 0
        %v349 = vsub.s32 0, %v286
        %v350 = vsel %vm348, %v349, %v286
        %v351 = vshrl.u32 %v350, 4
        %v352 = vand.u32 %v350, 15
        %v353 = vsub.s32 0, %v352
        %v354 = vsel %vm348, %v353, %v352
        %vm355 = vcmp.lt.s32.totalorder %v287, 0
        %v356 = vsub.s32 0, %v287
        %v357 = vsel %vm355, %v356, %v287
        %v358 = vshrl.u32 %v357, 4
        %v359 = vand.u32 %v357, 15
        %v360 = vsub.s32 0, %v359
        %v361 = vsel %vm355, %v360, %v359
        %vm362 = vcmp.lt.s32.totalorder %v288, 0
        %v363 = vsub.s32 0, %v288
        %v364 = vsel %vm362, %v363, %v288
        %v365 = vshrl.u32 %v364, 4
        %v366 = vand.u32 %v364, 15
        %v367 = vsub.s32 0, %v366
        %v368 = vsel %vm362, %v367, %v366
        %vm369 = vcmp.lt.s32.totalorder %v289, 0
        %v370 = vsub.s32 0, %v289
        %v371 = vsel %vm369, %v370, %v289
        %v372 = vshrl.u32 %v371, 4
        %v373 = vand.u32 %v371, 15
        %v374 = vsub.s32 0, %v373
        %v375 = vsel %vm369, %v374, %v373
        %vm376 = vcmp.lt.s32.totalorder %v290, 0
        %v377 = vsub.s32 0, %v290
        %v378 = vsel %vm376, %v377, %v290
        %v379 = vshrl.u32 %v378, 4
        %v380 = vand.u32 %v378, 15
        %v381 = vsub.s32 0, %v380
        %v382 = vsel %vm376, %v381, %v380
        %vm383 = vcmp.lt.s32.totalorder %v291, 0
        %v384 = vsub.s32 0, %v291
        %v385 = vsel %vm383, %v384, %v291
        %v386 = vshrl.u32 %v385, 4
        %v387 = vand.u32 %v385, 15
        %v388 = vsub.s32 0, %v387
        %v389 = vsel %vm383, %v388, %v387
        %vm390 = vcmp.lt.s32.totalorder %v292, 0
        %v391 = vsub.s32 0, %v292
        %v392 = vsel %vm390, %v391, %v292
        %v393 = vshrl.u32 %v392, 4
        %v394 = vand.u32 %v392, 15
        %v395 = vsub.s32 0, %v394
        %v396 = vsel %vm390, %v395, %v394
        %vm397 = vcmp.lt.s32.totalorder %v293, 0
        %v398 = vsub.s32 0, %v293
        %v399 = vsel %vm397, %v398, %v293
        %v400 = vshrl.u32 %v399, 4
        %v401 = vand.u32 %v399, 15
        %v402 = vsub.s32 0, %v401
        %v403 = vsel %vm397, %v402, %v401
        %vm404 = vcmp.lt.s32.totalorder %v294, 0
        %v405 = vsub.s32 0, %v294
        %v406 = vsel %vm404, %v405, %v294
        %v407 = vshrl.u32 %v406, 4
        %v408 = vand.u32 %v406, 15
        %v409 = vsub.s32 0, %v408
        %v410 = vsel %vm404, %v409, %v408
        %vm411 = vcmp.lt.s32.totalorder %v295, 0
        %v412 = vsub.s32 0, %v295
        %v413 = vsel %vm411, %v412, %v295
        %v414 = vshrl.u32 %v413, 4
        %v415 = vand.u32 %v413, 15
        %v416 = vsub.s32 0, %v415
        %v417 = vsel %vm411, %v416, %v415
        %vm418 = vcmp.lt.s32.totalorder %v296, 0
        %v419 = vsub.s32 0, %v296
        %v420 = vsel %vm418, %v419, %v296
        %v421 = vshrl.u32 %v420, 4
        %v422 = vand.u32 %v420, 15
        %v423 = vsub.s32 0, %v422
        %v424 = vsel %vm418, %v423, %v422
        %vm425 = vcmp.lt.s32.totalorder %v297, 0
        %v426 = vsub.s32 0, %v297
        %v427 = vsel %vm425, %v426, %v297
        %v428 = vshrl.u32 %v427, 4
        %v429 = vand.u32 %v427, 15
        %v430 = vsub.s32 0, %v429
        %v431 = vsel %vm425, %v430, %v429
        %vm432 = vcmp.lt.s32.totalorder %v298, 0
        %v433 = vsub.s32 0, %v298
        %v434 = vsel %vm432, %v433, %v298
        %v435 = vshrl.u32 %v434, 4
        %v436 = vand.u32 %v434, 15
        %v437 = vsub.s32 0, %v436
        %v438 = vsel %vm432, %v437, %v436
        %vm439 = vcmp.lt.s32.totalorder %v299, 0
        %v440 = vsub.s32 0, %v299
        %v441 = vsel %vm439, %v440, %v299
        %v442 = vshrl.u32 %v441, 4
        %v443 = vand.u32 %v441, 15
        %v444 = vsub.s32 0, %v443
        %v445 = vsel %vm439, %v444, %v443
        %vm446 = vcmp.lt.s32.totalorder %v300, 0
        %v447 = vsub.s32 0, %v300
        %v448 = vsel %vm446, %v447, %v300
        %v449 = vshrl.u32 %v448, 4
        %v450 = vand.u32 %v448, 15
        %v451 = vsub.s32 0, %v450
        %v452 = vsel %vm446, %v451, %v450
        %vm453 = vcmp.lt.s32.totalorder %v301, 0
        %v454 = vsub.s32 0, %v301
        %v455 = vsel %vm453, %v454, %v301
        %v456 = vshrl.u32 %v455, 4
        %v457 = vand.u32 %v455, 15
        %v458 = vsub.s32 0, %v457
        %v459 = vsel %vm453, %v458, %v457
        %vm460 = vcmp.lt.s32.totalorder %v302, 0
        %v461 = vsub.s32 0, %v302
        %v462 = vsel %vm460, %v461, %v302
        %v463 = vshrl.u32 %v462, 4
        %v464 = vand.u32 %v462, 15
        %v465 = vsub.s32 0, %v464
        %v466 = vsel %vm460, %v465, %v464
        %vm467 = vcmp.lt.s32.totalorder %v303, 0
        %v468 = vsub.s32 0, %v303
        %v469 = vsel %vm467, %v468, %v303
        %v470 = vshrl.u32 %v469, 4
        %v471 = vand.u32 %v469, 15
        %v472 = vsub.s32 0, %v471
        %v473 = vsel %vm467, %v472, %v471
        %vm474 = vcmp.lt.s32.totalorder %v304, 0
        %v475 = vsub.s32 0, %v304
        %v476 = vsel %vm474, %v475, %v304
        %v477 = vshrl.u32 %v476, 4
        %v478 = vand.u32 %v476, 15
        %v479 = vsub.s32 0, %v478
        %v480 = vsel %vm474, %v479, %v478
        %vm481 = vcmp.lt.s32.totalorder %v305, 0
        %v482 = vsub.s32 0, %v305
        %v483 = vsel %vm481, %v482, %v305
        %v484 = vshrl.u32 %v483, 4
        %v485 = vand.u32 %v483, 15
        %v486 = vsub.s32 0, %v485
        %v487 = vsel %vm481, %v486, %v485
        %vm488 = vcmp.lt.s32.totalorder %v306, 0
        %v489 = vsub.s32 0, %v306
        %v490 = vsel %vm488, %v489, %v306
        %v491 = vshrl.u32 %v490, 4
        %v492 = vand.u32 %v490, 15
        %v493 = vsub.s32 0, %v492
        %v494 = vsel %vm488, %v493, %v492
        %vm495 = vcmp.lt.s32.totalorder %v307, 0
        %v496 = vsub.s32 0, %v307
        %v497 = vsel %vm495, %v496, %v307
        %v498 = vshrl.u32 %v497, 4
        %v499 = vand.u32 %v497, 15
        %v500 = vsub.s32 0, %v499
        %v501 = vsel %vm495, %v500, %v499
        %vm502 = vcmp.lt.s32.totalorder %v308, 0
        %v503 = vsub.s32 0, %v308
        %v504 = vsel %vm502, %v503, %v308
        %v505 = vshrl.u32 %v504, 4
        %v506 = vand.u32 %v504, 15
        %v507 = vsub.s32 0, %v506
        %v508 = vsel %vm502, %v507, %v506
        %vm509 = vcmp.lt.s32.totalorder %v309, 0
        %v510 = vsub.s32 0, %v309
        %v511 = vsel %vm509, %v510, %v309
        %v512 = vshrl.u32 %v511, 4
        %v513 = vand.u32 %v511, 15
        %v514 = vsub.s32 0, %v513
        %v515 = vsel %vm509, %v514, %v513
        %vm516 = vcmp.lt.s32.totalorder %v310, 0
        %v517 = vsub.s32 0, %v310
        %v518 = vsel %vm516, %v517, %v310
        %v519 = vshrl.u32 %v518, 4
        %v520 = vand.u32 %v518, 15
        %v521 = vsub.s32 0, %v520
        %v522 = vsel %vm516, %v521, %v520
        %vm523 = vcmp.lt.s32.totalorder %v311, 0
        %v524 = vsub.s32 0, %v311
        %v525 = vsel %vm523, %v524, %v311
        %v526 = vshrl.u32 %v525, 4
        %v527 = vand.u32 %v525, 15
        %v528 = vsub.s32 0, %v527
        %v529 = vsel %vm523, %v528, %v527
        %vm530 = vcmp.lt.s32.totalorder %v312, 0
        %v531 = vsub.s32 0, %v312
        %v532 = vsel %vm530, %v531, %v312
        %v533 = vshrl.u32 %v532, 4
        %v534 = vand.u32 %v532, 15
        %v535 = vsub.s32 0, %v534
        %v536 = vsel %vm530, %v535, %v534
        %vm537 = vcmp.ne.s32.totalorder %v319, 0
        %vm538 = vcmp.ne.s32.totalorder %v326, 0
        %vm539 = vcmp.ne.s32.totalorder %v333, 0
        %vm540 = vcmp.ne.s32.totalorder %v340, 0
        %vm541 = vcmp.ne.s32.totalorder %v347, 0
        %vm542 = vcmp.ne.s32.totalorder %v354, 0
        %vm543 = vcmp.ne.s32.totalorder %v361, 0
        %vm544 = vcmp.ne.s32.totalorder %v368, 0
        %vm545 = vcmp.ne.s32.totalorder %v375, 0
        %vm546 = vcmp.ne.s32.totalorder %v382, 0
        %vm547 = vcmp.ne.s32.totalorder %v389, 0
        %vm548 = vcmp.ne.s32.totalorder %v396, 0
        %vm549 = vcmp.ne.s32.totalorder %v403, 0
        %vm550 = vcmp.ne.s32.totalorder %v410, 0
        %vm551 = vcmp.ne.s32.totalorder %v417, 0
        %vm552 = vcmp.ne.s32.totalorder %v424, 0
        %vm553 = vcmp.ne.s32.totalorder %v431, 0
        %vm554 = vcmp.ne.s32.totalorder %v438, 0
        %vm555 = vcmp.ne.s32.totalorder %v445, 0
        %vm556 = vcmp.ne.s32.totalorder %v452, 0
        %vm557 = vcmp.ne.s32.totalorder %v459, 0
        %vm558 = vcmp.ne.s32.totalorder %v466, 0
        %vm559 = vcmp.ne.s32.totalorder %v473, 0
        %vm560 = vcmp.ne.s32.totalorder %v480, 0
        %vm561 = vcmp.ne.s32.totalorder %v487, 0
        %vm562 = vcmp.ne.s32.totalorder %v494, 0
        %vm563 = vcmp.ne.s32.totalorder %v501, 0
        %vm564 = vcmp.ne.s32.totalorder %v508, 0
        %vm565 = vcmp.ne.s32.totalorder %v515, 0
        %vm566 = vcmp.ne.s32.totalorder %v522, 0
        %vm567 = vcmp.ne.s32.totalorder %v529, 0
        %vm568 = vcmp.ne.s32.totalorder %v536, 0
        %vm569 = vcmp.lt.s32.totalorder %v319, 0
        %vm570 = vcmp.lt.s32.totalorder %v326, 0
        %vm571 = vcmp.lt.s32.totalorder %v333, 0
        %vm572 = vcmp.lt.s32.totalorder %v340, 0
        %vm573 = vcmp.lt.s32.totalorder %v347, 0
        %vm574 = vcmp.lt.s32.totalorder %v354, 0
        %vm575 = vcmp.lt.s32.totalorder %v361, 0
        %vm576 = vcmp.lt.s32.totalorder %v368, 0
        %vm577 = vcmp.lt.s32.totalorder %v375, 0
        %vm578 = vcmp.lt.s32.totalorder %v382, 0
        %vm579 = vcmp.lt.s32.totalorder %v389, 0
        %vm580 = vcmp.lt.s32.totalorder %v396, 0
        %vm581 = vcmp.lt.s32.totalorder %v403, 0
        %vm582 = vcmp.lt.s32.totalorder %v410, 0
        %vm583 = vcmp.lt.s32.totalorder %v417, 0
        %vm584 = vcmp.lt.s32.totalorder %v424, 0
        %vm585 = vcmp.lt.s32.totalorder %v431, 0
        %vm586 = vcmp.lt.s32.totalorder %v438, 0
        %vm587 = vcmp.lt.s32.totalorder %v445, 0
        %vm588 = vcmp.lt.s32.totalorder %v452, 0
        %vm589 = vcmp.lt.s32.totalorder %v459, 0
        %vm590 = vcmp.lt.s32.totalorder %v466, 0
        %vm591 = vcmp.lt.s32.totalorder %v473, 0
        %vm592 = vcmp.lt.s32.totalorder %v480, 0
        %vm593 = vcmp.lt.s32.totalorder %v487, 0
        %vm594 = vcmp.lt.s32.totalorder %v494, 0
        %vm595 = vcmp.lt.s32.totalorder %v501, 0
        %vm596 = vcmp.lt.s32.totalorder %v508, 0
        %vm597 = vcmp.lt.s32.totalorder %v515, 0
        %vm598 = vcmp.lt.s32.totalorder %v522, 0
        %vm599 = vcmp.lt.s32.totalorder %v529, 0
        %vm600 = vcmp.lt.s32.totalorder %v536, 0
        %vm601 = vmand %vm569, %vm537
        %vm602 = vmand %vm570, %vm538
        %vm603 = vmand %vm571, %vm539
        %vm604 = vmand %vm572, %vm540
        %vm605 = vmand %vm573, %vm541
        %vm606 = vmand %vm574, %vm542
        %vm607 = vmand %vm575, %vm543
        %vm608 = vmand %vm576, %vm544
        %vm609 = vmand %vm577, %vm545
        %vm610 = vmand %vm578, %vm546
        %vm611 = vmand %vm579, %vm547
        %vm612 = vmand %vm580, %vm548
        %vm613 = vmand %vm581, %vm549
        %vm614 = vmand %vm582, %vm550
        %vm615 = vmand %vm583, %vm551
        %vm616 = vmand %vm584, %vm552
        %vm617 = vmand %vm585, %vm553
        %vm618 = vmand %vm586, %vm554
        %vm619 = vmand %vm587, %vm555
        %vm620 = vmand %vm588, %vm556
        %vm621 = vmand %vm589, %vm557
        %vm622 = vmand %vm590, %vm558
        %vm623 = vmand %vm591, %vm559
        %vm624 = vmand %vm592, %vm560
        %vm625 = vmand %vm593, %vm561
        %vm626 = vmand %vm594, %vm562
        %vm627 = vmand %vm595, %vm563
        %vm628 = vmand %vm596, %vm564
        %vm629 = vmand %vm597, %vm565
        %vm630 = vmand %vm598, %vm566
        %vm631 = vmand %vm599, %vm567
        %vm632 = vmand %vm600, %vm568
        %v633 = vadd.s32 %v319, 16
        %v634 = vadd.s32 %v326, 16
        %v635 = vadd.s32 %v333, 16
        %v636 = vadd.s32 %v340, 16
        %v637 = vadd.s32 %v347, 16
        %v638 = vadd.s32 %v354, 16
        %v639 = vadd.s32 %v361, 16
        %v640 = vadd.s32 %v368, 16
        %v641 = vadd.s32 %v375, 16
        %v642 = vadd.s32 %v382, 16
        %v643 = vadd.s32 %v389, 16
        %v644 = vadd.s32 %v396, 16
        %v645 = vadd.s32 %v403, 16
        %v646 = vadd.s32 %v410, 16
        %v647 = vadd.s32 %v417, 16
        %v648 = vadd.s32 %v424, 16
        %v649 = vadd.s32 %v431, 16
        %v650 = vadd.s32 %v438, 16
        %v651 = vadd.s32 %v445, 16
        %v652 = vadd.s32 %v452, 16
        %v653 = vadd.s32 %v459, 16
        %v654 = vadd.s32 %v466, 16
        %v655 = vadd.s32 %v473, 16
        %v656 = vadd.s32 %v480, 16
        %v657 = vadd.s32 %v487, 16
        %v658 = vadd.s32 %v494, 16
        %v659 = vadd.s32 %v501, 16
        %v660 = vadd.s32 %v508, 16
        %v661 = vadd.s32 %v515, 16
        %v662 = vadd.s32 %v522, 16
        %v663 = vadd.s32 %v529, 16
        %v664 = vadd.s32 %v536, 16
        %v665 = vsel %vm601, %v633, %v319
        %v666 = vsel %vm602, %v634, %v326
        %v667 = vsel %vm603, %v635, %v333
        %v668 = vsel %vm604, %v636, %v340
        %v669 = vsel %vm605, %v637, %v347
        %v670 = vsel %vm606, %v638, %v354
        %v671 = vsel %vm607, %v639, %v361
        %v672 = vsel %vm608, %v640, %v368
        %v673 = vsel %vm609, %v641, %v375
        %v674 = vsel %vm610, %v642, %v382
        %v675 = vsel %vm611, %v643, %v389
        %v676 = vsel %vm612, %v644, %v396
        %v677 = vsel %vm613, %v645, %v403
        %v678 = vsel %vm614, %v646, %v410
        %v679 = vsel %vm615, %v647, %v417
        %v680 = vsel %vm616, %v648, %v424
        %v681 = vsel %vm617, %v649, %v431
        %v682 = vsel %vm618, %v650, %v438
        %v683 = vsel %vm619, %v651, %v445
        %v684 = vsel %vm620, %v652, %v452
        %v685 = vsel %vm621, %v653, %v459
        %v686 = vsel %vm622, %v654, %v466
        %v687 = vsel %vm623, %v655, %v473
        %v688 = vsel %vm624, %v656, %v480
        %v689 = vsel %vm625, %v657, %v487
        %v690 = vsel %vm626, %v658, %v494
        %v691 = vsel %vm627, %v659, %v501
        %v692 = vsel %vm628, %v660, %v508
        %v693 = vsel %vm629, %v661, %v515
        %v694 = vsel %vm630, %v662, %v522
        %v695 = vsel %vm631, %v663, %v529
        %v696 = vsel %vm632, %v664, %v536
        %vm697 = vcmp.ne.s32.totalorder %v665, 0
        %vm698 = vcmp.ne.s32.totalorder %v666, 0
        %vm699 = vcmp.ne.s32.totalorder %v667, 0
        %vm700 = vcmp.ne.s32.totalorder %v668, 0
        %vm701 = vcmp.ne.s32.totalorder %v669, 0
        %vm702 = vcmp.ne.s32.totalorder %v670, 0
        %vm703 = vcmp.ne.s32.totalorder %v671, 0
        %vm704 = vcmp.ne.s32.totalorder %v672, 0
        %vm705 = vcmp.ne.s32.totalorder %v673, 0
        %vm706 = vcmp.ne.s32.totalorder %v674, 0
        %vm707 = vcmp.ne.s32.totalorder %v675, 0
        %vm708 = vcmp.ne.s32.totalorder %v676, 0
        %vm709 = vcmp.ne.s32.totalorder %v677, 0
        %vm710 = vcmp.ne.s32.totalorder %v678, 0
        %vm711 = vcmp.ne.s32.totalorder %v679, 0
        %vm712 = vcmp.ne.s32.totalorder %v680, 0
        %vm713 = vcmp.ne.s32.totalorder %v681, 0
        %vm714 = vcmp.ne.s32.totalorder %v682, 0
        %vm715 = vcmp.ne.s32.totalorder %v683, 0
        %vm716 = vcmp.ne.s32.totalorder %v684, 0
        %vm717 = vcmp.ne.s32.totalorder %v685, 0
        %vm718 = vcmp.ne.s32.totalorder %v686, 0
        %vm719 = vcmp.ne.s32.totalorder %v687, 0
        %vm720 = vcmp.ne.s32.totalorder %v688, 0
        %vm721 = vcmp.ne.s32.totalorder %v689, 0
        %vm722 = vcmp.ne.s32.totalorder %v690, 0
        %vm723 = vcmp.ne.s32.totalorder %v691, 0
        %vm724 = vcmp.ne.s32.totalorder %v692, 0
        %vm725 = vcmp.ne.s32.totalorder %v693, 0
        %vm726 = vcmp.ne.s32.totalorder %v694, 0
        %vm727 = vcmp.ne.s32.totalorder %v695, 0
        %vm728 = vcmp.ne.s32.totalorder %v696, 0
        %vm729 = vcmp.ne.s32.totalorder %v665, 15
        %vm730 = vcmp.ne.s32.totalorder %v666, 15
        %vm731 = vcmp.ne.s32.totalorder %v667, 15
        %vm732 = vcmp.ne.s32.totalorder %v668, 15
        %vm733 = vcmp.ne.s32.totalorder %v669, 15
        %vm734 = vcmp.ne.s32.totalorder %v670, 15
        %vm735 = vcmp.ne.s32.totalorder %v671, 15
        %vm736 = vcmp.ne.s32.totalorder %v672, 15
        %vm737 = vcmp.ne.s32.totalorder %v673, 15
        %vm738 = vcmp.ne.s32.totalorder %v674, 15
        %vm739 = vcmp.ne.s32.totalorder %v675, 15
        %vm740 = vcmp.ne.s32.totalorder %v676, 15
        %vm741 = vcmp.ne.s32.totalorder %v677, 15
        %vm742 = vcmp.ne.s32.totalorder %v678, 15
        %vm743 = vcmp.ne.s32.totalorder %v679, 15
        %vm744 = vcmp.ne.s32.totalorder %v680, 15
        %vm745 = vcmp.ne.s32.totalorder %v681, 15
        %vm746 = vcmp.ne.s32.totalorder %v682, 15
        %vm747 = vcmp.ne.s32.totalorder %v683, 15
        %vm748 = vcmp.ne.s32.totalorder %v684, 15
        %vm749 = vcmp.ne.s32.totalorder %v685, 15
        %vm750 = vcmp.ne.s32.totalorder %v686, 15
        %vm751 = vcmp.ne.s32.totalorder %v687, 15
        %vm752 = vcmp.ne.s32.totalorder %v688, 15
        %vm753 = vcmp.ne.s32.totalorder %v689, 15
        %vm754 = vcmp.ne.s32.totalorder %v690, 15
        %vm755 = vcmp.ne.s32.totalorder %v691, 15
        %vm756 = vcmp.ne.s32.totalorder %v692, 15
        %vm757 = vcmp.ne.s32.totalorder %v693, 15
        %vm758 = vcmp.ne.s32.totalorder %v694, 15
        %vm759 = vcmp.ne.s32.totalorder %v695, 15
        %vm760 = vcmp.ne.s32.totalorder %v696, 15
        %vm761 = vcmask 60416
        %762 = vst.msk [vmem:[#allocation2] sm:$0xf] %vm761, 0
        %763 = vst.msk [vmem:[#allocation2 + $0x4] sm:$0xf] %vm761, 0
        %vm764 = vcmask 57344
        %vm765 = vsmask.f32 256
        %vm766 = vmand %vm764, %vm765
        %v767 = vld [vmem:[#allocation2 + $0x8] sm:$0x1]
        %v768 = vsel %vm766, 0, %v767
        %769 = vst [vmem:[#allocation2 + $0x8] sm:$0x1] %v768
        %vm770 = vcmask 60416
        %vm771 = vsmask.f32 7938
        %vm772 = vmand %vm770, %vm771
        %v773 = vld [vmem:[#allocation2 + $0x88] sm:$0xf]
        %v774 = vsel %vm772, 0, %v773
        %775 = vst [vmem:[#allocation2 + $0x88] sm:$0xf] %v774
        %776 = vst.msk [vmem:[#allocation2 + $0x8c] sm:$0xf] %vm761, 0
        %vm777 = vcmask 57344
        %778 = vst.msk [vmem:[#allocation2 + $0x90] sm:$0x1] %vm777, 0
        %v779 = vld [vmem:[%s276] sm:$0xf]
        %v780 = vld [vmem:[%s276 + $0x4] sm:$0xf]
        %v781 = vld [vmem:[%s276 + $0x8] sm:$0xf]
        %v782 = vld [vmem:[%s276 + $0xc] sm:$0xf]
        %v783 = vld [vmem:[%s276 + $0x10] sm:$0xf]
        %v784 = vld [vmem:[%s276 + $0x14] sm:$0xf]
        %v785 = vld [vmem:[%s276 + $0x18] sm:$0xf]
        %v786 = vld [vmem:[%s276 + $0x1c] sm:$0xf]
        %v787 = vld [vmem:[%s276 + $0x20] sm:$0xf]
        %v788 = vld [vmem:[%s276 + $0x24] sm:$0xf]
        %v789 = vld [vmem:[%s276 + $0x28] sm:$0xf]
        %v790 = vld [vmem:[%s276 + $0x2c] sm:$0xf]
        %v791 = vld [vmem:[%s276 + $0x30] sm:$0xf]
        %v792 = vld [vmem:[%s276 + $0x34] sm:$0xf]
        %v793 = vld [vmem:[%s276 + $0x38] sm:$0xf]
        %v794 = vld [vmem:[%s276 + $0x3c] sm:$0xf]
        %v795 = vld [vmem:[%s276 + $0x40] sm:$0xf]
        %v796 = vld [vmem:[%s276 + $0x44] sm:$0xf]
        %v797 = vld [vmem:[%s276 + $0x48] sm:$0xf]
        %v798 = vld [vmem:[%s276 + $0x4c] sm:$0xf]
        %v799 = vld [vmem:[%s276 + $0x50] sm:$0xf]
        %v800 = vld [vmem:[%s276 + $0x54] sm:$0xf]
        %v801 = vld [vmem:[%s276 + $0x58] sm:$0xf]
        %v802 = vld [vmem:[%s276 + $0x5c] sm:$0xf]
        %v803 = vld [vmem:[%s276 + $0x60] sm:$0xf]
        %v804 = vld [vmem:[%s276 + $0x64] sm:$0xf]
        %v805 = vld [vmem:[%s276 + $0x68] sm:$0xf]
        %v806 = vld [vmem:[%s276 + $0x6c] sm:$0xf]
        %v807 = vld [vmem:[%s276 + $0x70] sm:$0xf]
        %v808 = vld [vmem:[%s276 + $0x74] sm:$0xf]
        %v809 = vld [vmem:[%s276 + $0x78] sm:$0xf]
        %v810 = vld [vmem:[%s276 + $0x7c] sm:$0xf]
        %v811 = vld [vmem:[%s276 + $0x80] sm:$0xf]
        %v812 = vld [vmem:[%s276 + $0x84] sm:$0xf]
        %v813 = vld [vmem:[%s276 + $0x88] sm:$0xf]
        %v814 = vld [vmem:[%s276 + $0x8c] sm:$0xf]
        %v815 = vld [vmem:[%s276 + $0x90] sm:$0x1]
        %v816 = vunpack.c.l.bf16 %v779
        %v817 = vunpack.c.l.bf16 %v780
        %v818 = vunpack.c.l.bf16 %v781
        %v819 = vunpack.c.l.bf16 %v782
        %v820 = vunpack.c.l.bf16 %v783
        %v821 = vunpack.c.l.bf16 %v784
        %v822 = vunpack.c.l.bf16 %v785
        %v823 = vunpack.c.l.bf16 %v786
        %v824 = vunpack.c.l.bf16 %v787
        %v825 = vunpack.c.l.bf16 %v788
        %v826 = vunpack.c.l.bf16 %v789
        %v827 = vunpack.c.l.bf16 %v790
        %v828 = vunpack.c.l.bf16 %v791
        %v829 = vunpack.c.l.bf16 %v792
        %v830 = vunpack.c.l.bf16 %v793
        %v831 = vunpack.c.l.bf16 %v794
        %v832 = vunpack.c.l.bf16 %v795
        %v833 = vunpack.c.l.bf16 %v796
        %v834 = vunpack.c.l.bf16 %v797
        %v835 = vunpack.c.l.bf16 %v798
        %v836 = vunpack.c.l.bf16 %v799
        %v837 = vunpack.c.l.bf16 %v800
        %v838 = vunpack.c.l.bf16 %v801
        %v839 = vunpack.c.l.bf16 %v802
        %v840 = vunpack.c.l.bf16 %v803
        %v841 = vunpack.c.l.bf16 %v804
        %v842 = vunpack.c.l.bf16 %v805
        %v843 = vunpack.c.l.bf16 %v806
        %v844 = vunpack.c.l.bf16 %v807
        %v845 = vunpack.c.l.bf16 %v808
        %v846 = vunpack.c.l.bf16 %v809
        %v847 = vunpack.c.l.bf16 %v810
        %v848 = vunpack.c.l.bf16 %v811
        %v849 = vunpack.c.l.bf16 %v812
        %v850 = vunpack.c.l.bf16 %v813
        %v851 = vunpack.c.l.bf16 %v814
        %v852 = vunpack.c.l.bf16 %v815
        %v853 = vmax.f32 %v816, 0.0
        %v854 = vmax.f32 %v817, 0.0
        %v855 = vmax.f32 %v818, 0.0
        %v856 = vmax.f32 %v819, 0.0
        %v857 = vmax.f32 %v820, 0.0
        %v858 = vmax.f32 %v821, 0.0
        %v859 = vmax.f32 %v822, 0.0
        %v860 = vmax.f32 %v823, 0.0
        %v861 = vmax.f32 %v824, 0.0
        %v862 = vmax.f32 %v825, 0.0
        %v863 = vmax.f32 %v826, 0.0
        %v864 = vmax.f32 %v827, 0.0
        %v865 = vmax.f32 %v828, 0.0
        %v866 = vmax.f32 %v829, 0.0
        %v867 = vmax.f32 %v830, 0.0
        %v868 = vmax.f32 %v831, 0.0
        %v869 = vmax.f32 %v832, 0.0
        %v870 = vmax.f32 %v833, 0.0
        %v871 = vmax.f32 %v834, 0.0
        %v872 = vmax.f32 %v835, 0.0
        %v873 = vmax.f32 %v836, 0.0
        %v874 = vmax.f32 %v837, 0.0
        %v875 = vmax.f32 %v838, 0.0
        %v876 = vmax.f32 %v839, 0.0
        %v877 = vmax.f32 %v840, 0.0
        %v878 = vmax.f32 %v841, 0.0
        %v879 = vmax.f32 %v842, 0.0
        %v880 = vmax.f32 %v843, 0.0
        %v881 = vmax.f32 %v844, 0.0
        %v882 = vmax.f32 %v845, 0.0
        %v883 = vmax.f32 %v846, 0.0
        %v884 = vmax.f32 %v847, 0.0
        %v885 = vmax.f32 %v848, 0.0
        %v886 = vmax.f32 %v849, 0.0
        %v887 = vmax.f32 %v850, 0.0
        %v888 = vmax.f32 %v851, 0.0
        %v889 = vmax.f32 %v852, 0.0
        %v890 = vpack.c.bf16 %v853, %v853
        %v891 = vpack.c.bf16 %v854, %v854
        %v892 = vpack.c.bf16 %v855, %v855
        %v893 = vpack.c.bf16 %v856, %v856
        %v894 = vpack.c.bf16 %v857, %v857
        %v895 = vpack.c.bf16 %v858, %v858
        %v896 = vpack.c.bf16 %v859, %v859
        %v897 = vpack.c.bf16 %v860, %v860
        %v898 = vpack.c.bf16 %v861, %v861
        %v899 = vpack.c.bf16 %v862, %v862
        %v900 = vpack.c.bf16 %v863, %v863
        %v901 = vpack.c.bf16 %v864, %v864
        %v902 = vpack.c.bf16 %v865, %v865
        %v903 = vpack.c.bf16 %v866, %v866
        %v904 = vpack.c.bf16 %v867, %v867
        %v905 = vpack.c.bf16 %v868, %v868
        %v906 = vpack.c.bf16 %v869, %v869
        %v907 = vpack.c.bf16 %v870, %v870
        %v908 = vpack.c.bf16 %v871, %v871
        %v909 = vpack.c.bf16 %v872, %v872
        %v910 = vpack.c.bf16 %v873, %v873
        %v911 = vpack.c.bf16 %v874, %v874
        %v912 = vpack.c.bf16 %v875, %v875
        %v913 = vpack.c.bf16 %v876, %v876
        %v914 = vpack.c.bf16 %v877, %v877
        %v915 = vpack.c.bf16 %v878, %v878
        %v916 = vpack.c.bf16 %v879, %v879
        %v917 = vpack.c.bf16 %v880, %v880
        %v918 = vpack.c.bf16 %v881, %v881
        %v919 = vpack.c.bf16 %v882, %v882
        %v920 = vpack.c.bf16 %v883, %v883
        %v921 = vpack.c.bf16 %v884, %v884
        %v922 = vpack.c.bf16 %v885, %v885
        %v923 = vpack.c.bf16 %v886, %v886
        %v924 = vpack.c.bf16 %v887, %v887
        %v925 = vpack.c.bf16 %v888, %v888
        %v926 = vpack.c.bf16 %v889, %v889
        %v927 = vsel %vm697, 1, 0
        %v928 = vsel %vm698, 1, 0
        %v929 = vsel %vm699, 1, 0
        %v930 = vsel %vm700, 1, 0
        %v931 = vsel %vm701, 1, 0
        %v932 = vsel %vm702, 1, 0
        %v933 = vsel %vm703, 1, 0
        %v934 = vsel %vm704, 1, 0
        %v935 = vsel %vm705, 1, 0
        %v936 = vsel %vm706, 1, 0
        %v937 = vsel %vm707, 1, 0
        %v938 = vsel %vm708, 1, 0
        %v939 = vsel %vm709, 1, 0
        %v940 = vsel %vm710, 1, 0
        %v941 = vsel %vm711, 1, 0
        %v942 = vsel %vm712, 1, 0
        %v943 = vsel %vm713, 1, 0
        %v944 = vsel %vm714, 1, 0
        %v945 = vsel %vm715, 1, 0
        %v946 = vsel %vm716, 1, 0
        %v947 = vsel %vm717, 1, 0
        %v948 = vsel %vm718, 1, 0
        %v949 = vsel %vm719, 1, 0
        %v950 = vsel %vm720, 1, 0
        %v951 = vsel %vm721, 1, 0
        %v952 = vsel %vm722, 1, 0
        %v953 = vsel %vm723, 1, 0
        %v954 = vsel %vm724, 1, 0
        %v955 = vsel %vm725, 1, 0
        %v956 = vsel %vm726, 1, 0
        %v957 = vsel %vm727, 1, 0
        %v958 = vsel %vm728, 1, 0
        %vm959 = vcmp.eq.s32.totalorder %v927, 1
        %vm960 = vcmp.eq.s32.totalorder %v928, 1
        %vm961 = vcmp.eq.s32.totalorder %v929, 1
        %vm962 = vcmp.eq.s32.totalorder %v930, 1
        %vm963 = vcmp.eq.s32.totalorder %v931, 1
        %vm964 = vcmp.eq.s32.totalorder %v932, 1
        %vm965 = vcmp.eq.s32.totalorder %v933, 1
        %vm966 = vcmp.eq.s32.totalorder %v934, 1
        %vm967 = vcmp.eq.s32.totalorder %v935, 1
        %vm968 = vcmp.eq.s32.totalorder %v936, 1
        %vm969 = vcmp.eq.s32.totalorder %v937, 1
        %vm970 = vcmp.eq.s32.totalorder %v938, 1
        %vm971 = vcmp.eq.s32.totalorder %v939, 1
        %vm972 = vcmp.eq.s32.totalorder %v940, 1
        %vm973 = vcmp.eq.s32.totalorder %v941, 1
        %vm974 = vcmp.eq.s32.totalorder %v942, 1
        %vm975 = vcmp.eq.s32.totalorder %v943, 1
        %vm976 = vcmp.eq.s32.totalorder %v944, 1
        %vm977 = vcmp.eq.s32.totalorder %v945, 1
        %vm978 = vcmp.eq.s32.totalorder %v946, 1
        %vm979 = vcmp.eq.s32.totalorder %v947, 1
        %vm980 = vcmp.eq.s32.totalorder %v948, 1
        %vm981 = vcmp.eq.s32.totalorder %v949, 1
        %vm982 = vcmp.eq.s32.totalorder %v950, 1
        %vm983 = vcmp.eq.s32.totalorder %v951, 1
        %vm984 = vcmp.eq.s32.totalorder %v952, 1
        %vm985 = vcmp.eq.s32.totalorder %v953, 1
        %vm986 = vcmp.eq.s32.totalorder %v954, 1
        %vm987 = vcmp.eq.s32.totalorder %v955, 1
        %vm988 = vcmp.eq.s32.totalorder %v956, 1
        %vm989 = vcmp.eq.s32.totalorder %v957, 1
        %vm990 = vcmp.eq.s32.totalorder %v958, 1
        %vm991 = vmpackc.low %vm959, %vm959
        %vm992 = vmpackc.low %vm960, %vm960
        %vm993 = vmpackc.low %vm961, %vm961
        %vm994 = vmpackc.low %vm962, %vm962
        %vm995 = vmpackc.low %vm963, %vm963
        %vm996 = vmpackc.low %vm964, %vm964
        %vm997 = vmpackc.low %vm965, %vm965
        %vm998 = vmpackc.low %vm966, %vm966
        %vm999 = vmpackc.low %vm967, %vm967
        %vm1000 = vmpackc.low %vm968, %vm968
        %vm1001 = vmpackc.low %vm969, %vm969
        %vm1002 = vmpackc.low %vm970, %vm970
        %vm1003 = vmpackc.low %vm971, %vm971
        %vm1004 = vmpackc.low %vm972, %vm972
        %vm1005 = vmpackc.low %vm973, %vm973
        %vm1006 = vmpackc.low %vm974, %vm974
        %vm1007 = vmpackc.low %vm975, %vm975
        %vm1008 = vmpackc.low %vm976, %vm976
        %vm1009 = vmpackc.low %vm977, %vm977
        %vm1010 = vmpackc.low %vm978, %vm978
        %vm1011 = vmpackc.low %vm979, %vm979
        %vm1012 = vmpackc.low %vm980, %vm980
        %vm1013 = vmpackc.low %vm981, %vm981
        %vm1014 = vmpackc.low %vm982, %vm982
        %vm1015 = vmpackc.low %vm983, %vm983
        %vm1016 = vmpackc.low %vm984, %vm984
        %vm1017 = vmpackc.low %vm985, %vm985
        %vm1018 = vmpackc.low %vm986, %vm986
        %vm1019 = vmpackc.low %vm987, %vm987
        %vm1020 = vmpackc.low %vm988, %vm988
        %vm1021 = vmpackc.low %vm989, %vm989
        %vm1022 = vmpackc.low %vm990, %vm990
        %v1023 = vsel %vm991, %v890, 0
        %v1024 = vsel %vm992, %v891, 0
        %v1025 = vsel %vm993, %v892, 0
        %v1026 = vsel %vm994, %v893, 0
        %v1027 = vsel %vm995, %v894, 0
        %v1028 = vsel %vm996, %v895, 0
        %v1029 = vsel %vm997, %v896, 0
        %v1030 = vsel %vm998, %v897, 0
        %v1031 = vsel %vm999, %v898, 0
        %v1032 = vsel %vm1000, %v899, 0
        %v1033 = vsel %vm1001, %v900, 0
        %v1034 = vsel %vm1002, %v901, 0
        %v1035 = vsel %vm1003, %v902, 0
        %v1036 = vsel %vm1004, %v903, 0
        %v1037 = vsel %vm1005, %v904, 0
        %v1038 = vsel %vm1006, %v905, 0
        %v1039 = vsel %vm1007, %v906, 0
        %v1040 = vsel %vm1008, %v907, 0
        %v1041 = vsel %vm1009, %v908, 0
        %v1042 = vsel %vm1010, %v909, 0
        %v1043 = vsel %vm1011, %v910, 0
        %v1044 = vsel %vm1012, %v911, 0
        %v1045 = vsel %vm1013, %v912, 0
        %v1046 = vsel %vm1014, %v913, 0
        %v1047 = vsel %vm1015, %v914, 0
        %v1048 = vsel %vm1016, %v915, 0
        %v1049 = vsel %vm1017, %v916, 0
        %v1050 = vsel %vm1018, %v917, 0
        %v1051 = vsel %vm1019, %v918, 0
        %v1052 = vsel %vm1020, %v919, 0
        %v1053 = vsel %vm1021, %v920, 0
        %v1054 = vsel %vm1022, %v921, 0
        %v1055 = vsel %vm729, 1, 0
        %v1056 = vsel %vm730, 1, 0
        %v1057 = vsel %vm731, 1, 0
        %v1058 = vsel %vm732, 1, 0
        %v1059 = vsel %vm733, 1, 0
        %v1060 = vsel %vm734, 1, 0
        %v1061 = vsel %vm735, 1, 0
        %v1062 = vsel %vm736, 1, 0
        %v1063 = vsel %vm737, 1, 0
        %v1064 = vsel %vm738, 1, 0
        %v1065 = vsel %vm739, 1, 0
        %v1066 = vsel %vm740, 1, 0
        %v1067 = vsel %vm741, 1, 0
        %v1068 = vsel %vm742, 1, 0
        %v1069 = vsel %vm743, 1, 0
        %v1070 = vsel %vm744, 1, 0
        %v1071 = vsel %vm745, 1, 0
        %v1072 = vsel %vm746, 1, 0
        %v1073 = vsel %vm747, 1, 0
        %v1074 = vsel %vm748, 1, 0
        %v1075 = vsel %vm749, 1, 0
        %v1076 = vsel %vm750, 1, 0
        %v1077 = vsel %vm751, 1, 0
        %v1078 = vsel %vm752, 1, 0
        %v1079 = vsel %vm753, 1, 0
        %v1080 = vsel %vm754, 1, 0
        %v1081 = vsel %vm755, 1, 0
        %v1082 = vsel %vm756, 1, 0
        %v1083 = vsel %vm757, 1, 0
        %v1084 = vsel %vm758, 1, 0
        %v1085 = vsel %vm759, 1, 0
        %v1086 = vsel %vm760, 1, 0
        %vm1087 = vcmp.eq.s32.totalorder %v1055, 1
        %vm1088 = vcmp.eq.s32.totalorder %v1056, 1
        %vm1089 = vcmp.eq.s32.totalorder %v1057, 1
        %vm1090 = vcmp.eq.s32.totalorder %v1058, 1
        %vm1091 = vcmp.eq.s32.totalorder %v1059, 1
        %vm1092 = vcmp.eq.s32.totalorder %v1060, 1
        %vm1093 = vcmp.eq.s32.totalorder %v1061, 1
        %vm1094 = vcmp.eq.s32.totalorder %v1062, 1
        %vm1095 = vcmp.eq.s32.totalorder %v1063, 1
        %vm1096 = vcmp.eq.s32.totalorder %v1064, 1
        %vm1097 = vcmp.eq.s32.totalorder %v1065, 1
        %vm1098 = vcmp.eq.s32.totalorder %v1066, 1
        %vm1099 = vcmp.eq.s32.totalorder %v1067, 1
        %vm1100 = vcmp.eq.s32.totalorder %v1068, 1
        %vm1101 = vcmp.eq.s32.totalorder %v1069, 1
        %vm1102 = vcmp.eq.s32.totalorder %v1070, 1
        %vm1103 = vcmp.eq.s32.totalorder %v1071, 1
        %vm1104 = vcmp.eq.s32.totalorder %v1072, 1
        %vm1105 = vcmp.eq.s32.totalorder %v1073, 1
        %vm1106 = vcmp.eq.s32.totalorder %v1074, 1
        %vm1107 = vcmp.eq.s32.totalorder %v1075, 1
        %vm1108 = vcmp.eq.s32.totalorder %v1076, 1
        %vm1109 = vcmp.eq.s32.totalorder %v1077, 1
        %vm1110 = vcmp.eq.s32.totalorder %v1078, 1
        %vm1111 = vcmp.eq.s32.totalorder %v1079, 1
        %vm1112 = vcmp.eq.s32.totalorder %v1080, 1
        %vm1113 = vcmp.eq.s32.totalorder %v1081, 1
        %vm1114 = vcmp.eq.s32.totalorder %v1082, 1
        %vm1115 = vcmp.eq.s32.totalorder %v1083, 1
        %vm1116 = vcmp.eq.s32.totalorder %v1084, 1
        %vm1117 = vcmp.eq.s32.totalorder %v1085, 1
        %vm1118 = vcmp.eq.s32.totalorder %v1086, 1
        %vm1119 = vmpackc.low %vm1087, %vm1087
        %vm1120 = vmpackc.low %vm1088, %vm1088
        %vm1121 = vmpackc.low %vm1089, %vm1089
        %vm1122 = vmpackc.low %vm1090, %vm1090
        %vm1123 = vmpackc.low %vm1091, %vm1091
        %vm1124 = vmpackc.low %vm1092, %vm1092
        %vm1125 = vmpackc.low %vm1093, %vm1093
        %vm1126 = vmpackc.low %vm1094, %vm1094
        %vm1127 = vmpackc.low %vm1095, %vm1095
        %vm1128 = vmpackc.low %vm1096, %vm1096
        %vm1129 = vmpackc.low %vm1097, %vm1097
        %vm1130 = vmpackc.low %vm1098, %vm1098
        %vm1131 = vmpackc.low %vm1099, %vm1099
        %vm1132 = vmpackc.low %vm1100, %vm1100
        %vm1133 = vmpackc.low %vm1101, %vm1101
        %vm1134 = vmpackc.low %vm1102, %vm1102
        %vm1135 = vmpackc.low %vm1103, %vm1103
        %vm1136 = vmpackc.low %vm1104, %vm1104
        %vm1137 = vmpackc.low %vm1105, %vm1105
        %vm1138 = vmpackc.low %vm1106, %vm1106
        %vm1139 = vmpackc.low %vm1107, %vm1107
        %vm1140 = vmpackc.low %vm1108, %vm1108
        %vm1141 = vmpackc.low %vm1109, %vm1109
        %vm1142 = vmpackc.low %vm1110, %vm1110
        %vm1143 = vmpackc.low %vm1111, %vm1111
        %vm1144 = vmpackc.low %vm1112, %vm1112
        %vm1145 = vmpackc.low %vm1113, %vm1113
        %vm1146 = vmpackc.low %vm1114, %vm1114
        %vm1147 = vmpackc.low %vm1115, %vm1115
        %vm1148 = vmpackc.low %vm1116, %vm1116
        %vm1149 = vmpackc.low %vm1117, %vm1117
        %vm1150 = vmpackc.low %vm1118, %vm1118
        %v1151 = vsel %vm1119, 65537, 0
        %v1152 = vsel %vm1120, 65537, 0
        %v1153 = vsel %vm1121, 65537, 0
        %v1154 = vsel %vm1122, 65537, 0
        %v1155 = vsel %vm1123, 65537, 0
        %v1156 = vsel %vm1124, 65537, 0
        %v1157 = vsel %vm1125, 65537, 0
        %v1158 = vsel %vm1126, 65537, 0
        %v1159 = vsel %vm1127, 65537, 0
        %v1160 = vsel %vm1128, 65537, 0
        %v1161 = vsel %vm1129, 65537, 0
        %v1162 = vsel %vm1130, 65537, 0
        %v1163 = vsel %vm1131, 65537, 0
        %v1164 = vsel %vm1132, 65537, 0
        %v1165 = vsel %vm1133, 65537, 0
        %v1166 = vsel %vm1134, 65537, 0
        %v1167 = vsel %vm1135, 65537, 0
        %v1168 = vsel %vm1136, 65537, 0
        %v1169 = vsel %vm1137, 65537, 0
        %v1170 = vsel %vm1138, 65537, 0
        %v1171 = vsel %vm1139, 65537, 0
        %v1172 = vsel %vm1140, 65537, 0
        %v1173 = vsel %vm1141, 65537, 0
        %v1174 = vsel %vm1142, 65537, 0
        %v1175 = vsel %vm1143, 65537, 0
        %v1176 = vsel %vm1144, 65537, 0
        %v1177 = vsel %vm1145, 65537, 0
        %v1178 = vsel %vm1146, 65537, 0
        %v1179 = vsel %vm1147, 65537, 0
        %v1180 = vsel %vm1148, 65537, 0
        %v1181 = vsel %vm1149, 65537, 0
        %v1182 = vsel %vm1150, 65537, 0
        %vm1183 = vcmask 1040384
        %vm1184 = vcmask 1044484
        %vm1185 = vmor %vm1183, %vm1184
        %v1186 = vrot.slane %v1151, 7
        %v1187 = vrot.slane %v1186, 4
        %v1188 = vrot.slane %v1152, 7
        %v1189 = vsel %vm1185, %v1187, %v1188
        %v1190 = vrot.slane %v1188, 4
        %v1191 = vrot.slane %v1153, 7
        %v1192 = vsel %vm1185, %v1190, %v1191
        %v1193 = vrot.slane %v1191, 4
        %v1194 = vrot.slane %v1154, 7
        %v1195 = vsel %vm1185, %v1193, %v1194
        %v1196 = vrot.slane %v1194, 4
        %v1197 = vrot.slane %v1155, 7
        %v1198 = vsel %vm1185, %v1196, %v1197
        %v1199 = vrot.slane %v1197, 4
        %v1200 = vrot.slane %v1156, 7
        %v1201 = vsel %vm1185, %v1199, %v1200
        %v1202 = vrot.slane %v1200, 4
        %v1203 = vrot.slane %v1157, 7
        %v1204 = vsel %vm1185, %v1202, %v1203
        %v1205 = vrot.slane %v1203, 4
        %v1206 = vrot.slane %v1158, 7
        %v1207 = vsel %vm1185, %v1205, %v1206
        %v1208 = vrot.slane %v1206, 4
        %v1209 = vrot.slane %v1159, 7
        %v1210 = vsel %vm1185, %v1208, %v1209
        %v1211 = vrot.slane %v1209, 4
        %v1212 = vrot.slane %v1160, 7
        %v1213 = vsel %vm1185, %v1211, %v1212
        %v1214 = vrot.slane %v1212, 4
        %v1215 = vrot.slane %v1161, 7
        %v1216 = vsel %vm1185, %v1214, %v1215
        %v1217 = vrot.slane %v1215, 4
        %v1218 = vrot.slane %v1162, 7
        %v1219 = vsel %vm1185, %v1217, %v1218
        %v1220 = vrot.slane %v1218, 4
        %v1221 = vrot.slane %v1163, 7
        %v1222 = vsel %vm1185, %v1220, %v1221
        %v1223 = vrot.slane %v1221, 4
        %v1224 = vrot.slane %v1164, 7
        %v1225 = vsel %vm1185, %v1223, %v1224
        %v1226 = vrot.slane %v1224, 4
        %v1227 = vrot.slane %v1165, 7
        %v1228 = vsel %vm1185, %v1226, %v1227
        %v1229 = vrot.slane %v1227, 4
        %v1230 = vrot.slane %v1166, 7
        %v1231 = vsel %vm1185, %v1229, %v1230
        %v1232 = vrot.slane %v1230, 4
        %v1233 = vrot.slane %v1167, 7
        %v1234 = vsel %vm1185, %v1232, %v1233
        %v1235 = vrot.slane %v1233, 4
        %v1236 = vrot.slane %v1168, 7
        %v1237 = vsel %vm1185, %v1235, %v1236
        %v1238 = vrot.slane %v1236, 4
        %v1239 = vrot.slane %v1169, 7
        %v1240 = vsel %vm1185, %v1238, %v1239
        %v1241 = vrot.slane %v1239, 4
        %v1242 = vrot.slane %v1170, 7
        %v1243 = vsel %vm1185, %v1241, %v1242
        %v1244 = vrot.slane %v1242, 4
        %v1245 = vrot.slane %v1171, 7
        %v1246 = vsel %vm1185, %v1244, %v1245
        %v1247 = vrot.slane %v1245, 4
        %v1248 = vrot.slane %v1172, 7
        %v1249 = vsel %vm1185, %v1247, %v1248
        %v1250 = vrot.slane %v1248, 4
        %v1251 = vrot.slane %v1173, 7
        %v1252 = vsel %vm1185, %v1250, %v1251
        %v1253 = vrot.slane %v1251, 4
        %v1254 = vrot.slane %v1174, 7
        %v1255 = vsel %vm1185, %v1253, %v1254
        %v1256 = vrot.slane %v1254, 4
        %v1257 = vrot.slane %v1175, 7
        %v1258 = vsel %vm1185, %v1256, %v1257
        %v1259 = vrot.slane %v1257, 4
        %v1260 = vrot.slane %v1176, 7
        %v1261 = vsel %vm1185, %v1259, %v1260
        %v1262 = vrot.slane %v1260, 4
        %v1263 = vrot.slane %v1177, 7
        %v1264 = vsel %vm1185, %v1262, %v1263
        %v1265 = vrot.slane %v1263, 4
        %v1266 = vrot.slane %v1178, 7
        %v1267 = vsel %vm1185, %v1265, %v1266
        %v1268 = vrot.slane %v1266, 4
        %v1269 = vrot.slane %v1179, 7
        %v1270 = vsel %vm1185, %v1268, %v1269
        %v1271 = vrot.slane %v1269, 4
        %v1272 = vrot.slane %v1180, 7
        %v1273 = vsel %vm1185, %v1271, %v1272
        %v1274 = vrot.slane %v1272, 4
        %v1275 = vrot.slane %v1181, 7
        %v1276 = vsel %vm1185, %v1274, %v1275
        %v1277 = vrot.slane %v1275, 4
        %v1278 = vrot.slane %v1182, 7
        %v1279 = vsel %vm1185, %v1277, %v1278
        %v1280 = vrot.slane %v1278, 4
        %v1281 = vunpack.c.l.b16 %v1186
        %v1282 = vunpack.c.h.b16 %v1186
        %v1283 = vunpack.c.l.b16 0
        %v1284 = vunpack.c.h.b16 0
        %vm1285 = vcmp.ne.s32.totalorder %v1281, %v1283
        %vm1286 = vcmp.ne.s32.totalorder %v1282, %v1284
        %vm1287 = vmpackc.low %vm1286, %vm1285
        %v1288 = vunpack.c.l.b16 %v1189
        %v1289 = vunpack.c.h.b16 %v1189
        %v1290 = vunpack.c.l.b16 0
        %v1291 = vunpack.c.h.b16 0
        %vm1292 = vcmp.ne.s32.totalorder %v1288, %v1290
        %vm1293 = vcmp.ne.s32.totalorder %v1289, %v1291
        %vm1294 = vmpackc.low %vm1293, %vm1292
        %v1295 = vunpack.c.l.b16 %v1192
        %v1296 = vunpack.c.h.b16 %v1192
        %v1297 = vunpack.c.l.b16 0
        %v1298 = vunpack.c.h.b16 0
        %vm1299 = vcmp.ne.s32.totalorder %v1295, %v1297
        %vm1300 = vcmp.ne.s32.totalorder %v1296, %v1298
        %vm1301 = vmpackc.low %vm1300, %vm1299
        %v1302 = vunpack.c.l.b16 %v1195
        %v1303 = vunpack.c.h.b16 %v1195
        %v1304 = vunpack.c.l.b16 0
        %v1305 = vunpack.c.h.b16 0
        %vm1306 = vcmp.ne.s32.totalorder %v1302, %v1304
        %vm1307 = vcmp.ne.s32.totalorder %v1303, %v1305
        %vm1308 = vmpackc.low %vm1307, %vm1306
        %v1309 = vunpack.c.l.b16 %v1198
        %v1310 = vunpack.c.h.b16 %v1198
        %v1311 = vunpack.c.l.b16 0
        %v1312 = vunpack.c.h.b16 0
        %vm1313 = vcmp.ne.s32.totalorder %v1309, %v1311
        %vm1314 = vcmp.ne.s32.totalorder %v1310, %v1312
        %vm1315 = vmpackc.low %vm1314, %vm1313
        %v1316 = vunpack.c.l.b16 %v1201
        %v1317 = vunpack.c.h.b16 %v1201
        %v1318 = vunpack.c.l.b16 0
        %v1319 = vunpack.c.h.b16 0
        %vm1320 = vcmp.ne.s32.totalorder %v1316, %v1318
        %vm1321 = vcmp.ne.s32.totalorder %v1317, %v1319
        %vm1322 = vmpackc.low %vm1321, %vm1320
        %v1323 = vunpack.c.l.b16 %v1204
        %v1324 = vunpack.c.h.b16 %v1204
        %v1325 = vunpack.c.l.b16 0
        %v1326 = vunpack.c.h.b16 0
        %vm1327 = vcmp.ne.s32.totalorder %v1323, %v1325
        %vm1328 = vcmp.ne.s32.totalorder %v1324, %v1326
        %vm1329 = vmpackc.low %vm1328, %vm1327
        %v1330 = vunpack.c.l.b16 %v1207
        %v1331 = vunpack.c.h.b16 %v1207
        %v1332 = vunpack.c.l.b16 0
        %v1333 = vunpack.c.h.b16 0
        %vm1334 = vcmp.ne.s32.totalorder %v1330, %v1332
        %vm1335 = vcmp.ne.s32.totalorder %v1331, %v1333
        %vm1336 = vmpackc.low %vm1335, %vm1334
        %v1337 = vunpack.c.l.b16 %v1210
        %v1338 = vunpack.c.h.b16 %v1210
        %v1339 = vunpack.c.l.b16 0
        %v1340 = vunpack.c.h.b16 0
        %vm1341 = vcmp.ne.s32.totalorder %v1337, %v1339
        %vm1342 = vcmp.ne.s32.totalorder %v1338, %v1340
        %vm1343 = vmpackc.low %vm1342, %vm1341
        %v1344 = vunpack.c.l.b16 %v1213
        %v1345 = vunpack.c.h.b16 %v1213
        %v1346 = vunpack.c.l.b16 0
        %v1347 = vunpack.c.h.b16 0
        %vm1348 = vcmp.ne.s32.totalorder %v1344, %v1346
        %vm1349 = vcmp.ne.s32.totalorder %v1345, %v1347
        %vm1350 = vmpackc.low %vm1349, %vm1348
        %v1351 = vunpack.c.l.b16 %v1216
        %v1352 = vunpack.c.h.b16 %v1216
        %v1353 = vunpack.c.l.b16 0
        %v1354 = vunpack.c.h.b16 0
        %vm1355 = vcmp.ne.s32.totalorder %v1351, %v1353
        %vm1356 = vcmp.ne.s32.totalorder %v1352, %v1354
        %vm1357 = vmpackc.low %vm1356, %vm1355
        %v1358 = vunpack.c.l.b16 %v1219
        %v1359 = vunpack.c.h.b16 %v1219
        %v1360 = vunpack.c.l.b16 0
        %v1361 = vunpack.c.h.b16 0
        %vm1362 = vcmp.ne.s32.totalorder %v1358, %v1360
        %vm1363 = vcmp.ne.s32.totalorder %v1359, %v1361
        %vm1364 = vmpackc.low %vm1363, %vm1362
        %v1365 = vunpack.c.l.b16 %v1222
        %v1366 = vunpack.c.h.b16 %v1222
        %v1367 = vunpack.c.l.b16 0
        %v1368 = vunpack.c.h.b16 0
        %vm1369 = vcmp.ne.s32.totalorder %v1365, %v1367
        %vm1370 = vcmp.ne.s32.totalorder %v1366, %v1368
        %vm1371 = vmpackc.low %vm1370, %vm1369
        %v1372 = vunpack.c.l.b16 %v1225
        %v1373 = vunpack.c.h.b16 %v1225
        %v1374 = vunpack.c.l.b16 0
        %v1375 = vunpack.c.h.b16 0
        %vm1376 = vcmp.ne.s32.totalorder %v1372, %v1374
        %vm1377 = vcmp.ne.s32.totalorder %v1373, %v1375
        %vm1378 = vmpackc.low %vm1377, %vm1376
        %v1379 = vunpack.c.l.b16 %v1228
        %v1380 = vunpack.c.h.b16 %v1228
        %v1381 = vunpack.c.l.b16 0
        %v1382 = vunpack.c.h.b16 0
        %vm1383 = vcmp.ne.s32.totalorder %v1379, %v1381
        %vm1384 = vcmp.ne.s32.totalorder %v1380, %v1382
        %vm1385 = vmpackc.low %vm1384, %vm1383
        %v1386 = vunpack.c.l.b16 %v1231
        %v1387 = vunpack.c.h.b16 %v1231
        %v1388 = vunpack.c.l.b16 0
        %v1389 = vunpack.c.h.b16 0
        %vm1390 = vcmp.ne.s32.totalorder %v1386, %v1388
        %vm1391 = vcmp.ne.s32.totalorder %v1387, %v1389
        %vm1392 = vmpackc.low %vm1391, %vm1390
        %v1393 = vunpack.c.l.b16 %v1234
        %v1394 = vunpack.c.h.b16 %v1234
        %v1395 = vunpack.c.l.b16 0
        %v1396 = vunpack.c.h.b16 0
        %vm1397 = vcmp.ne.s32.totalorder %v1393, %v1395
        %vm1398 = vcmp.ne.s32.totalorder %v1394, %v1396
        %vm1399 = vmpackc.low %vm1398, %vm1397
        %v1400 = vunpack.c.l.b16 %v1237
        %v1401 = vunpack.c.h.b16 %v1237
        %v1402 = vunpack.c.l.b16 0
        %v1403 = vunpack.c.h.b16 0
        %vm1404 = vcmp.ne.s32.totalorder %v1400, %v1402
        %vm1405 = vcmp.ne.s32.totalorder %v1401, %v1403
        %vm1406 = vmpackc.low %vm1405, %vm1404
        %v1407 = vunpack.c.l.b16 %v1240
        %v1408 = vunpack.c.h.b16 %v1240
        %v1409 = vunpack.c.l.b16 0
        %v1410 = vunpack.c.h.b16 0
        %vm1411 = vcmp.ne.s32.totalorder %v1407, %v1409
        %vm1412 = vcmp.ne.s32.totalorder %v1408, %v1410
        %vm1413 = vmpackc.low %vm1412, %vm1411
        %v1414 = vunpack.c.l.b16 %v1243
        %v1415 = vunpack.c.h.b16 %v1243
        %v1416 = vunpack.c.l.b16 0
        %v1417 = vunpack.c.h.b16 0
        %vm1418 = vcmp.ne.s32.totalorder %v1414, %v1416
        %vm1419 = vcmp.ne.s32.totalorder %v1415, %v1417
        %vm1420 = vmpackc.low %vm1419, %vm1418
        %v1421 = vunpack.c.l.b16 %v1246
        %v1422 = vunpack.c.h.b16 %v1246
        %v1423 = vunpack.c.l.b16 0
        %v1424 = vunpack.c.h.b16 0
        %vm1425 = vcmp.ne.s32.totalorder %v1421, %v1423
        %vm1426 = vcmp.ne.s32.totalorder %v1422, %v1424
        %vm1427 = vmpackc.low %vm1426, %vm1425
        %v1428 = vunpack.c.l.b16 %v1249
        %v1429 = vunpack.c.h.b16 %v1249
        %v1430 = vunpack.c.l.b16 0
        %v1431 = vunpack.c.h.b16 0
        %vm1432 = vcmp.ne.s32.totalorder %v1428, %v1430
        %vm1433 = vcmp.ne.s32.totalorder %v1429, %v1431
        %vm1434 = vmpackc.low %vm1433, %vm1432
        %v1435 = vunpack.c.l.b16 %v1252
        %v1436 = vunpack.c.h.b16 %v1252
        %v1437 = vunpack.c.l.b16 0
        %v1438 = vunpack.c.h.b16 0
        %vm1439 = vcmp.ne.s32.totalorder %v1435, %v1437
        %vm1440 = vcmp.ne.s32.totalorder %v1436, %v1438
        %vm1441 = vmpackc.low %vm1440, %vm1439
        %v1442 = vunpack.c.l.b16 %v1255
        %v1443 = vunpack.c.h.b16 %v1255
        %v1444 = vunpack.c.l.b16 0
        %v1445 = vunpack.c.h.b16 0
        %vm1446 = vcmp.ne.s32.totalorder %v1442, %v1444
        %vm1447 = vcmp.ne.s32.totalorder %v1443, %v1445
        %vm1448 = vmpackc.low %vm1447, %vm1446
        %v1449 = vunpack.c.l.b16 %v1258
        %v1450 = vunpack.c.h.b16 %v1258
        %v1451 = vunpack.c.l.b16 0
        %v1452 = vunpack.c.h.b16 0
        %vm1453 = vcmp.ne.s32.totalorder %v1449, %v1451
        %vm1454 = vcmp.ne.s32.totalorder %v1450, %v1452
        %vm1455 = vmpackc.low %vm1454, %vm1453
        %v1456 = vunpack.c.l.b16 %v1261
        %v1457 = vunpack.c.h.b16 %v1261
        %v1458 = vunpack.c.l.b16 0
        %v1459 = vunpack.c.h.b16 0
        %vm1460 = vcmp.ne.s32.totalorder %v1456, %v1458
        %vm1461 = vcmp.ne.s32.totalorder %v1457, %v1459
        %vm1462 = vmpackc.low %vm1461, %vm1460
        %v1463 = vunpack.c.l.b16 %v1264
        %v1464 = vunpack.c.h.b16 %v1264
        %v1465 = vunpack.c.l.b16 0
        %v1466 = vunpack.c.h.b16 0
        %vm1467 = vcmp.ne.s32.totalorder %v1463, %v1465
        %vm1468 = vcmp.ne.s32.totalorder %v1464, %v1466
        %vm1469 = vmpackc.low %vm1468, %vm1467
        %v1470 = vunpack.c.l.b16 %v1267
        %v1471 = vunpack.c.h.b16 %v1267
        %v1472 = vunpack.c.l.b16 0
        %v1473 = vunpack.c.h.b16 0
        %vm1474 = vcmp.ne.s32.totalorder %v1470, %v1472
        %vm1475 = vcmp.ne.s32.totalorder %v1471, %v1473
        %vm1476 = vmpackc.low %vm1475, %vm1474
        %v1477 = vunpack.c.l.b16 %v1270
        %v1478 = vunpack.c.h.b16 %v1270
        %v1479 = vunpack.c.l.b16 0
        %v1480 = vunpack.c.h.b16 0
        %vm1481 = vcmp.ne.s32.totalorder %v1477, %v1479
        %vm1482 = vcmp.ne.s32.totalorder %v1478, %v1480
        %vm1483 = vmpackc.low %vm1482, %vm1481
        %v1484 = vunpack.c.l.b16 %v1273
        %v1485 = vunpack.c.h.b16 %v1273
        %v1486 = vunpack.c.l.b16 0
        %v1487 = vunpack.c.h.b16 0
        %vm1488 = vcmp.ne.s32.totalorder %v1484, %v1486
        %vm1489 = vcmp.ne.s32.totalorder %v1485, %v1487
        %vm1490 = vmpackc.low %vm1489, %vm1488
        %v1491 = vunpack.c.l.b16 %v1276
        %v1492 = vunpack.c.h.b16 %v1276
        %v1493 = vunpack.c.l.b16 0
        %v1494 = vunpack.c.h.b16 0
        %vm1495 = vcmp.ne.s32.totalorder %v1491, %v1493
        %vm1496 = vcmp.ne.s32.totalorder %v1492, %v1494
        %vm1497 = vmpackc.low %vm1496, %vm1495
        %v1498 = vunpack.c.l.b16 %v1279
        %v1499 = vunpack.c.h.b16 %v1279
        %v1500 = vunpack.c.l.b16 0
        %v1501 = vunpack.c.h.b16 0
        %vm1502 = vcmp.ne.s32.totalorder %v1498, %v1500
        %vm1503 = vcmp.ne.s32.totalorder %v1499, %v1501
        %vm1504 = vmpackc.low %vm1503, %vm1502
        %v1505 = vunpack.c.l.b16 %v1280
        %v1506 = vunpack.c.h.b16 %v1280
        %v1507 = vunpack.c.l.b16 0
        %v1508 = vunpack.c.h.b16 0
        %vm1509 = vcmp.ne.s32.totalorder %v1505, %v1507
        %vm1510 = vcmp.ne.s32.totalorder %v1506, %v1508
        %vm1511 = vmpackc.low %vm1510, %vm1509
        %v1512 = vsel %vm1287, %v890, 0
        %v1513 = vsel %vm1294, %v891, 0
        %v1514 = vsel %vm1301, %v892, 0
        %v1515 = vsel %vm1308, %v893, 0
        %v1516 = vsel %vm1315, %v894, 0
        %v1517 = vsel %vm1322, %v895, 0
        %v1518 = vsel %vm1329, %v896, 0
        %v1519 = vsel %vm1336, %v897, 0
        %v1520 = vsel %vm1343, %v898, 0
        %v1521 = vsel %vm1350, %v899, 0
        %v1522 = vsel %vm1357, %v900, 0
        %v1523 = vsel %vm1364, %v901, 0
        %v1524 = vsel %vm1371, %v902, 0
        %v1525 = vsel %vm1378, %v903, 0
        %v1526 = vsel %vm1385, %v904, 0
        %v1527 = vsel %vm1392, %v905, 0
        %v1528 = vsel %vm1399, %v906, 0
        %v1529 = vsel %vm1406, %v907, 0
        %v1530 = vsel %vm1413, %v908, 0
        %v1531 = vsel %vm1420, %v909, 0
        %v1532 = vsel %vm1427, %v910, 0
        %v1533 = vsel %vm1434, %v911, 0
        %v1534 = vsel %vm1441, %v912, 0
        %v1535 = vsel %vm1448, %v913, 0
        %v1536 = vsel %vm1455, %v914, 0
        %v1537 = vsel %vm1462, %v915, 0
        %v1538 = vsel %vm1469, %v916, 0
        %v1539 = vsel %vm1476, %v917, 0
        %v1540 = vsel %vm1483, %v918, 0
        %v1541 = vsel %vm1490, %v919, 0
        %v1542 = vsel %vm1497, %v920, 0
        %v1543 = vsel %vm1504, %v921, 0
        %v1544 = vsel %vm1511, %v922, 0
        %v1545 = vsel %vm991, %v892, 0
        %v1546 = vsel %vm992, %v893, 0
        %v1547 = vsel %vm993, %v894, 0
        %v1548 = vsel %vm994, %v895, 0
        %v1549 = vsel %vm995, %v896, 0
        %v1550 = vsel %vm996, %v897, 0
        %v1551 = vsel %vm997, %v898, 0
        %v1552 = vsel %vm998, %v899, 0
        %v1553 = vsel %vm999, %v900, 0
        %v1554 = vsel %vm1000, %v901, 0
        %v1555 = vsel %vm1001, %v902, 0
        %v1556 = vsel %vm1002, %v903, 0
        %v1557 = vsel %vm1003, %v904, 0
        %v1558 = vsel %vm1004, %v905, 0
        %v1559 = vsel %vm1005, %v906, 0
        %v1560 = vsel %vm1006, %v907, 0
        %v1561 = vsel %vm1007, %v908, 0
        %v1562 = vsel %vm1008, %v909, 0
        %v1563 = vsel %vm1009, %v910, 0
        %v1564 = vsel %vm1010, %v911, 0
        %v1565 = vsel %vm1011, %v912, 0
        %v1566 = vsel %vm1012, %v913, 0
        %v1567 = vsel %vm1013, %v914, 0
        %v1568 = vsel %vm1014, %v915, 0
        %v1569 = vsel %vm1015, %v916, 0
        %v1570 = vsel %vm1016, %v917, 0
        %v1571 = vsel %vm1017, %v918, 0
        %v1572 = vsel %vm1018, %v919, 0
        %v1573 = vsel %vm1019, %v920, 0
        %v1574 = vsel %vm1020, %v921, 0
        %v1575 = vsel %vm1021, %v922, 0
        %v1576 = vsel %vm1022, %v923, 0
        %v1577 = vsel %vm1287, %v892, 0
        %v1578 = vsel %vm1294, %v893, 0
        %v1579 = vsel %vm1301, %v894, 0
        %v1580 = vsel %vm1308, %v895, 0
        %v1581 = vsel %vm1315, %v896, 0
        %v1582 = vsel %vm1322, %v897, 0
        %v1583 = vsel %vm1329, %v898, 0
        %v1584 = vsel %vm1336, %v899, 0
        %v1585 = vsel %vm1343, %v900, 0
        %v1586 = vsel %vm1350, %v901, 0
        %v1587 = vsel %vm1357, %v902, 0
        %v1588 = vsel %vm1364, %v903, 0
        %v1589 = vsel %vm1371, %v904, 0
        %v1590 = vsel %vm1378, %v905, 0
        %v1591 = vsel %vm1385, %v906, 0
        %v1592 = vsel %vm1392, %v907, 0
        %v1593 = vsel %vm1399, %v908, 0
        %v1594 = vsel %vm1406, %v909, 0
        %v1595 = vsel %vm1413, %v910, 0
        %v1596 = vsel %vm1420, %v911, 0
        %v1597 = vsel %vm1427, %v912, 0
        %v1598 = vsel %vm1434, %v913, 0
        %v1599 = vsel %vm1441, %v914, 0
        %v1600 = vsel %vm1448, %v915, 0
        %v1601 = vsel %vm1455, %v916, 0
        %v1602 = vsel %vm1462, %v917, 0
        %v1603 = vsel %vm1469, %v918, 0
        %v1604 = vsel %vm1476, %v919, 0
        %v1605 = vsel %vm1483, %v920, 0
        %v1606 = vsel %vm1490, %v921, 0
        %v1607 = vsel %vm1497, %v922, 0
        %v1608 = vsel %vm1504, %v923, 0
        %v1609 = vsel %vm1511, %v924, 0
        %v1610 = vsel %vm991, %v894, 0
        %v1611 = vsel %vm992, %v895, 0
        %v1612 = vsel %vm993, %v896, 0
        %v1613 = vsel %vm994, %v897, 0
        %v1614 = vsel %vm995, %v898, 0
        %v1615 = vsel %vm996, %v899, 0
        %v1616 = vsel %vm997, %v900, 0
        %v1617 = vsel %vm998, %v901, 0
        %v1618 = vsel %vm999, %v902, 0
        %v1619 = vsel %vm1000, %v903, 0
        %v1620 = vsel %vm1001, %v904, 0
        %v1621 = vsel %vm1002, %v905, 0
        %v1622 = vsel %vm1003, %v906, 0
        %v1623 = vsel %vm1004, %v907, 0
        %v1624 = vsel %vm1005, %v908, 0
        %v1625 = vsel %vm1006, %v909, 0
        %v1626 = vsel %vm1007, %v910, 0
        %v1627 = vsel %vm1008, %v911, 0
        %v1628 = vsel %vm1009, %v912, 0
        %v1629 = vsel %vm1010, %v913, 0
        %v1630 = vsel %vm1011, %v914, 0
        %v1631 = vsel %vm1012, %v915, 0
        %v1632 = vsel %vm1013, %v916, 0
        %v1633 = vsel %vm1014, %v917, 0
        %v1634 = vsel %vm1015, %v918, 0
        %v1635 = vsel %vm1016, %v919, 0
        %v1636 = vsel %vm1017, %v920, 0
        %v1637 = vsel %vm1018, %v921, 0
        %v1638 = vsel %vm1019, %v922, 0
        %v1639 = vsel %vm1020, %v923, 0
        %v1640 = vsel %vm1021, %v924, 0
        %v1641 = vsel %vm1022, %v925, 0
        %v1642 = vsel %vm1287, %v894, 0
        %v1643 = vsel %vm1294, %v895, 0
        %v1644 = vsel %vm1301, %v896, 0
        %v1645 = vsel %vm1308, %v897, 0
        %v1646 = vsel %vm1315, %v898, 0
        %v1647 = vsel %vm1322, %v899, 0
        %v1648 = vsel %vm1329, %v900, 0
        %v1649 = vsel %vm1336, %v901, 0
        %v1650 = vsel %vm1343, %v902, 0
        %v1651 = vsel %vm1350, %v903, 0
        %v1652 = vsel %vm1357, %v904, 0
        %v1653 = vsel %vm1364, %v905, 0
        %v1654 = vsel %vm1371, %v906, 0
        %v1655 = vsel %vm1378, %v907, 0
        %v1656 = vsel %vm1385, %v908, 0
        %v1657 = vsel %vm1392, %v909, 0
        %v1658 = vsel %vm1399, %v910, 0
        %v1659 = vsel %vm1406, %v911, 0
        %v1660 = vsel %vm1413, %v912, 0
        %v1661 = vsel %vm1420, %v913, 0
        %v1662 = vsel %vm1427, %v914, 0
        %v1663 = vsel %vm1434, %v915, 0
        %v1664 = vsel %vm1441, %v916, 0
        %v1665 = vsel %vm1448, %v917, 0
        %v1666 = vsel %vm1455, %v918, 0
        %v1667 = vsel %vm1462, %v919, 0
        %v1668 = vsel %vm1469, %v920, 0
        %v1669 = vsel %vm1476, %v921, 0
        %v1670 = vsel %vm1483, %v922, 0
        %v1671 = vsel %vm1490, %v923, 0
        %v1672 = vsel %vm1497, %v924, 0
        %v1673 = vsel %vm1504, %v925, 0
        %v1674 = vsel %vm1511, %v926, 0
        %v1707 = vunpack.c.l.b16 %v1023
        %v1708 = vunpack.c.l.b16 %v1024
        %v1709 = vunpack.c.l.b16 %v1025
        %v1710 = vunpack.c.l.b16 %v1026
        %v1711 = vunpack.c.l.b16 %v1027
        %v1712 = vunpack.c.l.b16 %v1028
        %v1713 = vunpack.c.l.b16 %v1029
        %v1714 = vunpack.c.l.b16 %v1030
        %v1715 = vunpack.c.l.b16 %v1031
        %v1716 = vunpack.c.l.b16 %v1032
        %v1717 = vunpack.c.l.b16 %v1033
        %v1718 = vunpack.c.l.b16 %v1034
        %v1719 = vunpack.c.l.b16 %v1035
        %v1720 = vunpack.c.l.b16 %v1036
        %v1721 = vunpack.c.l.b16 %v1037
        %v1722 = vunpack.c.l.b16 %v1038
        %v1723 = vunpack.c.l.b16 %v1039
        %v1724 = vunpack.c.l.b16 %v1040
        %v1725 = vunpack.c.l.b16 %v1041
        %v1726 = vunpack.c.l.b16 %v1042
        %v1727 = vunpack.c.l.b16 %v1043
        %v1728 = vunpack.c.l.b16 %v1044
        %v1729 = vunpack.c.l.b16 %v1045
        %v1730 = vunpack.c.l.b16 %v1046
        %v1731 = vunpack.c.l.b16 %v1047
        %v1732 = vunpack.c.l.b16 %v1048
        %v1733 = vunpack.c.l.b16 %v1049
        %v1734 = vunpack.c.l.b16 %v1050
        %v1735 = vunpack.c.l.b16 %v1051
        %v1736 = vunpack.c.l.b16 %v1052
        %v1737 = vunpack.c.l.b16 %v1053
        %v1738 = vunpack.c.l.b16 %v1054
        %v1739 = vpack.c.b16 %v1708, %v1707
        %v1740 = vpack.c.b16 %v1710, %v1709
        %v1741 = vpack.c.b16 %v1712, %v1711
        %v1742 = vpack.c.b16 %v1714, %v1713
        %v1743 = vpack.c.b16 %v1716, %v1715
        %v1744 = vpack.c.b16 %v1718, %v1717
        %v1745 = vpack.c.b16 %v1720, %v1719
        %v1746 = vpack.c.b16 %v1722, %v1721
        %v1747 = vpack.c.b16 %v1724, %v1723
        %v1748 = vpack.c.b16 %v1726, %v1725
        %v1749 = vpack.c.b16 %v1728, %v1727
        %v1750 = vpack.c.b16 %v1730, %v1729
        %v1751 = vpack.c.b16 %v1732, %v1731
        %v1752 = vpack.c.b16 %v1734, %v1733
        %v1753 = vpack.c.b16 %v1736, %v1735
        %v1754 = vpack.c.b16 %v1738, %v1737
        %v1788 = vunpack.c.l.b16 %v890
        %v1789 = vunpack.c.l.b16 %v891
        %v1790 = vunpack.c.l.b16 %v892
        %v1791 = vunpack.c.l.b16 %v893
        %v1792 = vunpack.c.l.b16 %v894
        %v1793 = vunpack.c.l.b16 %v895
        %v1794 = vunpack.c.l.b16 %v896
        %v1795 = vunpack.c.l.b16 %v897
        %v1796 = vunpack.c.l.b16 %v898
        %v1797 = vunpack.c.l.b16 %v899
        %v1798 = vunpack.c.l.b16 %v900
        %v1799 = vunpack.c.l.b16 %v901
        %v1800 = vunpack.c.l.b16 %v902
        %v1801 = vunpack.c.l.b16 %v903
        %v1802 = vunpack.c.l.b16 %v904
        %v1803 = vunpack.c.l.b16 %v905
        %v1804 = vunpack.c.l.b16 %v906
        %v1805 = vunpack.c.l.b16 %v907
        %v1806 = vunpack.c.l.b16 %v908
        %v1807 = vunpack.c.l.b16 %v909
        %v1808 = vunpack.c.l.b16 %v910
        %v1809 = vunpack.c.l.b16 %v911
        %v1810 = vunpack.c.l.b16 %v912
        %v1811 = vunpack.c.l.b16 %v913
        %v1812 = vunpack.c.l.b16 %v914
        %v1813 = vunpack.c.l.b16 %v915
        %v1814 = vunpack.c.l.b16 %v916
        %v1815 = vunpack.c.l.b16 %v917
        %v1816 = vunpack.c.l.b16 %v918
        %v1817 = vunpack.c.l.b16 %v919
        %v1818 = vunpack.c.l.b16 %v920
        %v1819 = vunpack.c.l.b16 %v921
        %v1820 = vunpack.c.l.b16 %v922
        %v1821 = vpack.c.b16 %v1789, %v1788
        %v1822 = vpack.c.b16 %v1791, %v1790
        %v1823 = vpack.c.b16 %v1793, %v1792
        %v1824 = vpack.c.b16 %v1795, %v1794
        %v1825 = vpack.c.b16 %v1797, %v1796
        %v1826 = vpack.c.b16 %v1799, %v1798
        %v1827 = vpack.c.b16 %v1801, %v1800
        %v1828 = vpack.c.b16 %v1803, %v1802
        %v1829 = vpack.c.b16 %v1805, %v1804
        %v1830 = vpack.c.b16 %v1807, %v1806
        %v1831 = vpack.c.b16 %v1809, %v1808
        %v1832 = vpack.c.b16 %v1811, %v1810
        %v1833 = vpack.c.b16 %v1813, %v1812
        %v1834 = vpack.c.b16 %v1815, %v1814
        %v1835 = vpack.c.b16 %v1817, %v1816
        %v1836 = vpack.c.b16 %v1819, %v1818
        %v1837 = vpack.c.b16 %v1820, %v1820
        %vm1838 = vsmask.f32 7424
        %v1840 = vshrl.u32 %v1821, 16
        %v1842 = vshll.u32 %v1821, 16
        %v1844 = vrot.slane %v1842, 1
        %v1845 = vor.u32 %v1840, %v1844
        %v1847 = vshll.u32 %v1822, 16
        %v1849 = vrot.slane %v1847, 1
        %v1850 = vsel %vm1838, %v1845, %v1849
        %v1851 = vshrl.u32 %v1822, 16
        %v1853 = vor.u32 %v1851, %v1849
        %v1855 = vshll.u32 %v1823, 16
        %v1857 = vrot.slane %v1855, 1
        %v1858 = vsel %vm1838, %v1853, %v1857
        %v1859 = vshrl.u32 %v1823, 16
        %v1861 = vor.u32 %v1859, %v1857
        %v1863 = vshll.u32 %v1824, 16
        %v1865 = vrot.slane %v1863, 1
        %v1866 = vsel %vm1838, %v1861, %v1865
        %v1867 = vshrl.u32 %v1824, 16
        %v1869 = vor.u32 %v1867, %v1865
        %v1871 = vshll.u32 %v1825, 16
        %v1873 = vrot.slane %v1871, 1
        %v1874 = vsel %vm1838, %v1869, %v1873
        %v1875 = vshrl.u32 %v1825, 16
        %v1877 = vor.u32 %v1875, %v1873
        %v1879 = vshll.u32 %v1826, 16
        %v1881 = vrot.slane %v1879, 1
        %v1882 = vsel %vm1838, %v1877, %v1881
        %v1883 = vshrl.u32 %v1826, 16
        %v1885 = vor.u32 %v1883, %v1881
        %v1887 = vshll.u32 %v1827, 16
        %v1889 = vrot.slane %v1887, 1
        %v1890 = vsel %vm1838, %v1885, %v1889
        %v1891 = vshrl.u32 %v1827, 16
        %v1893 = vor.u32 %v1891, %v1889
        %v1895 = vshll.u32 %v1828, 16
        %v1897 = vrot.slane %v1895, 1
        %v1898 = vsel %vm1838, %v1893, %v1897
        %v1899 = vshrl.u32 %v1828, 16
        %v1901 = vor.u32 %v1899, %v1897
        %v1903 = vshll.u32 %v1829, 16
        %v1905 = vrot.slane %v1903, 1
        %v1906 = vsel %vm1838, %v1901, %v1905
        %v1907 = vshrl.u32 %v1829, 16
        %v1909 = vor.u32 %v1907, %v1905
        %v1911 = vshll.u32 %v1830, 16
        %v1913 = vrot.slane %v1911, 1
        %v1914 = vsel %vm1838, %v1909, %v1913
        %v1915 = vshrl.u32 %v1830, 16
        %v1917 = vor.u32 %v1915, %v1913
        %v1919 = vshll.u32 %v1831, 16
        %v1921 = vrot.slane %v1919, 1
        %v1922 = vsel %vm1838, %v1917, %v1921
        %v1923 = vshrl.u32 %v1831, 16
        %v1925 = vor.u32 %v1923, %v1921
        %v1927 = vshll.u32 %v1832, 16
        %v1929 = vrot.slane %v1927, 1
        %v1930 = vsel %vm1838, %v1925, %v1929
        %v1931 = vshrl.u32 %v1832, 16
        %v1933 = vor.u32 %v1931, %v1929
        %v1935 = vshll.u32 %v1833, 16
        %v1937 = vrot.slane %v1935, 1
        %v1938 = vsel %vm1838, %v1933, %v1937
        %v1939 = vshrl.u32 %v1833, 16
        %v1941 = vor.u32 %v1939, %v1937
        %v1943 = vshll.u32 %v1834, 16
        %v1945 = vrot.slane %v1943, 1
        %v1946 = vsel %vm1838, %v1941, %v1945
        %v1947 = vshrl.u32 %v1834, 16
        %v1949 = vor.u32 %v1947, %v1945
        %v1951 = vshll.u32 %v1835, 16
        %v1953 = vrot.slane %v1951, 1
        %v1954 = vsel %vm1838, %v1949, %v1953
        %v1955 = vshrl.u32 %v1835, 16
        %v1957 = vor.u32 %v1955, %v1953
        %v1959 = vshll.u32 %v1836, 16
        %v1961 = vrot.slane %v1959, 1
        %v1962 = vsel %vm1838, %v1957, %v1961
        %v1963 = vshrl.u32 %v1836, 16
        %v1965 = vor.u32 %v1963, %v1961
        %v1967 = vshll.u32 %v1837, 16
        %v1969 = vrot.slane %v1967, 1
        %v1970 = vsel %vm1838, %v1965, %v1969
        %1971 = vrot.lane.b32.xlu0 %v1850, 4
        %v1972 = vpop.permute.xlu0 %1971
        %1973 = vrot.lane.b32.xlu0 %v1858, 4
        %v1974 = vpop.permute.xlu0 %1973
        %1975 = vrot.lane.b32.xlu0 %v1866, 4
        %v1976 = vpop.permute.xlu0 %1975
        %1977 = vrot.lane.b32.xlu0 %v1874, 4
        %v1978 = vpop.permute.xlu0 %1977
        %1979 = vrot.lane.b32.xlu0 %v1882, 4
        %v1980 = vpop.permute.xlu0 %1979
        %1981 = vrot.lane.b32.xlu0 %v1890, 4
        %v1982 = vpop.permute.xlu0 %1981
        %1983 = vrot.lane.b32.xlu0 %v1898, 4
        %v1984 = vpop.permute.xlu0 %1983
        %1985 = vrot.lane.b32.xlu0 %v1906, 4
        %v1986 = vpop.permute.xlu0 %1985
        %1987 = vrot.lane.b32.xlu0 %v1914, 4
        %v1988 = vpop.permute.xlu0 %1987
        %1989 = vrot.lane.b32.xlu0 %v1922, 4
        %v1990 = vpop.permute.xlu0 %1989
        %1991 = vrot.lane.b32.xlu0 %v1930, 4
        %v1992 = vpop.permute.xlu0 %1991
        %1993 = vrot.lane.b32.xlu0 %v1938, 4
        %v1994 = vpop.permute.xlu0 %1993
        %1995 = vrot.lane.b32.xlu0 %v1946, 4
        %v1996 = vpop.permute.xlu0 %1995
        %1997 = vrot.lane.b32.xlu0 %v1954, 4
        %v1998 = vpop.permute.xlu0 %1997
        %1999 = vrot.lane.b32.xlu0 %v1962, 4
        %v2000 = vpop.permute.xlu0 %1999
        %2001 = vrot.lane.b32.xlu0 %v1970, 4
        %v2002 = vpop.permute.xlu0 %2001
        %v2036 = vunpack.c.l.b16 %v1512
        %v2037 = vunpack.c.l.b16 %v1513
        %v2038 = vunpack.c.l.b16 %v1514
        %v2039 = vunpack.c.l.b16 %v1515
        %v2040 = vunpack.c.l.b16 %v1516
        %v2041 = vunpack.c.l.b16 %v1517
        %v2042 = vunpack.c.l.b16 %v1518
        %v2043 = vunpack.c.l.b16 %v1519
        %v2044 = vunpack.c.l.b16 %v1520
        %v2045 = vunpack.c.l.b16 %v1521
        %v2046 = vunpack.c.l.b16 %v1522
        %v2047 = vunpack.c.l.b16 %v1523
        %v2048 = vunpack.c.l.b16 %v1524
        %v2049 = vunpack.c.l.b16 %v1525
        %v2050 = vunpack.c.l.b16 %v1526
        %v2051 = vunpack.c.l.b16 %v1527
        %v2052 = vunpack.c.l.b16 %v1528
        %v2053 = vunpack.c.l.b16 %v1529
        %v2054 = vunpack.c.l.b16 %v1530
        %v2055 = vunpack.c.l.b16 %v1531
        %v2056 = vunpack.c.l.b16 %v1532
        %v2057 = vunpack.c.l.b16 %v1533
        %v2058 = vunpack.c.l.b16 %v1534
        %v2059 = vunpack.c.l.b16 %v1535
        %v2060 = vunpack.c.l.b16 %v1536
        %v2061 = vunpack.c.l.b16 %v1537
        %v2062 = vunpack.c.l.b16 %v1538
        %v2063 = vunpack.c.l.b16 %v1539
        %v2064 = vunpack.c.l.b16 %v1540
        %v2065 = vunpack.c.l.b16 %v1541
        %v2066 = vunpack.c.l.b16 %v1542
        %v2067 = vunpack.c.l.b16 %v1543
        %v2068 = vunpack.c.l.b16 %v1544
        %v2069 = vpack.c.b16 %v2037, %v2036
        %v2070 = vpack.c.b16 %v2039, %v2038
        %v2071 = vpack.c.b16 %v2041, %v2040
        %v2072 = vpack.c.b16 %v2043, %v2042
        %v2073 = vpack.c.b16 %v2045, %v2044
        %v2074 = vpack.c.b16 %v2047, %v2046
        %v2075 = vpack.c.b16 %v2049, %v2048
        %v2076 = vpack.c.b16 %v2051, %v2050
        %v2077 = vpack.c.b16 %v2053, %v2052
        %v2078 = vpack.c.b16 %v2055, %v2054
        %v2079 = vpack.c.b16 %v2057, %v2056
        %v2080 = vpack.c.b16 %v2059, %v2058
        %v2081 = vpack.c.b16 %v2061, %v2060
        %v2082 = vpack.c.b16 %v2063, %v2062
        %v2083 = vpack.c.b16 %v2065, %v2064
        %v2084 = vpack.c.b16 %v2067, %v2066
        %v2085 = vpack.c.b16 %v2068, %v2068
        %vm2086 = vcmask 1046528
        %v2087 = vrot.slane %v2069, 1
        %v2088 = vrot.slane %v2070, 1
        %v2089 = vsel %vm2086, %v2087, %v2088
        %v2090 = vrot.slane %v2071, 1
        %v2091 = vsel %vm2086, %v2088, %v2090
        %v2092 = vrot.slane %v2072, 1
        %v2093 = vsel %vm2086, %v2090, %v2092
        %v2094 = vrot.slane %v2073, 1
        %v2095 = vsel %vm2086, %v2092, %v2094
        %v2096 = vrot.slane %v2074, 1
        %v2097 = vsel %vm2086, %v2094, %v2096
        %v2098 = vrot.slane %v2075, 1
        %v2099 = vsel %vm2086, %v2096, %v2098
        %v2100 = vrot.slane %v2076, 1
        %v2101 = vsel %vm2086, %v2098, %v2100
        %v2102 = vrot.slane %v2077, 1
        %v2103 = vsel %vm2086, %v2100, %v2102
        %v2104 = vrot.slane %v2078, 1
        %v2105 = vsel %vm2086, %v2102, %v2104
        %v2106 = vrot.slane %v2079, 1
        %v2107 = vsel %vm2086, %v2104, %v2106
        %v2108 = vrot.slane %v2080, 1
        %v2109 = vsel %vm2086, %v2106, %v2108
        %v2110 = vrot.slane %v2081, 1
        %v2111 = vsel %vm2086, %v2108, %v2110
        %v2112 = vrot.slane %v2082, 1
        %v2113 = vsel %vm2086, %v2110, %v2112
        %v2114 = vrot.slane %v2083, 1
        %v2115 = vsel %vm2086, %v2112, %v2114
        %v2116 = vrot.slane %v2084, 1
        %v2117 = vsel %vm2086, %v2114, %v2116
        %v2118 = vrot.slane %v2085, 1
        %v2119 = vsel %vm2086, %v2116, %v2118
        %2120 = vrot.lane.b32.xlu0 %v2089, 8
        %v2121 = vpop.permute.xlu0 %2120
        %2122 = vrot.lane.b32.xlu0 %v2091, 8
        %v2123 = vpop.permute.xlu0 %2122
        %2124 = vrot.lane.b32.xlu0 %v2093, 8
        %v2125 = vpop.permute.xlu0 %2124
        %2126 = vrot.lane.b32.xlu0 %v2095, 8
        %v2127 = vpop.permute.xlu0 %2126
        %2128 = vrot.lane.b32.xlu0 %v2097, 8
        %v2129 = vpop.permute.xlu0 %2128
        %2130 = vrot.lane.b32.xlu0 %v2099, 8
        %v2131 = vpop.permute.xlu0 %2130
        %2132 = vrot.lane.b32.xlu0 %v2101, 8
        %v2133 = vpop.permute.xlu0 %2132
        %2134 = vrot.lane.b32.xlu0 %v2103, 8
        %v2135 = vpop.permute.xlu0 %2134
        %2136 = vrot.lane.b32.xlu0 %v2105, 8
        %v2137 = vpop.permute.xlu0 %2136
        %2138 = vrot.lane.b32.xlu0 %v2107, 8
        %v2139 = vpop.permute.xlu0 %2138
        %2140 = vrot.lane.b32.xlu0 %v2109, 8
        %v2141 = vpop.permute.xlu0 %2140
        %2142 = vrot.lane.b32.xlu0 %v2111, 8
        %v2143 = vpop.permute.xlu0 %2142
        %2144 = vrot.lane.b32.xlu0 %v2113, 8
        %v2145 = vpop.permute.xlu0 %2144
        %2146 = vrot.lane.b32.xlu0 %v2115, 8
        %v2147 = vpop.permute.xlu0 %2146
        %2148 = vrot.lane.b32.xlu0 %v2117, 8
        %v2149 = vpop.permute.xlu0 %2148
        %2150 = vrot.lane.b32.xlu0 %v2119, 8
        %v2151 = vpop.permute.xlu0 %2150
        %v2184 = vunpack.c.l.b16 %v1545
        %v2185 = vunpack.c.l.b16 %v1546
        %v2186 = vunpack.c.l.b16 %v1547
        %v2187 = vunpack.c.l.b16 %v1548
        %v2188 = vunpack.c.l.b16 %v1549
        %v2189 = vunpack.c.l.b16 %v1550
        %v2190 = vunpack.c.l.b16 %v1551
        %v2191 = vunpack.c.l.b16 %v1552
        %v2192 = vunpack.c.l.b16 %v1553
        %v2193 = vunpack.c.l.b16 %v1554
        %v2194 = vunpack.c.l.b16 %v1555
        %v2195 = vunpack.c.l.b16 %v1556
        %v2196 = vunpack.c.l.b16 %v1557
        %v2197 = vunpack.c.l.b16 %v1558
        %v2198 = vunpack.c.l.b16 %v1559
        %v2199 = vunpack.c.l.b16 %v1560
        %v2200 = vunpack.c.l.b16 %v1561
        %v2201 = vunpack.c.l.b16 %v1562
        %v2202 = vunpack.c.l.b16 %v1563
        %v2203 = vunpack.c.l.b16 %v1564
        %v2204 = vunpack.c.l.b16 %v1565
        %v2205 = vunpack.c.l.b16 %v1566
        %v2206 = vunpack.c.l.b16 %v1567
        %v2207 = vunpack.c.l.b16 %v1568
        %v2208 = vunpack.c.l.b16 %v1569
        %v2209 = vunpack.c.l.b16 %v1570
        %v2210 = vunpack.c.l.b16 %v1571
        %v2211 = vunpack.c.l.b16 %v1572
        %v2212 = vunpack.c.l.b16 %v1573
        %v2213 = vunpack.c.l.b16 %v1574
        %v2214 = vunpack.c.l.b16 %v1575
        %v2215 = vunpack.c.l.b16 %v1576
        %v2216 = vpack.c.b16 %v2185, %v2184
        %v2217 = vpack.c.b16 %v2187, %v2186
        %v2218 = vpack.c.b16 %v2189, %v2188
        %v2219 = vpack.c.b16 %v2191, %v2190
        %v2220 = vpack.c.b16 %v2193, %v2192
        %v2221 = vpack.c.b16 %v2195, %v2194
        %v2222 = vpack.c.b16 %v2197, %v2196
        %v2223 = vpack.c.b16 %v2199, %v2198
        %v2224 = vpack.c.b16 %v2201, %v2200
        %v2225 = vpack.c.b16 %v2203, %v2202
        %v2226 = vpack.c.b16 %v2205, %v2204
        %v2227 = vpack.c.b16 %v2207, %v2206
        %v2228 = vpack.c.b16 %v2209, %v2208
        %v2229 = vpack.c.b16 %v2211, %v2210
        %v2230 = vpack.c.b16 %v2213, %v2212
        %v2231 = vpack.c.b16 %v2215, %v2214
        %2232 = vrot.lane.b32.xlu0 %v2216, 12
        %v2233 = vpop.permute.xlu0 %2232
        %2234 = vrot.lane.b32.xlu0 %v2217, 12
        %v2235 = vpop.permute.xlu0 %2234
        %2236 = vrot.lane.b32.xlu0 %v2218, 12
        %v2237 = vpop.permute.xlu0 %2236
        %2238 = vrot.lane.b32.xlu0 %v2219, 12
        %v2239 = vpop.permute.xlu0 %2238
        %2240 = vrot.lane.b32.xlu0 %v2220, 12
        %v2241 = vpop.permute.xlu0 %2240
        %2242 = vrot.lane.b32.xlu0 %v2221, 12
        %v2243 = vpop.permute.xlu0 %2242
        %2244 = vrot.lane.b32.xlu0 %v2222, 12
        %v2245 = vpop.permute.xlu0 %2244
        %2246 = vrot.lane.b32.xlu0 %v2223, 12
        %v2247 = vpop.permute.xlu0 %2246
        %2248 = vrot.lane.b32.xlu0 %v2224, 12
        %v2249 = vpop.permute.xlu0 %2248
        %2250 = vrot.lane.b32.xlu0 %v2225, 12
        %v2251 = vpop.permute.xlu0 %2250
        %2252 = vrot.lane.b32.xlu0 %v2226, 12
        %v2253 = vpop.permute.xlu0 %2252
        %2254 = vrot.lane.b32.xlu0 %v2227, 12
        %v2255 = vpop.permute.xlu0 %2254
        %2256 = vrot.lane.b32.xlu0 %v2228, 12
        %v2257 = vpop.permute.xlu0 %2256
        %2258 = vrot.lane.b32.xlu0 %v2229, 12
        %v2259 = vpop.permute.xlu0 %2258
        %2260 = vrot.lane.b32.xlu0 %v2230, 12
        %v2261 = vpop.permute.xlu0 %2260
        %2262 = vrot.lane.b32.xlu0 %v2231, 12
        %v2263 = vpop.permute.xlu0 %2262
        %v2266 = vunpack.c.l.b16 %v923
        %v2267 = vunpack.c.l.b16 %v924
        %v2268 = vpack.c.b16 %v2266, %v1820
        %v2269 = vpack.c.b16 %v2267, %v2267
        %v2271 = vshll.u32 %v2268, 16
        %v2273 = vrot.slane %v2271, 1
        %v2274 = vsel %vm1838, %v1965, %v2273
        %v2275 = vshrl.u32 %v2268, 16
        %v2277 = vor.u32 %v2275, %v2273
        %v2279 = vshll.u32 %v2269, 16
        %v2281 = vrot.slane %v2279, 1
        %v2282 = vsel %vm1838, %v2277, %v2281
        %2283 = vrot.lane.b32.xlu0 %v1858, 16
        %v2284 = vpop.permute.xlu0 %2283
        %2285 = vrot.lane.b32.xlu0 %v1866, 16
        %v2286 = vpop.permute.xlu0 %2285
        %2287 = vrot.lane.b32.xlu0 %v1874, 16
        %v2288 = vpop.permute.xlu0 %2287
        %2289 = vrot.lane.b32.xlu0 %v1882, 16
        %v2290 = vpop.permute.xlu0 %2289
        %2291 = vrot.lane.b32.xlu0 %v1890, 16
        %v2292 = vpop.permute.xlu0 %2291
        %2293 = vrot.lane.b32.xlu0 %v1898, 16
        %v2294 = vpop.permute.xlu0 %2293
        %2295 = vrot.lane.b32.xlu0 %v1906, 16
        %v2296 = vpop.permute.xlu0 %2295
        %2297 = vrot.lane.b32.xlu0 %v1914, 16
        %v2298 = vpop.permute.xlu0 %2297
        %2299 = vrot.lane.b32.xlu0 %v1922, 16
        %v2300 = vpop.permute.xlu0 %2299
        %2301 = vrot.lane.b32.xlu0 %v1930, 16
        %v2302 = vpop.permute.xlu0 %2301
        %2303 = vrot.lane.b32.xlu0 %v1938, 16
        %v2304 = vpop.permute.xlu0 %2303
        %2305 = vrot.lane.b32.xlu0 %v1946, 16
        %v2306 = vpop.permute.xlu0 %2305
        %2307 = vrot.lane.b32.xlu0 %v1954, 16
        %v2308 = vpop.permute.xlu0 %2307
        %2309 = vrot.lane.b32.xlu0 %v1962, 16
        %v2310 = vpop.permute.xlu0 %2309
        %2311 = vrot.lane.b32.xlu0 %v2274, 16
        %v2312 = vpop.permute.xlu0 %2311
        %2313 = vrot.lane.b32.xlu0 %v2282, 16
        %v2314 = vpop.permute.xlu0 %2313
        %v2348 = vunpack.c.l.b16 %v1577
        %v2349 = vunpack.c.l.b16 %v1578
        %v2350 = vunpack.c.l.b16 %v1579
        %v2351 = vunpack.c.l.b16 %v1580
        %v2352 = vunpack.c.l.b16 %v1581
        %v2353 = vunpack.c.l.b16 %v1582
        %v2354 = vunpack.c.l.b16 %v1583
        %v2355 = vunpack.c.l.b16 %v1584
        %v2356 = vunpack.c.l.b16 %v1585
        %v2357 = vunpack.c.l.b16 %v1586
        %v2358 = vunpack.c.l.b16 %v1587
        %v2359 = vunpack.c.l.b16 %v1588
        %v2360 = vunpack.c.l.b16 %v1589
        %v2361 = vunpack.c.l.b16 %v1590
        %v2362 = vunpack.c.l.b16 %v1591
        %v2363 = vunpack.c.l.b16 %v1592
        %v2364 = vunpack.c.l.b16 %v1593
        %v2365 = vunpack.c.l.b16 %v1594
        %v2366 = vunpack.c.l.b16 %v1595
        %v2367 = vunpack.c.l.b16 %v1596
        %v2368 = vunpack.c.l.b16 %v1597
        %v2369 = vunpack.c.l.b16 %v1598
        %v2370 = vunpack.c.l.b16 %v1599
        %v2371 = vunpack.c.l.b16 %v1600
        %v2372 = vunpack.c.l.b16 %v1601
        %v2373 = vunpack.c.l.b16 %v1602
        %v2374 = vunpack.c.l.b16 %v1603
        %v2375 = vunpack.c.l.b16 %v1604
        %v2376 = vunpack.c.l.b16 %v1605
        %v2377 = vunpack.c.l.b16 %v1606
        %v2378 = vunpack.c.l.b16 %v1607
        %v2379 = vunpack.c.l.b16 %v1608
        %v2380 = vunpack.c.l.b16 %v1609
        %v2381 = vpack.c.b16 %v2349, %v2348
        %v2382 = vpack.c.b16 %v2351, %v2350
        %v2383 = vpack.c.b16 %v2353, %v2352
        %v2384 = vpack.c.b16 %v2355, %v2354
        %v2385 = vpack.c.b16 %v2357, %v2356
        %v2386 = vpack.c.b16 %v2359, %v2358
        %v2387 = vpack.c.b16 %v2361, %v2360
        %v2388 = vpack.c.b16 %v2363, %v2362
        %v2389 = vpack.c.b16 %v2365, %v2364
        %v2390 = vpack.c.b16 %v2367, %v2366
        %v2391 = vpack.c.b16 %v2369, %v2368
        %v2392 = vpack.c.b16 %v2371, %v2370
        %v2393 = vpack.c.b16 %v2373, %v2372
        %v2394 = vpack.c.b16 %v2375, %v2374
        %v2395 = vpack.c.b16 %v2377, %v2376
        %v2396 = vpack.c.b16 %v2379, %v2378
        %v2397 = vpack.c.b16 %v2380, %v2380
        %v2398 = vrot.slane %v2381, 1
        %v2399 = vrot.slane %v2382, 1
        %v2400 = vsel %vm2086, %v2398, %v2399
        %v2401 = vrot.slane %v2383, 1
        %v2402 = vsel %vm2086, %v2399, %v2401
        %v2403 = vrot.slane %v2384, 1
        %v2404 = vsel %vm2086, %v2401, %v2403
        %v2405 = vrot.slane %v2385, 1
        %v2406 = vsel %vm2086, %v2403, %v2405
        %v2407 = vrot.slane %v2386, 1
        %v2408 = vsel %vm2086, %v2405, %v2407
        %v2409 = vrot.slane %v2387, 1
        %v2410 = vsel %vm2086, %v2407, %v2409
        %v2411 = vrot.slane %v2388, 1
        %v2412 = vsel %vm2086, %v2409, %v2411
        %v2413 = vrot.slane %v2389, 1
        %v2414 = vsel %vm2086, %v2411, %v2413
        %v2415 = vrot.slane %v2390, 1
        %v2416 = vsel %vm2086, %v2413, %v2415
        %v2417 = vrot.slane %v2391, 1
        %v2418 = vsel %vm2086, %v2415, %v2417
        %v2419 = vrot.slane %v2392, 1
        %v2420 = vsel %vm2086, %v2417, %v2419
        %v2421 = vrot.slane %v2393, 1
        %v2422 = vsel %vm2086, %v2419, %v2421
        %v2423 = vrot.slane %v2394, 1
        %v2424 = vsel %vm2086, %v2421, %v2423
        %v2425 = vrot.slane %v2395, 1
        %v2426 = vsel %vm2086, %v2423, %v2425
        %v2427 = vrot.slane %v2396, 1
        %v2428 = vsel %vm2086, %v2425, %v2427
        %v2429 = vrot.slane %v2397, 1
        %v2430 = vsel %vm2086, %v2427, %v2429
        %2431 = vrot.lane.b32.xlu0 %v2400, 20
        %v2432 = vpop.permute.xlu0 %2431
        %2433 = vrot.lane.b32.xlu0 %v2402, 20
        %v2434 = vpop.permute.xlu0 %2433
        %2435 = vrot.lane.b32.xlu0 %v2404, 20
        %v2436 = vpop.permute.xlu0 %2435
        %2437 = vrot.lane.b32.xlu0 %v2406, 20
        %v2438 = vpop.permute.xlu0 %2437
        %2439 = vrot.lane.b32.xlu0 %v2408, 20
        %v2440 = vpop.permute.xlu0 %2439
        %2441 = vrot.lane.b32.xlu0 %v2410, 20
        %v2442 = vpop.permute.xlu0 %2441
        %2443 = vrot.lane.b32.xlu0 %v2412, 20
        %v2444 = vpop.permute.xlu0 %2443
        %2445 = vrot.lane.b32.xlu0 %v2414, 20
        %v2446 = vpop.permute.xlu0 %2445
        %2447 = vrot.lane.b32.xlu0 %v2416, 20
        %v2448 = vpop.permute.xlu0 %2447
        %2449 = vrot.lane.b32.xlu0 %v2418, 20
        %v2450 = vpop.permute.xlu0 %2449
        %2451 = vrot.lane.b32.xlu0 %v2420, 20
        %v2452 = vpop.permute.xlu0 %2451
        %2453 = vrot.lane.b32.xlu0 %v2422, 20
        %v2454 = vpop.permute.xlu0 %2453
        %2455 = vrot.lane.b32.xlu0 %v2424, 20
        %v2456 = vpop.permute.xlu0 %2455
        %2457 = vrot.lane.b32.xlu0 %v2426, 20
        %v2458 = vpop.permute.xlu0 %2457
        %2459 = vrot.lane.b32.xlu0 %v2428, 20
        %v2460 = vpop.permute.xlu0 %2459
        %2461 = vrot.lane.b32.xlu0 %v2430, 20
        %v2462 = vpop.permute.xlu0 %2461
        %v2495 = vunpack.c.l.b16 %v1610
        %v2496 = vunpack.c.l.b16 %v1611
        %v2497 = vunpack.c.l.b16 %v1612
        %v2498 = vunpack.c.l.b16 %v1613
        %v2499 = vunpack.c.l.b16 %v1614
        %v2500 = vunpack.c.l.b16 %v1615
        %v2501 = vunpack.c.l.b16 %v1616
        %v2502 = vunpack.c.l.b16 %v1617
        %v2503 = vunpack.c.l.b16 %v1618
        %v2504 = vunpack.c.l.b16 %v1619
        %v2505 = vunpack.c.l.b16 %v1620
        %v2506 = vunpack.c.l.b16 %v1621
        %v2507 = vunpack.c.l.b16 %v1622
        %v2508 = vunpack.c.l.b16 %v1623
        %v2509 = vunpack.c.l.b16 %v1624
        %v2510 = vunpack.c.l.b16 %v1625
        %v2511 = vunpack.c.l.b16 %v1626
        %v2512 = vunpack.c.l.b16 %v1627
        %v2513 = vunpack.c.l.b16 %v1628
        %v2514 = vunpack.c.l.b16 %v1629
        %v2515 = vunpack.c.l.b16 %v1630
        %v2516 = vunpack.c.l.b16 %v1631
        %v2517 = vunpack.c.l.b16 %v1632
        %v2518 = vunpack.c.l.b16 %v1633
        %v2519 = vunpack.c.l.b16 %v1634
        %v2520 = vunpack.c.l.b16 %v1635
        %v2521 = vunpack.c.l.b16 %v1636
        %v2522 = vunpack.c.l.b16 %v1637
        %v2523 = vunpack.c.l.b16 %v1638
        %v2524 = vunpack.c.l.b16 %v1639
        %v2525 = vunpack.c.l.b16 %v1640
        %v2526 = vunpack.c.l.b16 %v1641
        %v2527 = vpack.c.b16 %v2496, %v2495
        %v2528 = vpack.c.b16 %v2498, %v2497
        %v2529 = vpack.c.b16 %v2500, %v2499
        %v2530 = vpack.c.b16 %v2502, %v2501
        %v2531 = vpack.c.b16 %v2504, %v2503
        %v2532 = vpack.c.b16 %v2506, %v2505
        %v2533 = vpack.c.b16 %v2508, %v2507
        %v2534 = vpack.c.b16 %v2510, %v2509
        %v2535 = vpack.c.b16 %v2512, %v2511
        %v2536 = vpack.c.b16 %v2514, %v2513
        %v2537 = vpack.c.b16 %v2516, %v2515
        %v2538 = vpack.c.b16 %v2518, %v2517
        %v2539 = vpack.c.b16 %v2520, %v2519
        %v2540 = vpack.c.b16 %v2522, %v2521
        %v2541 = vpack.c.b16 %v2524, %v2523
        %v2542 = vpack.c.b16 %v2526, %v2525
        %2543 = vrot.lane.b32.xlu0 %v2527, 24
        %v2544 = vpop.permute.xlu0 %2543
        %2545 = vrot.lane.b32.xlu0 %v2528, 24
        %v2546 = vpop.permute.xlu0 %2545
        %2547 = vrot.lane.b32.xlu0 %v2529, 24
        %v2548 = vpop.permute.xlu0 %2547
        %2549 = vrot.lane.b32.xlu0 %v2530, 24
        %v2550 = vpop.permute.xlu0 %2549
        %2551 = vrot.lane.b32.xlu0 %v2531, 24
        %v2552 = vpop.permute.xlu0 %2551
        %2553 = vrot.lane.b32.xlu0 %v2532, 24
        %v2554 = vpop.permute.xlu0 %2553
        %2555 = vrot.lane.b32.xlu0 %v2533, 24
        %v2556 = vpop.permute.xlu0 %2555
        %2557 = vrot.lane.b32.xlu0 %v2534, 24
        %v2558 = vpop.permute.xlu0 %2557
        %2559 = vrot.lane.b32.xlu0 %v2535, 24
        %v2560 = vpop.permute.xlu0 %2559
        %2561 = vrot.lane.b32.xlu0 %v2536, 24
        %v2562 = vpop.permute.xlu0 %2561
        %2563 = vrot.lane.b32.xlu0 %v2537, 24
        %v2564 = vpop.permute.xlu0 %2563
        %2565 = vrot.lane.b32.xlu0 %v2538, 24
        %v2566 = vpop.permute.xlu0 %2565
        %2567 = vrot.lane.b32.xlu0 %v2539, 24
        %v2568 = vpop.permute.xlu0 %2567
        %2569 = vrot.lane.b32.xlu0 %v2540, 24
        %v2570 = vpop.permute.xlu0 %2569
        %2571 = vrot.lane.b32.xlu0 %v2541, 24
        %v2572 = vpop.permute.xlu0 %2571
        %2573 = vrot.lane.b32.xlu0 %v2542, 24
        %v2574 = vpop.permute.xlu0 %2573
        %v2577 = vunpack.c.l.b16 %v925
        %v2578 = vunpack.c.l.b16 %v926
        %v2579 = vpack.c.b16 %v2577, %v2267
        %v2580 = vpack.c.b16 %v2578, %v2578
        %v2582 = vshll.u32 %v2579, 16
        %v2584 = vrot.slane %v2582, 1
        %v2585 = vsel %vm1838, %v2277, %v2584
        %v2586 = vshrl.u32 %v2579, 16
        %v2588 = vor.u32 %v2586, %v2584
        %v2590 = vshll.u32 %v2580, 16
        %v2592 = vrot.slane %v2590, 1
        %v2593 = vsel %vm1838, %v2588, %v2592
        %2594 = vrot.lane.b32.xlu0 %v1866, 28
        %v2595 = vpop.permute.xlu0 %2594
        %2596 = vrot.lane.b32.xlu0 %v1874, 28
        %v2597 = vpop.permute.xlu0 %2596
        %2598 = vrot.lane.b32.xlu0 %v1882, 28
        %v2599 = vpop.permute.xlu0 %2598
        %2600 = vrot.lane.b32.xlu0 %v1890, 28
        %v2601 = vpop.permute.xlu0 %2600
        %2602 = vrot.lane.b32.xlu0 %v1898, 28
        %v2603 = vpop.permute.xlu0 %2602
        %2604 = vrot.lane.b32.xlu0 %v1906, 28
        %v2605 = vpop.permute.xlu0 %2604
        %2606 = vrot.lane.b32.xlu0 %v1914, 28
        %v2607 = vpop.permute.xlu0 %2606
        %2608 = vrot.lane.b32.xlu0 %v1922, 28
        %v2609 = vpop.permute.xlu0 %2608
        %2610 = vrot.lane.b32.xlu0 %v1930, 28
        %v2611 = vpop.permute.xlu0 %2610
        %2612 = vrot.lane.b32.xlu0 %v1938, 28
        %v2613 = vpop.permute.xlu0 %2612
        %2614 = vrot.lane.b32.xlu0 %v1946, 28
        %v2615 = vpop.permute.xlu0 %2614
        %2616 = vrot.lane.b32.xlu0 %v1954, 28
        %v2617 = vpop.permute.xlu0 %2616
        %2618 = vrot.lane.b32.xlu0 %v1962, 28
        %v2619 = vpop.permute.xlu0 %2618
        %2620 = vrot.lane.b32.xlu0 %v2274, 28
        %v2621 = vpop.permute.xlu0 %2620
        %2622 = vrot.lane.b32.xlu0 %v2585, 28
        %v2623 = vpop.permute.xlu0 %2622
        %2624 = vrot.lane.b32.xlu0 %v2593, 28
        %v2625 = vpop.permute.xlu0 %2624
        %v2659 = vunpack.c.l.b16 %v1642
        %v2660 = vunpack.c.l.b16 %v1643
        %v2661 = vunpack.c.l.b16 %v1644
        %v2662 = vunpack.c.l.b16 %v1645
        %v2663 = vunpack.c.l.b16 %v1646
        %v2664 = vunpack.c.l.b16 %v1647
        %v2665 = vunpack.c.l.b16 %v1648
        %v2666 = vunpack.c.l.b16 %v1649
        %v2667 = vunpack.c.l.b16 %v1650
        %v2668 = vunpack.c.l.b16 %v1651
        %v2669 = vunpack.c.l.b16 %v1652
        %v2670 = vunpack.c.l.b16 %v1653
        %v2671 = vunpack.c.l.b16 %v1654
        %v2672 = vunpack.c.l.b16 %v1655
        %v2673 = vunpack.c.l.b16 %v1656
        %v2674 = vunpack.c.l.b16 %v1657
        %v2675 = vunpack.c.l.b16 %v1658
        %v2676 = vunpack.c.l.b16 %v1659
        %v2677 = vunpack.c.l.b16 %v1660
        %v2678 = vunpack.c.l.b16 %v1661
        %v2679 = vunpack.c.l.b16 %v1662
        %v2680 = vunpack.c.l.b16 %v1663
        %v2681 = vunpack.c.l.b16 %v1664
        %v2682 = vunpack.c.l.b16 %v1665
        %v2683 = vunpack.c.l.b16 %v1666
        %v2684 = vunpack.c.l.b16 %v1667
        %v2685 = vunpack.c.l.b16 %v1668
        %v2686 = vunpack.c.l.b16 %v1669
        %v2687 = vunpack.c.l.b16 %v1670
        %v2688 = vunpack.c.l.b16 %v1671
        %v2689 = vunpack.c.l.b16 %v1672
        %v2690 = vunpack.c.l.b16 %v1673
        %v2691 = vunpack.c.l.b16 %v1674
        %v2692 = vpack.c.b16 %v2660, %v2659
        %v2693 = vpack.c.b16 %v2662, %v2661
        %v2694 = vpack.c.b16 %v2664, %v2663
        %v2695 = vpack.c.b16 %v2666, %v2665
        %v2696 = vpack.c.b16 %v2668, %v2667
        %v2697 = vpack.c.b16 %v2670, %v2669
        %v2698 = vpack.c.b16 %v2672, %v2671
        %v2699 = vpack.c.b16 %v2674, %v2673
        %v2700 = vpack.c.b16 %v2676, %v2675
        %v2701 = vpack.c.b16 %v2678, %v2677
        %v2702 = vpack.c.b16 %v2680, %v2679
        %v2703 = vpack.c.b16 %v2682, %v2681
        %v2704 = vpack.c.b16 %v2684, %v2683
        %v2705 = vpack.c.b16 %v2686, %v2685
        %v2706 = vpack.c.b16 %v2688, %v2687
        %v2707 = vpack.c.b16 %v2690, %v2689
        %v2708 = vpack.c.b16 %v2691, %v2691
        %v2709 = vrot.slane %v2692, 1
        %v2710 = vrot.slane %v2693, 1
        %v2711 = vsel %vm2086, %v2709, %v2710
        %v2712 = vrot.slane %v2694, 1
        %v2713 = vsel %vm2086, %v2710, %v2712
        %v2714 = vrot.slane %v2695, 1
        %v2715 = vsel %vm2086, %v2712, %v2714
        %v2716 = vrot.slane %v2696, 1
        %v2717 = vsel %vm2086, %v2714, %v2716
        %v2718 = vrot.slane %v2697, 1
        %v2719 = vsel %vm2086, %v2716, %v2718
        %v2720 = vrot.slane %v2698, 1
        %v2721 = vsel %vm2086, %v2718, %v2720
        %v2722 = vrot.slane %v2699, 1
        %v2723 = vsel %vm2086, %v2720, %v2722
        %v2724 = vrot.slane %v2700, 1
        %v2725 = vsel %vm2086, %v2722, %v2724
        %v2726 = vrot.slane %v2701, 1
        %v2727 = vsel %vm2086, %v2724, %v2726
        %v2728 = vrot.slane %v2702, 1
        %v2729 = vsel %vm2086, %v2726, %v2728
        %v2730 = vrot.slane %v2703, 1
        %v2731 = vsel %vm2086, %v2728, %v2730
        %v2732 = vrot.slane %v2704, 1
        %v2733 = vsel %vm2086, %v2730, %v2732
        %v2734 = vrot.slane %v2705, 1
        %v2735 = vsel %vm2086, %v2732, %v2734
        %v2736 = vrot.slane %v2706, 1
        %v2737 = vsel %vm2086, %v2734, %v2736
        %v2738 = vrot.slane %v2707, 1
        %v2739 = vsel %vm2086, %v2736, %v2738
        %v2740 = vrot.slane %v2708, 1
        %v2741 = vsel %vm2086, %v2738, %v2740
        %2742 = vrot.lane.b32.xlu0 %v2711, 32
        %v2743 = vpop.permute.xlu0 %2742
        %2744 = vrot.lane.b32.xlu0 %v2713, 32
        %v2745 = vpop.permute.xlu0 %2744
        %2746 = vrot.lane.b32.xlu0 %v2715, 32
        %v2747 = vpop.permute.xlu0 %2746
        %2748 = vrot.lane.b32.xlu0 %v2717, 32
        %v2749 = vpop.permute.xlu0 %2748
        %2750 = vrot.lane.b32.xlu0 %v2719, 32
        %v2751 = vpop.permute.xlu0 %2750
        %2752 = vrot.lane.b32.xlu0 %v2721, 32
        %v2753 = vpop.permute.xlu0 %2752
        %2754 = vrot.lane.b32.xlu0 %v2723, 32
        %v2755 = vpop.permute.xlu0 %2754
        %2756 = vrot.lane.b32.xlu0 %v2725, 32
        %v2757 = vpop.permute.xlu0 %2756
        %2758 = vrot.lane.b32.xlu0 %v2727, 32
        %v2759 = vpop.permute.xlu0 %2758
        %2760 = vrot.lane.b32.xlu0 %v2729, 32
        %v2761 = vpop.permute.xlu0 %2760
        %2762 = vrot.lane.b32.xlu0 %v2731, 32
        %v2763 = vpop.permute.xlu0 %2762
        %2764 = vrot.lane.b32.xlu0 %v2733, 32
        %v2765 = vpop.permute.xlu0 %2764
        %2766 = vrot.lane.b32.xlu0 %v2735, 32
        %v2767 = vpop.permute.xlu0 %2766
        %2768 = vrot.lane.b32.xlu0 %v2737, 32
        %v2769 = vpop.permute.xlu0 %2768
        %2770 = vrot.lane.b32.xlu0 %v2739, 32
        %v2771 = vpop.permute.xlu0 %2770
        %2772 = vrot.lane.b32.xlu0 %v2741, 32
        %v2773 = vpop.permute.xlu0 %2772
        %vm2774 = vcmask 31744
        %v2777 = vsel %vm2774, %v1739, %v1972
        %v2780 = vsel %vm2774, %v1740, %v1974
        %v2783 = vsel %vm2774, %v1741, %v1976
        %v2786 = vsel %vm2774, %v1742, %v1978
        %v2789 = vsel %vm2774, %v1743, %v1980
        %v2792 = vsel %vm2774, %v1744, %v1982
        %v2795 = vsel %vm2774, %v1745, %v1984
        %v2798 = vsel %vm2774, %v1746, %v1986
        %v2801 = vsel %vm2774, %v1747, %v1988
        %v2804 = vsel %vm2774, %v1748, %v1990
        %v2807 = vsel %vm2774, %v1749, %v1992
        %v2810 = vsel %vm2774, %v1750, %v1994
        %v2813 = vsel %vm2774, %v1751, %v1996
        %v2816 = vsel %vm2774, %v1752, %v1998
        %v2819 = vsel %vm2774, %v1753, %v2000
        %v2822 = vsel %vm2774, %v1754, %v2002
        %vm2823 = vcmask 64512
        %v2825 = vsel %vm2823, %v2777, %v2121
        %v2827 = vsel %vm2823, %v2780, %v2123
        %v2829 = vsel %vm2823, %v2783, %v2125
        %v2831 = vsel %vm2823, %v2786, %v2127
        %v2833 = vsel %vm2823, %v2789, %v2129
        %v2835 = vsel %vm2823, %v2792, %v2131
        %v2837 = vsel %vm2823, %v2795, %v2133
        %v2839 = vsel %vm2823, %v2798, %v2135
        %v2841 = vsel %vm2823, %v2801, %v2137
        %v2843 = vsel %vm2823, %v2804, %v2139
        %v2845 = vsel %vm2823, %v2807, %v2141
        %v2847 = vsel %vm2823, %v2810, %v2143
        %v2849 = vsel %vm2823, %v2813, %v2145
        %v2851 = vsel %vm2823, %v2816, %v2147
        %v2853 = vsel %vm2823, %v2819, %v2149
        %v2855 = vsel %vm2823, %v2822, %v2151
        %vm2856 = vcmask 97280
        %v2858 = vsel %vm2856, %v2825, %v2233
        %v2860 = vsel %vm2856, %v2827, %v2235
        %v2862 = vsel %vm2856, %v2829, %v2237
        %v2864 = vsel %vm2856, %v2831, %v2239
        %v2866 = vsel %vm2856, %v2833, %v2241
        %v2868 = vsel %vm2856, %v2835, %v2243
        %v2870 = vsel %vm2856, %v2837, %v2245
        %v2872 = vsel %vm2856, %v2839, %v2247
        %v2874 = vsel %vm2856, %v2841, %v2249
        %v2876 = vsel %vm2856, %v2843, %v2251
        %v2878 = vsel %vm2856, %v2845, %v2253
        %v2880 = vsel %vm2856, %v2847, %v2255
        %v2882 = vsel %vm2856, %v2849, %v2257
        %v2884 = vsel %vm2856, %v2851, %v2259
        %v2886 = vsel %vm2856, %v2853, %v2261
        %v2888 = vsel %vm2856, %v2855, %v2263
        %vm2889 = vcmask 130048
        %v2891 = vsel %vm2889, %v2858, %v2284
        %v2893 = vsel %vm2889, %v2860, %v2286
        %v2895 = vsel %vm2889, %v2862, %v2288
        %v2897 = vsel %vm2889, %v2864, %v2290
        %v2899 = vsel %vm2889, %v2866, %v2292
        %v2901 = vsel %vm2889, %v2868, %v2294
        %v2903 = vsel %vm2889, %v2870, %v2296
        %v2905 = vsel %vm2889, %v2872, %v2298
        %v2907 = vsel %vm2889, %v2874, %v2300
        %v2909 = vsel %vm2889, %v2876, %v2302
        %v2911 = vsel %vm2889, %v2878, %v2304
        %v2913 = vsel %vm2889, %v2880, %v2306
        %v2915 = vsel %vm2889, %v2882, %v2308
        %v2917 = vsel %vm2889, %v2884, %v2310
        %v2919 = vsel %vm2889, %v2886, %v2312
        %v2921 = vsel %vm2889, %v2888, %v2314
        %vm2922 = vcmask 162816
        %v2924 = vsel %vm2922, %v2891, %v2432
        %v2926 = vsel %vm2922, %v2893, %v2434
        %v2928 = vsel %vm2922, %v2895, %v2436
        %v2930 = vsel %vm2922, %v2897, %v2438
        %v2932 = vsel %vm2922, %v2899, %v2440
        %v2934 = vsel %vm2922, %v2901, %v2442
        %v2936 = vsel %vm2922, %v2903, %v2444
        %v2938 = vsel %vm2922, %v2905, %v2446
        %v2940 = vsel %vm2922, %v2907, %v2448
        %v2942 = vsel %vm2922, %v2909, %v2450
        %v2944 = vsel %vm2922, %v2911, %v2452
        %v2946 = vsel %vm2922, %v2913, %v2454
        %v2948 = vsel %vm2922, %v2915, %v2456
        %v2950 = vsel %vm2922, %v2917, %v2458
        %v2952 = vsel %vm2922, %v2919, %v2460
        %v2954 = vsel %vm2922, %v2921, %v2462
        %vm2955 = vcmask 195584
        %v2957 = vsel %vm2955, %v2924, %v2544
        %v2959 = vsel %vm2955, %v2926, %v2546
        %v2961 = vsel %vm2955, %v2928, %v2548
        %v2963 = vsel %vm2955, %v2930, %v2550
        %v2965 = vsel %vm2955, %v2932, %v2552
        %v2967 = vsel %vm2955, %v2934, %v2554
        %v2969 = vsel %vm2955, %v2936, %v2556
        %v2971 = vsel %vm2955, %v2938, %v2558
        %v2973 = vsel %vm2955, %v2940, %v2560
        %v2975 = vsel %vm2955, %v2942, %v2562
        %v2977 = vsel %vm2955, %v2944, %v2564
        %v2979 = vsel %vm2955, %v2946, %v2566
        %v2981 = vsel %vm2955, %v2948, %v2568
        %v2983 = vsel %vm2955, %v2950, %v2570
        %v2985 = vsel %vm2955, %v2952, %v2572
        %v2987 = vsel %vm2955, %v2954, %v2574
        %vm2988 = vcmask 228352
        %v2990 = vsel %vm2988, %v2957, %v2595
        %v2992 = vsel %vm2988, %v2959, %v2597
        %v2994 = vsel %vm2988, %v2961, %v2599
        %v2996 = vsel %vm2988, %v2963, %v2601
        %v2998 = vsel %vm2988, %v2965, %v2603
        %v3000 = vsel %vm2988, %v2967, %v2605
        %v3002 = vsel %vm2988, %v2969, %v2607
        %v3004 = vsel %vm2988, %v2971, %v2609
        %v3006 = vsel %vm2988, %v2973, %v2611
        %v3008 = vsel %vm2988, %v2975, %v2613
        %v3010 = vsel %vm2988, %v2977, %v2615
        %v3012 = vsel %vm2988, %v2979, %v2617
        %v3014 = vsel %vm2988, %v2981, %v2619
        %v3016 = vsel %vm2988, %v2983, %v2621
        %v3018 = vsel %vm2988, %v2985, %v2623
        %v3020 = vsel %vm2988, %v2987, %v2625
        %vm3021 = vcmask 261120
        %v3023 = vsel %vm3021, %v2990, %v2743
        %v3025 = vsel %vm3021, %v2992, %v2745
        %v3027 = vsel %vm3021, %v2994, %v2747
        %v3029 = vsel %vm3021, %v2996, %v2749
        %v3031 = vsel %vm3021, %v2998, %v2751
        %v3033 = vsel %vm3021, %v3000, %v2753
        %v3035 = vsel %vm3021, %v3002, %v2755
        %v3037 = vsel %vm3021, %v3004, %v2757
        %v3039 = vsel %vm3021, %v3006, %v2759
        %v3041 = vsel %vm3021, %v3008, %v2761
        %v3043 = vsel %vm3021, %v3010, %v2763
        %v3045 = vsel %vm3021, %v3012, %v2765
        %v3047 = vsel %vm3021, %v3014, %v2767
        %v3049 = vsel %vm3021, %v3016, %v2769
        %v3051 = vsel %vm3021, %v3018, %v2771
        %v3053 = vsel %vm3021, %v3020, %v2773
        %v3054 = vld [vmem:[%s1] sm:$0xf]
        %v3055 = vld [vmem:[%s1 + $0x4] sm:$0xf]
        %v3056 = vld [vmem:[%s1 + $0x8] sm:$0xf]
        %v3057 = vld [vmem:[%s1 + $0xc] sm:$0xf]
        %v3058 = vld [vmem:[%s1 + $0x10] sm:$0x3]
        %v3059 = vld [vmem:[%s2] sm:$0x1]
        %v3061 = vperm.slane %v3059, 0
        %v3068 = vunpack.c.l.b16 %v3054
        %v3069 = vunpack.c.l.b16 %v3055
        %v3070 = vunpack.c.l.b16 %v3056
        %v3071 = vunpack.c.l.b16 %v3057
        %v3072 = vunpack.c.l.b16 %v3058
        %v3073 = vpack.c.b16 %v3069, %v3068
        %v3074 = vpack.c.b16 %v3071, %v3070
        %v3075 = vpack.c.b16 %v3072, %v3072
        %vm3078 = vcmask 293888
        %v3079 = vsel %vm3078, %v3023, 0
        %v3081 = vsel %vm3078, %v3025, 0
        %v3083 = vsel %vm3078, %v3027, 0
        %v3085 = vsel %vm3078, %v3029, 0
        %v3087 = vsel %vm3078, %v3031, 0
        %v3089 = vsel %vm3078, %v3033, 0
        %v3091 = vsel %vm3078, %v3035, 0
        %v3093 = vsel %vm3078, %v3037, 0
        %v3095 = vsel %vm3078, %v3039, 0
        %v3097 = vsel %vm3078, %v3041, 0
        %v3099 = vsel %vm3078, %v3043, 0
        %v3101 = vsel %vm3078, %v3045, 0
        %v3103 = vsel %vm3078, %v3047, 0
        %v3105 = vsel %vm3078, %v3049, 0
        %v3107 = vsel %vm3078, %v3051, 0
        %v3109 = vsel %vm3078, %v3053, 0
        %vm3111 = vcmask 1041408
        %v3113 = vsel %vm3111, %v3075, 0
        %3115 = vmatpush.bf16.msra.mxu0 0
        %3116 = vmatpush.bf16.msra.mxu0 0
        %3117 = vmatpush.bf16.msra.mxu0 0
        %3118 = vmatpush.bf16.msra.mxu0 0
        %3119 = vmatpush.bf16.msra.mxu0 0
        %3120 = vmatpush.bf16.msra.mxu0 %v3113
        %3121 = vmatpush.bf16.msra.mxu0 %v3074
        %3122 = vmatpush.bf16.msra.mxu0 %v3073
        %3123 = vmatmul.bf16.gmra.mxu0 %v3079
        %v3124 = vpop.f32.mrf.mxu0
        %v3125 = vadd.f32 %v3061, %v3124
        %v3126 = vpop.f32.mrf.mxu0
        %v3127 = vadd.f32 %v3061, %v3126
        %3128 = vmatmul.bf16.gmra.mxu0 %v3081
        %v3129 = vpop.f32.mrf.mxu0
        %v3130 = vadd.f32 %v3061, %v3129
        %v3131 = vpop.f32.mrf.mxu0
        %v3132 = vadd.f32 %v3061, %v3131
        %3133 = vmatmul.bf16.gmra.mxu0 %v3083
        %v3134 = vpop.f32.mrf.mxu0
        %v3135 = vadd.f32 %v3061, %v3134
        %v3136 = vpop.f32.mrf.mxu0
        %v3137 = vadd.f32 %v3061, %v3136
        %3138 = vmatmul.bf16.gmra.mxu0 %v3085
        %v3139 = vpop.f32.mrf.mxu0
        %v3140 = vadd.f32 %v3061, %v3139
        %v3141 = vpop.f32.mrf.mxu0
        %v3142 = vadd.f32 %v3061, %v3141
        %3143 = vmatmul.bf16.gmra.mxu0 %v3087
        %v3144 = vpop.f32.mrf.mxu0
        %v3145 = vadd.f32 %v3061, %v3144
        %v3146 = vpop.f32.mrf.mxu0
        %v3147 = vadd.f32 %v3061, %v3146
        %3148 = vmatmul.bf16.gmra.mxu0 %v3089
        %v3149 = vpop.f32.mrf.mxu0
        %v3150 = vadd.f32 %v3061, %v3149
        %v3151 = vpop.f32.mrf.mxu0
        %v3152 = vadd.f32 %v3061, %v3151
        %3153 = vmatmul.bf16.gmra.mxu0 %v3091
        %v3154 = vpop.f32.mrf.mxu0
        %v3155 = vadd.f32 %v3061, %v3154
        %v3156 = vpop.f32.mrf.mxu0
        %v3157 = vadd.f32 %v3061, %v3156
        %3158 = vmatmul.bf16.gmra.mxu0 %v3093
        %v3159 = vpop.f32.mrf.mxu0
        %v3160 = vadd.f32 %v3061, %v3159
        %v3161 = vpop.f32.mrf.mxu0
        %v3162 = vadd.f32 %v3061, %v3161
        %3163 = vmatmul.bf16.gmra.mxu0 %v3095
        %v3164 = vpop.f32.mrf.mxu0
        %v3165 = vadd.f32 %v3061, %v3164
        %v3166 = vpop.f32.mrf.mxu0
        %v3167 = vadd.f32 %v3061, %v3166
        %3168 = vmatmul.bf16.gmra.mxu0 %v3097
        %v3169 = vpop.f32.mrf.mxu0
        %v3170 = vadd.f32 %v3061, %v3169
        %v3171 = vpop.f32.mrf.mxu0
        %v3172 = vadd.f32 %v3061, %v3171
        %3173 = vmatmul.bf16.gmra.mxu0 %v3099
        %v3174 = vpop.f32.mrf.mxu0
        %v3175 = vadd.f32 %v3061, %v3174
        %v3176 = vpop.f32.mrf.mxu0
        %v3177 = vadd.f32 %v3061, %v3176
        %3178 = vmatmul.bf16.gmra.mxu0 %v3101
        %v3179 = vpop.f32.mrf.mxu0
        %v3180 = vadd.f32 %v3061, %v3179
        %v3181 = vpop.f32.mrf.mxu0
        %v3182 = vadd.f32 %v3061, %v3181
        %3183 = vmatmul.bf16.gmra.mxu0 %v3103
        %v3184 = vpop.f32.mrf.mxu0
        %v3185 = vadd.f32 %v3061, %v3184
        %v3186 = vpop.f32.mrf.mxu0
        %v3187 = vadd.f32 %v3061, %v3186
        %3188 = vmatmul.bf16.gmra.mxu0 %v3105
        %v3189 = vpop.f32.mrf.mxu0
        %v3190 = vadd.f32 %v3061, %v3189
        %v3191 = vpop.f32.mrf.mxu0
        %v3192 = vadd.f32 %v3061, %v3191
        %3193 = vmatmul.bf16.gmra.mxu0 %v3107
        %v3194 = vpop.f32.mrf.mxu0
        %v3195 = vadd.f32 %v3061, %v3194
        %v3196 = vpop.f32.mrf.mxu0
        %v3197 = vadd.f32 %v3061, %v3196
        %3198 = vmatmul.bf16.gmra.mxu0 %v3109
        %v3199 = vpop.f32.mrf.mxu0
        %v3200 = vadd.f32 %v3061, %v3199
        %v3201 = vpop.f32.mrf.mxu0
        %v3202 = vadd.f32 %v3061, %v3201
        %3203 = vdwg.mxu0
        %v3204 = vmax.f32 %v3125, 0.0
        %v3205 = vmax.f32 %v3127, 0.0
        %v3206 = vmax.f32 %v3130, 0.0
        %v3207 = vmax.f32 %v3132, 0.0
        %v3208 = vmax.f32 %v3135, 0.0
        %v3209 = vmax.f32 %v3137, 0.0
        %v3210 = vmax.f32 %v3140, 0.0
        %v3211 = vmax.f32 %v3142, 0.0
        %v3212 = vmax.f32 %v3145, 0.0
        %v3213 = vmax.f32 %v3147, 0.0
        %v3214 = vmax.f32 %v3150, 0.0
        %v3215 = vmax.f32 %v3152, 0.0
        %v3216 = vmax.f32 %v3155, 0.0
        %v3217 = vmax.f32 %v3157, 0.0
        %v3218 = vmax.f32 %v3160, 0.0
        %v3219 = vmax.f32 %v3162, 0.0
        %v3220 = vmax.f32 %v3165, 0.0
        %v3221 = vmax.f32 %v3167, 0.0
        %v3222 = vmax.f32 %v3170, 0.0
        %v3223 = vmax.f32 %v3172, 0.0
        %v3224 = vmax.f32 %v3175, 0.0
        %v3225 = vmax.f32 %v3177, 0.0
        %v3226 = vmax.f32 %v3180, 0.0
        %v3227 = vmax.f32 %v3182, 0.0
        %v3228 = vmax.f32 %v3185, 0.0
        %v3229 = vmax.f32 %v3187, 0.0
        %v3230 = vmax.f32 %v3190, 0.0
        %v3231 = vmax.f32 %v3192, 0.0
        %v3232 = vmax.f32 %v3195, 0.0
        %v3233 = vmax.f32 %v3197, 0.0
        %v3234 = vmax.f32 %v3200, 0.0
        %v3235 = vmax.f32 %v3202, 0.0
        %v3236 = vpack.c.bf16 %v3204, %v3204
        %v3237 = vpack.c.bf16 %v3205, %v3205
        %v3238 = vpack.c.bf16 %v3206, %v3206
        %v3239 = vpack.c.bf16 %v3207, %v3207
        %v3240 = vpack.c.bf16 %v3208, %v3208
        %v3241 = vpack.c.bf16 %v3209, %v3209
        %v3242 = vpack.c.bf16 %v3210, %v3210
        %v3243 = vpack.c.bf16 %v3211, %v3211
        %v3244 = vpack.c.bf16 %v3212, %v3212
        %v3245 = vpack.c.bf16 %v3213, %v3213
        %v3246 = vpack.c.bf16 %v3214, %v3214
        %v3247 = vpack.c.bf16 %v3215, %v3215
        %v3248 = vpack.c.bf16 %v3216, %v3216
        %v3249 = vpack.c.bf16 %v3217, %v3217
        %v3250 = vpack.c.bf16 %v3218, %v3218
        %v3251 = vpack.c.bf16 %v3219, %v3219
        %v3252 = vpack.c.bf16 %v3220, %v3220
        %v3253 = vpack.c.bf16 %v3221, %v3221
        %v3254 = vpack.c.bf16 %v3222, %v3222
        %v3255 = vpack.c.bf16 %v3223, %v3223
        %v3256 = vpack.c.bf16 %v3224, %v3224
        %v3257 = vpack.c.bf16 %v3225, %v3225
        %v3258 = vpack.c.bf16 %v3226, %v3226
        %v3259 = vpack.c.bf16 %v3227, %v3227
        %v3260 = vpack.c.bf16 %v3228, %v3228
        %v3261 = vpack.c.bf16 %v3229, %v3229
        %v3262 = vpack.c.bf16 %v3230, %v3230
        %v3263 = vpack.c.bf16 %v3231, %v3231
        %v3264 = vpack.c.bf16 %v3232, %v3232
        %v3265 = vpack.c.bf16 %v3233, %v3233
        %v3266 = vpack.c.bf16 %v3234, %v3234
        %v3267 = vpack.c.bf16 %v3235, %v3235
        %vm3268 = vsmask.f32 4368
        %vm3269 = vmor %vm765, %vm3268
        %v3271 = vshrl.u32 %v3236, 16
        %v3273 = vrot.slane %v3271, 7
        %v3274 = vshll.u32 %v3236, 16
        %v3276 = vor.u32 %v3273, %v3274
        %v3277 = vrot.slane %v3273, 4
        %v3279 = vshrl.u32 %v3237, 16
        %v3281 = vrot.slane %v3279, 7
        %v3282 = vshll.u32 %v3237, 16
        %v3284 = vor.u32 %v3281, %v3282
        %v3285 = vsel %vm3269, %v3277, %v3284
        %v3286 = vrot.slane %v3281, 4
        %v3288 = vshrl.u32 %v3238, 16
        %v3290 = vrot.slane %v3288, 7
        %v3291 = vshll.u32 %v3238, 16
        %v3293 = vor.u32 %v3290, %v3291
        %v3294 = vsel %vm3269, %v3286, %v3293
        %v3295 = vrot.slane %v3290, 4
        %v3297 = vshrl.u32 %v3239, 16
        %v3299 = vrot.slane %v3297, 7
        %v3300 = vshll.u32 %v3239, 16
        %v3302 = vor.u32 %v3299, %v3300
        %v3303 = vsel %vm3269, %v3295, %v3302
        %v3304 = vrot.slane %v3299, 4
        %v3306 = vshrl.u32 %v3240, 16
        %v3308 = vrot.slane %v3306, 7
        %v3309 = vshll.u32 %v3240, 16
        %v3311 = vor.u32 %v3308, %v3309
        %v3312 = vsel %vm3269, %v3304, %v3311
        %v3313 = vrot.slane %v3308, 4
        %v3315 = vshrl.u32 %v3241, 16
        %v3317 = vrot.slane %v3315, 7
        %v3318 = vshll.u32 %v3241, 16
        %v3320 = vor.u32 %v3317, %v3318
        %v3321 = vsel %vm3269, %v3313, %v3320
        %v3322 = vrot.slane %v3317, 4
        %v3324 = vshrl.u32 %v3242, 16
        %v3326 = vrot.slane %v3324, 7
        %v3327 = vshll.u32 %v3242, 16
        %v3329 = vor.u32 %v3326, %v3327
        %v3330 = vsel %vm3269, %v3322, %v3329
        %v3331 = vrot.slane %v3326, 4
        %v3333 = vshrl.u32 %v3243, 16
        %v3335 = vrot.slane %v3333, 7
        %v3336 = vshll.u32 %v3243, 16
        %v3338 = vor.u32 %v3335, %v3336
        %v3339 = vsel %vm3269, %v3331, %v3338
        %v3340 = vrot.slane %v3335, 4
        %v3342 = vshrl.u32 %v3244, 16
        %v3344 = vrot.slane %v3342, 7
        %v3345 = vshll.u32 %v3244, 16
        %v3347 = vor.u32 %v3344, %v3345
        %v3348 = vsel %vm3269, %v3340, %v3347
        %v3349 = vrot.slane %v3344, 4
        %v3351 = vshrl.u32 %v3245, 16
        %v3353 = vrot.slane %v3351, 7
        %v3354 = vshll.u32 %v3245, 16
        %v3356 = vor.u32 %v3353, %v3354
        %v3357 = vsel %vm3269, %v3349, %v3356
        %v3358 = vrot.slane %v3353, 4
        %v3360 = vshrl.u32 %v3246, 16
        %v3362 = vrot.slane %v3360, 7
        %v3363 = vshll.u32 %v3246, 16
        %v3365 = vor.u32 %v3362, %v3363
        %v3366 = vsel %vm3269, %v3358, %v3365
        %v3367 = vrot.slane %v3362, 4
        %v3369 = vshrl.u32 %v3247, 16
        %v3371 = vrot.slane %v3369, 7
        %v3372 = vshll.u32 %v3247, 16
        %v3374 = vor.u32 %v3371, %v3372
        %v3375 = vsel %vm3269, %v3367, %v3374
        %v3376 = vrot.slane %v3371, 4
        %v3378 = vshrl.u32 %v3248, 16
        %v3380 = vrot.slane %v3378, 7
        %v3381 = vshll.u32 %v3248, 16
        %v3383 = vor.u32 %v3380, %v3381
        %v3384 = vsel %vm3269, %v3376, %v3383
        %v3385 = vrot.slane %v3380, 4
        %v3387 = vshrl.u32 %v3249, 16
        %v3389 = vrot.slane %v3387, 7
        %v3390 = vshll.u32 %v3249, 16
        %v3392 = vor.u32 %v3389, %v3390
        %v3393 = vsel %vm3269, %v3385, %v3392
        %v3394 = vrot.slane %v3389, 4
        %v3396 = vshrl.u32 %v3250, 16
        %v3398 = vrot.slane %v3396, 7
        %v3399 = vshll.u32 %v3250, 16
        %v3401 = vor.u32 %v3398, %v3399
        %v3402 = vsel %vm3269, %v3394, %v3401
        %v3403 = vrot.slane %v3398, 4
        %v3405 = vshrl.u32 %v3251, 16
        %v3407 = vrot.slane %v3405, 7
        %v3408 = vshll.u32 %v3251, 16
        %v3410 = vor.u32 %v3407, %v3408
        %v3411 = vsel %vm3269, %v3403, %v3410
        %v3412 = vrot.slane %v3407, 4
        %v3414 = vshrl.u32 %v3252, 16
        %v3416 = vrot.slane %v3414, 7
        %v3417 = vshll.u32 %v3252, 16
        %v3419 = vor.u32 %v3416, %v3417
        %v3420 = vsel %vm3269, %v3412, %v3419
        %v3421 = vrot.slane %v3416, 4
        %v3423 = vshrl.u32 %v3253, 16
        %v3425 = vrot.slane %v3423, 7
        %v3426 = vshll.u32 %v3253, 16
        %v3428 = vor.u32 %v3425, %v3426
        %v3429 = vsel %vm3269, %v3421, %v3428
        %v3430 = vrot.slane %v3425, 4
        %v3432 = vshrl.u32 %v3254, 16
        %v3434 = vrot.slane %v3432, 7
        %v3435 = vshll.u32 %v3254, 16
        %v3437 = vor.u32 %v3434, %v3435
        %v3438 = vsel %vm3269, %v3430, %v3437
        %v3439 = vrot.slane %v3434, 4
        %v3441 = vshrl.u32 %v3255, 16
        %v3443 = vrot.slane %v3441, 7
        %v3444 = vshll.u32 %v3255, 16
        %v3446 = vor.u32 %v3443, %v3444
        %v3447 = vsel %vm3269, %v3439, %v3446
        %v3448 = vrot.slane %v3443, 4
        %v3450 = vshrl.u32 %v3256, 16
        %v3452 = vrot.slane %v3450, 7
        %v3453 = vshll.u32 %v3256, 16
        %v3455 = vor.u32 %v3452, %v3453
        %v3456 = vsel %vm3269, %v3448, %v3455
        %v3457 = vrot.slane %v3452, 4
        %v3459 = vshrl.u32 %v3257, 16
        %v3461 = vrot.slane %v3459, 7
        %v3462 = vshll.u32 %v3257, 16
        %v3464 = vor.u32 %v3461, %v3462
        %v3465 = vsel %vm3269, %v3457, %v3464
        %v3466 = vrot.slane %v3461, 4
        %v3468 = vshrl.u32 %v3258, 16
        %v3470 = vrot.slane %v3468, 7
        %v3471 = vshll.u32 %v3258, 16
        %v3473 = vor.u32 %v3470, %v3471
        %v3474 = vsel %vm3269, %v3466, %v3473
        %v3475 = vrot.slane %v3470, 4
        %v3477 = vshrl.u32 %v3259, 16
        %v3479 = vrot.slane %v3477, 7
        %v3480 = vshll.u32 %v3259, 16
        %v3482 = vor.u32 %v3479, %v3480
        %v3483 = vsel %vm3269, %v3475, %v3482
        %v3484 = vrot.slane %v3479, 4
        %v3486 = vshrl.u32 %v3260, 16
        %v3488 = vrot.slane %v3486, 7
        %v3489 = vshll.u32 %v3260, 16
        %v3491 = vor.u32 %v3488, %v3489
        %v3492 = vsel %vm3269, %v3484, %v3491
        %v3493 = vrot.slane %v3488, 4
        %v3495 = vshrl.u32 %v3261, 16
        %v3497 = vrot.slane %v3495, 7
        %v3498 = vshll.u32 %v3261, 16
        %v3500 = vor.u32 %v3497, %v3498
        %v3501 = vsel %vm3269, %v3493, %v3500
        %v3502 = vrot.slane %v3497, 4
        %v3504 = vshrl.u32 %v3262, 16
        %v3506 = vrot.slane %v3504, 7
        %v3507 = vshll.u32 %v3262, 16
        %v3509 = vor.u32 %v3506, %v3507
        %v3510 = vsel %vm3269, %v3502, %v3509
        %v3511 = vrot.slane %v3506, 4
        %v3513 = vshrl.u32 %v3263, 16
        %v3515 = vrot.slane %v3513, 7
        %v3516 = vshll.u32 %v3263, 16
        %v3518 = vor.u32 %v3515, %v3516
        %v3519 = vsel %vm3269, %v3511, %v3518
        %v3520 = vrot.slane %v3515, 4
        %v3522 = vshrl.u32 %v3264, 16
        %v3524 = vrot.slane %v3522, 7
        %v3525 = vshll.u32 %v3264, 16
        %v3527 = vor.u32 %v3524, %v3525
        %v3528 = vsel %vm3269, %v3520, %v3527
        %v3529 = vrot.slane %v3524, 4
        %v3531 = vshrl.u32 %v3265, 16
        %v3533 = vrot.slane %v3531, 7
        %v3534 = vshll.u32 %v3265, 16
        %v3536 = vor.u32 %v3533, %v3534
        %v3537 = vsel %vm3269, %v3529, %v3536
        %v3538 = vrot.slane %v3533, 4
        %v3540 = vshrl.u32 %v3266, 16
        %v3542 = vrot.slane %v3540, 7
        %v3543 = vshll.u32 %v3266, 16
        %v3545 = vor.u32 %v3542, %v3543
        %v3546 = vsel %vm3269, %v3538, %v3545
        %v3547 = vrot.slane %v3542, 4
        %v3549 = vshrl.u32 %v3267, 16
        %v3551 = vrot.slane %v3549, 7
        %v3552 = vshll.u32 %v3267, 16
        %v3554 = vor.u32 %v3551, %v3552
        %v3555 = vsel %vm3269, %v3547, %v3554
        %v3556 = vrot.slane %v3551, 4
        %v3590 = vld [vmem:[#allocation2 + $0x8] sm:$0xf]
        %v3591 = vsel %vm772, %v3276, %v3590
        %3592 = vst [vmem:[#allocation2 + $0x8] sm:$0xf] %v3591
        %3593 = vst.msk [vmem:[#allocation2 + $0xc] sm:$0xf] %vm761, %v3285
        %3594 = vst.msk [vmem:[#allocation2 + $0x10] sm:$0xf] %vm761, %v3294
        %3595 = vst.msk [vmem:[#allocation2 + $0x14] sm:$0xf] %vm761, %v3303
        %3596 = vst.msk [vmem:[#allocation2 + $0x18] sm:$0xf] %vm761, %v3312
        %3597 = vst.msk [vmem:[#allocation2 + $0x1c] sm:$0xf] %vm761, %v3321
        %3598 = vst.msk [vmem:[#allocation2 + $0x20] sm:$0xf] %vm761, %v3330
        %3599 = vst.msk [vmem:[#allocation2 + $0x24] sm:$0xf] %vm761, %v3339
        %3600 = vst.msk [vmem:[#allocation2 + $0x28] sm:$0xf] %vm761, %v3348
        %3601 = vst.msk [vmem:[#allocation2 + $0x2c] sm:$0xf] %vm761, %v3357
        %3602 = vst.msk [vmem:[#allocation2 + $0x30] sm:$0xf] %vm761, %v3366
        %3603 = vst.msk [vmem:[#allocation2 + $0x34] sm:$0xf] %vm761, %v3375
        %3604 = vst.msk [vmem:[#allocation2 + $0x38] sm:$0xf] %vm761, %v3384
        %3605 = vst.msk [vmem:[#allocation2 + $0x3c] sm:$0xf] %vm761, %v3393
        %3606 = vst.msk [vmem:[#allocation2 + $0x40] sm:$0xf] %vm761, %v3402
        %3607 = vst.msk [vmem:[#allocation2 + $0x44] sm:$0xf] %vm761, %v3411
        %3608 = vst.msk [vmem:[#allocation2 + $0x48] sm:$0xf] %vm761, %v3420
        %3609 = vst.msk [vmem:[#allocation2 + $0x4c] sm:$0xf] %vm761, %v3429
        %3610 = vst.msk [vmem:[#allocation2 + $0x50] sm:$0xf] %vm761, %v3438
        %3611 = vst.msk [vmem:[#allocation2 + $0x54] sm:$0xf] %vm761, %v3447
        %3612 = vst.msk [vmem:[#allocation2 + $0x58] sm:$0xf] %vm761, %v3456
        %3613 = vst.msk [vmem:[#allocation2 + $0x5c] sm:$0xf] %vm761, %v3465
        %3614 = vst.msk [vmem:[#allocation2 + $0x60] sm:$0xf] %vm761, %v3474
        %3615 = vst.msk [vmem:[#allocation2 + $0x64] sm:$0xf] %vm761, %v3483
        %3616 = vst.msk [vmem:[#allocation2 + $0x68] sm:$0xf] %vm761, %v3492
        %3617 = vst.msk [vmem:[#allocation2 + $0x6c] sm:$0xf] %vm761, %v3501
        %3618 = vst.msk [vmem:[#allocation2 + $0x70] sm:$0xf] %vm761, %v3510
        %3619 = vst.msk [vmem:[#allocation2 + $0x74] sm:$0xf] %vm761, %v3519
        %3620 = vst.msk [vmem:[#allocation2 + $0x78] sm:$0xf] %vm761, %v3528
        %3621 = vst.msk [vmem:[#allocation2 + $0x7c] sm:$0xf] %vm761, %v3537
        %3622 = vst.msk [vmem:[#allocation2 + $0x80] sm:$0xf] %vm761, %v3546
        %3623 = vst.msk [vmem:[#allocation2 + $0x84] sm:$0xf] %vm761, %v3555
        %v3624 = vld [vmem:[#allocation2 + $0x88] sm:$0x1]
        %v3625 = vsel %vm766, %v3556, %v3624
        %3626 = vst [vmem:[#allocation2 + $0x88] sm:$0x1] %v3625
        %v3627 = vld [vmem:[#allocation2] sm:$0xf]
        %v3628 = vld [vmem:[#allocation2 + $0x4] sm:$0xf]
        %v3629 = vld [vmem:[#allocation2 + $0x8] sm:$0xf]
        %v3630 = vld [vmem:[#allocation2 + $0xc] sm:$0xf]
        %v3631 = vld [vmem:[#allocation2 + $0x10] sm:$0xf]
        %v3632 = vld [vmem:[#allocation2 + $0x14] sm:$0xf]
        %v3633 = vld [vmem:[#allocation2 + $0x18] sm:$0xf]
        %v3634 = vld [vmem:[#allocation2 + $0x1c] sm:$0xf]
        %v3635 = vld [vmem:[#allocation2 + $0x20] sm:$0xf]
        %v3636 = vld [vmem:[#allocation2 + $0x24] sm:$0xf]
        %v3637 = vld [vmem:[#allocation2 + $0x28] sm:$0xf]
        %v3638 = vld [vmem:[#allocation2 + $0x2c] sm:$0xf]
        %v3639 = vld [vmem:[#allocation2 + $0x30] sm:$0xf]
        %v3640 = vld [vmem:[#allocation2 + $0x34] sm:$0xf]
        %v3641 = vld [vmem:[#allocation2 + $0x38] sm:$0xf]
        %v3642 = vld [vmem:[#allocation2 + $0x3c] sm:$0xf]
        %v3643 = vld [vmem:[#allocation2 + $0x40] sm:$0xf]
        %v3644 = vld [vmem:[#allocation2 + $0x44] sm:$0xf]
        %v3645 = vld [vmem:[#allocation2 + $0x48] sm:$0xf]
        %v3646 = vld [vmem:[#allocation2 + $0x4c] sm:$0xf]
        %v3647 = vld [vmem:[#allocation2 + $0x50] sm:$0xf]
        %v3648 = vld [vmem:[#allocation2 + $0x54] sm:$0xf]
        %v3649 = vld [vmem:[#allocation2 + $0x58] sm:$0xf]
        %v3650 = vld [vmem:[#allocation2 + $0x5c] sm:$0xf]
        %v3651 = vld [vmem:[#allocation2 + $0x60] sm:$0xf]
        %v3652 = vld [vmem:[#allocation2 + $0x64] sm:$0xf]
        %v3653 = vld [vmem:[#allocation2 + $0x68] sm:$0xf]
        %v3654 = vld [vmem:[#allocation2 + $0x6c] sm:$0xf]
        %v3655 = vld [vmem:[#allocation2 + $0x70] sm:$0xf]
        %v3656 = vld [vmem:[#allocation2 + $0x74] sm:$0xf]
        %v3657 = vld [vmem:[#allocation2 + $0x78] sm:$0xf]
        %v3658 = vld [vmem:[#allocation2 + $0x7c] sm:$0xf]
        %v3659 = vld [vmem:[#allocation2 + $0x80] sm:$0xf]
        %v3660 = vld [vmem:[#allocation2 + $0x84] sm:$0xf]
        %v3661 = vld [vmem:[#allocation2 + $0x88] sm:$0xf]
        %v3662 = vld [vmem:[#allocation2 + $0x8c] sm:$0xf]
        %v3663 = vld [vmem:[#allocation2 + $0x90] sm:$0x1]
        %v3664 = vsel %vm991, %v3627, 0
        %v3665 = vsel %vm992, %v3628, 0
        %v3666 = vsel %vm993, %v3629, 0
        %v3667 = vsel %vm994, %v3630, 0
        %v3668 = vsel %vm995, %v3631, 0
        %v3669 = vsel %vm996, %v3632, 0
        %v3670 = vsel %vm997, %v3633, 0
        %v3671 = vsel %vm998, %v3634, 0
        %v3672 = vsel %vm999, %v3635, 0
        %v3673 = vsel %vm1000, %v3636, 0
        %v3674 = vsel %vm1001, %v3637, 0
        %v3675 = vsel %vm1002, %v3638, 0
        %v3676 = vsel %vm1003, %v3639, 0
        %v3677 = vsel %vm1004, %v3640, 0
        %v3678 = vsel %vm1005, %v3641, 0
        %v3679 = vsel %vm1006, %v3642, 0
        %v3680 = vsel %vm1007, %v3643, 0
        %v3681 = vsel %vm1008, %v3644, 0
        %v3682 = vsel %vm1009, %v3645, 0
        %v3683 = vsel %vm1010, %v3646, 0
        %v3684 = vsel %vm1011, %v3647, 0
        %v3685 = vsel %vm1012, %v3648, 0
        %v3686 = vsel %vm1013, %v3649, 0
        %v3687 = vsel %vm1014, %v3650, 0
        %v3688 = vsel %vm1015, %v3651, 0
        %v3689 = vsel %vm1016, %v3652, 0
        %v3690 = vsel %vm1017, %v3653, 0
        %v3691 = vsel %vm1018, %v3654, 0
        %v3692 = vsel %vm1019, %v3655, 0
        %v3693 = vsel %vm1020, %v3656, 0
        %v3694 = vsel %vm1021, %v3657, 0
        %v3695 = vsel %vm1022, %v3658, 0
        %v3696 = vsel %vm1287, %v3627, 0
        %v3697 = vsel %vm1294, %v3628, 0
        %v3698 = vsel %vm1301, %v3629, 0
        %v3699 = vsel %vm1308, %v3630, 0
        %v3700 = vsel %vm1315, %v3631, 0
        %v3701 = vsel %vm1322, %v3632, 0
        %v3702 = vsel %vm1329, %v3633, 0
        %v3703 = vsel %vm1336, %v3634, 0
        %v3704 = vsel %vm1343, %v3635, 0
        %v3705 = vsel %vm1350, %v3636, 0
        %v3706 = vsel %vm1357, %v3637, 0
        %v3707 = vsel %vm1364, %v3638, 0
        %v3708 = vsel %vm1371, %v3639, 0
        %v3709 = vsel %vm1378, %v3640, 0
        %v3710 = vsel %vm1385, %v3641, 0
        %v3711 = vsel %vm1392, %v3642, 0
        %v3712 = vsel %vm1399, %v3643, 0
        %v3713 = vsel %vm1406, %v3644, 0
        %v3714 = vsel %vm1413, %v3645, 0
        %v3715 = vsel %vm1420, %v3646, 0
        %v3716 = vsel %vm1427, %v3647, 0
        %v3717 = vsel %vm1434, %v3648, 0
        %v3718 = vsel %vm1441, %v3649, 0
        %v3719 = vsel %vm1448, %v3650, 0
        %v3720 = vsel %vm1455, %v3651, 0
        %v3721 = vsel %vm1462, %v3652, 0
        %v3722 = vsel %vm1469, %v3653, 0
        %v3723 = vsel %vm1476, %v3654, 0
        %v3724 = vsel %vm1483, %v3655, 0
        %v3725 = vsel %vm1490, %v3656, 0
        %v3726 = vsel %vm1497, %v3657, 0
        %v3727 = vsel %vm1504, %v3658, 0
        %v3728 = vsel %vm1511, %v3659, 0
        %v3729 = vsel %vm991, %v3629, 0
        %v3730 = vsel %vm992, %v3630, 0
        %v3731 = vsel %vm993, %v3631, 0
        %v3732 = vsel %vm994, %v3632, 0
        %v3733 = vsel %vm995, %v3633, 0
        %v3734 = vsel %vm996, %v3634, 0
        %v3735 = vsel %vm997, %v3635, 0
        %v3736 = vsel %vm998, %v3636, 0
        %v3737 = vsel %vm999, %v3637, 0
        %v3738 = vsel %vm1000, %v3638, 0
        %v3739 = vsel %vm1001, %v3639, 0
        %v3740 = vsel %vm1002, %v3640, 0
        %v3741 = vsel %vm1003, %v3641, 0
        %v3742 = vsel %vm1004, %v3642, 0
        %v3743 = vsel %vm1005, %v3643, 0
        %v3744 = vsel %vm1006, %v3644, 0
        %v3745 = vsel %vm1007, %v3645, 0
        %v3746 = vsel %vm1008, %v3646, 0
        %v3747 = vsel %vm1009, %v3647, 0
        %v3748 = vsel %vm1010, %v3648, 0
        %v3749 = vsel %vm1011, %v3649, 0
        %v3750 = vsel %vm1012, %v3650, 0
        %v3751 = vsel %vm1013, %v3651, 0
        %v3752 = vsel %vm1014, %v3652, 0
        %v3753 = vsel %vm1015, %v3653, 0
        %v3754 = vsel %vm1016, %v3654, 0
        %v3755 = vsel %vm1017, %v3655, 0
        %v3756 = vsel %vm1018, %v3656, 0
        %v3757 = vsel %vm1019, %v3657, 0
        %v3758 = vsel %vm1020, %v3658, 0
        %v3759 = vsel %vm1021, %v3659, 0
        %v3760 = vsel %vm1022, %v3660, 0
        %v3761 = vsel %vm1287, %v3629, 0
        %v3762 = vsel %vm1294, %v3630, 0
        %v3763 = vsel %vm1301, %v3631, 0
        %v3764 = vsel %vm1308, %v3632, 0
        %v3765 = vsel %vm1315, %v3633, 0
        %v3766 = vsel %vm1322, %v3634, 0
        %v3767 = vsel %vm1329, %v3635, 0
        %v3768 = vsel %vm1336, %v3636, 0
        %v3769 = vsel %vm1343, %v3637, 0
        %v3770 = vsel %vm1350, %v3638, 0
        %v3771 = vsel %vm1357, %v3639, 0
        %v3772 = vsel %vm1364, %v3640, 0
        %v3773 = vsel %vm1371, %v3641, 0
        %v3774 = vsel %vm1378, %v3642, 0
        %v3775 = vsel %vm1385, %v3643, 0
        %v3776 = vsel %vm1392, %v3644, 0
        %v3777 = vsel %vm1399, %v3645, 0
        %v3778 = vsel %vm1406, %v3646, 0
        %v3779 = vsel %vm1413, %v3647, 0
        %v3780 = vsel %vm1420, %v3648, 0
        %v3781 = vsel %vm1427, %v3649, 0
        %v3782 = vsel %vm1434, %v3650, 0
        %v3783 = vsel %vm1441, %v3651, 0
        %v3784 = vsel %vm1448, %v3652, 0
        %v3785 = vsel %vm1455, %v3653, 0
        %v3786 = vsel %vm1462, %v3654, 0
        %v3787 = vsel %vm1469, %v3655, 0
        %v3788 = vsel %vm1476, %v3656, 0
        %v3789 = vsel %vm1483, %v3657, 0
        %v3790 = vsel %vm1490, %v3658, 0
        %v3791 = vsel %vm1497, %v3659, 0
        %v3792 = vsel %vm1504, %v3660, 0
        %v3793 = vsel %vm1511, %v3661, 0
        %v3794 = vsel %vm991, %v3631, 0
        %v3795 = vsel %vm992, %v3632, 0
        %v3796 = vsel %vm993, %v3633, 0
        %v3797 = vsel %vm994, %v3634, 0
        %v3798 = vsel %vm995, %v3635, 0
        %v3799 = vsel %vm996, %v3636, 0
        %v3800 = vsel %vm997, %v3637, 0
        %v3801 = vsel %vm998, %v3638, 0
        %v3802 = vsel %vm999, %v3639, 0
        %v3803 = vsel %vm1000, %v3640, 0
        %v3804 = vsel %vm1001, %v3641, 0
        %v3805 = vsel %vm1002, %v3642, 0
        %v3806 = vsel %vm1003, %v3643, 0
        %v3807 = vsel %vm1004, %v3644, 0
        %v3808 = vsel %vm1005, %v3645, 0
        %v3809 = vsel %vm1006, %v3646, 0
        %v3810 = vsel %vm1007, %v3647, 0
        %v3811 = vsel %vm1008, %v3648, 0
        %v3812 = vsel %vm1009, %v3649, 0
        %v3813 = vsel %vm1010, %v3650, 0
        %v3814 = vsel %vm1011, %v3651, 0
        %v3815 = vsel %vm1012, %v3652, 0
        %v3816 = vsel %vm1013, %v3653, 0
        %v3817 = vsel %vm1014, %v3654, 0
        %v3818 = vsel %vm1015, %v3655, 0
        %v3819 = vsel %vm1016, %v3656, 0
        %v3820 = vsel %vm1017, %v3657, 0
        %v3821 = vsel %vm1018, %v3658, 0
        %v3822 = vsel %vm1019, %v3659, 0
        %v3823 = vsel %vm1020, %v3660, 0
        %v3824 = vsel %vm1021, %v3661, 0
        %v3825 = vsel %vm1022, %v3662, 0
        %v3826 = vsel %vm1287, %v3631, 0
        %v3827 = vsel %vm1294, %v3632, 0
        %v3828 = vsel %vm1301, %v3633, 0
        %v3829 = vsel %vm1308, %v3634, 0
        %v3830 = vsel %vm1315, %v3635, 0
        %v3831 = vsel %vm1322, %v3636, 0
        %v3832 = vsel %vm1329, %v3637, 0
        %v3833 = vsel %vm1336, %v3638, 0
        %v3834 = vsel %vm1343, %v3639, 0
        %v3835 = vsel %vm1350, %v3640, 0
        %v3836 = vsel %vm1357, %v3641, 0
        %v3837 = vsel %vm1364, %v3642, 0
        %v3838 = vsel %vm1371, %v3643, 0
        %v3839 = vsel %vm1378, %v3644, 0
        %v3840 = vsel %vm1385, %v3645, 0
        %v3841 = vsel %vm1392, %v3646, 0
        %v3842 = vsel %vm1399, %v3647, 0
        %v3843 = vsel %vm1406, %v3648, 0
        %v3844 = vsel %vm1413, %v3649, 0
        %v3845 = vsel %vm1420, %v3650, 0
        %v3846 = vsel %vm1427, %v3651, 0
        %v3847 = vsel %vm1434, %v3652, 0
        %v3848 = vsel %vm1441, %v3653, 0
        %v3849 = vsel %vm1448, %v3654, 0
        %v3850 = vsel %vm1455, %v3655, 0
        %v3851 = vsel %vm1462, %v3656, 0
        %v3852 = vsel %vm1469, %v3657, 0
        %v3853 = vsel %vm1476, %v3658, 0
        %v3854 = vsel %vm1483, %v3659, 0
        %v3855 = vsel %vm1490, %v3660, 0
        %v3856 = vsel %vm1497, %v3661, 0
        %v3857 = vsel %vm1504, %v3662, 0
        %v3858 = vsel %vm1511, %v3663, 0
        %v3891 = vunpack.c.l.b16 %v3664
        %v3892 = vunpack.c.l.b16 %v3665
        %v3893 = vunpack.c.l.b16 %v3666
        %v3894 = vunpack.c.l.b16 %v3667
        %v3895 = vunpack.c.l.b16 %v3668
        %v3896 = vunpack.c.l.b16 %v3669
        %v3897 = vunpack.c.l.b16 %v3670
        %v3898 = vunpack.c.l.b16 %v3671
        %v3899 = vunpack.c.l.b16 %v3672
        %v3900 = vunpack.c.l.b16 %v3673
        %v3901 = vunpack.c.l.b16 %v3674
        %v3902 = vunpack.c.l.b16 %v3675
        %v3903 = vunpack.c.l.b16 %v3676
        %v3904 = vunpack.c.l.b16 %v3677
        %v3905 = vunpack.c.l.b16 %v3678
        %v3906 = vunpack.c.l.b16 %v3679
        %v3907 = vunpack.c.l.b16 %v3680
        %v3908 = vunpack.c.l.b16 %v3681
        %v3909 = vunpack.c.l.b16 %v3682
        %v3910 = vunpack.c.l.b16 %v3683
        %v3911 = vunpack.c.l.b16 %v3684
        %v3912 = vunpack.c.l.b16 %v3685
        %v3913 = vunpack.c.l.b16 %v3686
        %v3914 = vunpack.c.l.b16 %v3687
        %v3915 = vunpack.c.l.b16 %v3688
        %v3916 = vunpack.c.l.b16 %v3689
        %v3917 = vunpack.c.l.b16 %v3690
        %v3918 = vunpack.c.l.b16 %v3691
        %v3919 = vunpack.c.l.b16 %v3692
        %v3920 = vunpack.c.l.b16 %v3693
        %v3921 = vunpack.c.l.b16 %v3694
        %v3922 = vunpack.c.l.b16 %v3695
        %v3923 = vpack.c.b16 %v3892, %v3891
        %v3924 = vpack.c.b16 %v3894, %v3893
        %v3925 = vpack.c.b16 %v3896, %v3895
        %v3926 = vpack.c.b16 %v3898, %v3897
        %v3927 = vpack.c.b16 %v3900, %v3899
        %v3928 = vpack.c.b16 %v3902, %v3901
        %v3929 = vpack.c.b16 %v3904, %v3903
        %v3930 = vpack.c.b16 %v3906, %v3905
        %v3931 = vpack.c.b16 %v3908, %v3907
        %v3932 = vpack.c.b16 %v3910, %v3909
        %v3933 = vpack.c.b16 %v3912, %v3911
        %v3934 = vpack.c.b16 %v3914, %v3913
        %v3935 = vpack.c.b16 %v3916, %v3915
        %v3936 = vpack.c.b16 %v3918, %v3917
        %v3937 = vpack.c.b16 %v3920, %v3919
        %v3938 = vpack.c.b16 %v3922, %v3921
        %v3972 = vunpack.c.l.b16 %v3627
        %v3973 = vunpack.c.l.b16 %v3628
        %v3974 = vunpack.c.l.b16 %v3629
        %v3975 = vunpack.c.l.b16 %v3630
        %v3976 = vunpack.c.l.b16 %v3631
        %v3977 = vunpack.c.l.b16 %v3632
        %v3978 = vunpack.c.l.b16 %v3633
        %v3979 = vunpack.c.l.b16 %v3634
        %v3980 = vunpack.c.l.b16 %v3635
        %v3981 = vunpack.c.l.b16 %v3636
        %v3982 = vunpack.c.l.b16 %v3637
        %v3983 = vunpack.c.l.b16 %v3638
        %v3984 = vunpack.c.l.b16 %v3639
        %v3985 = vunpack.c.l.b16 %v3640
        %v3986 = vunpack.c.l.b16 %v3641
        %v3987 = vunpack.c.l.b16 %v3642
        %v3988 = vunpack.c.l.b16 %v3643
        %v3989 = vunpack.c.l.b16 %v3644
        %v3990 = vunpack.c.l.b16 %v3645
        %v3991 = vunpack.c.l.b16 %v3646
        %v3992 = vunpack.c.l.b16 %v3647
        %v3993 = vunpack.c.l.b16 %v3648
        %v3994 = vunpack.c.l.b16 %v3649
        %v3995 = vunpack.c.l.b16 %v3650
        %v3996 = vunpack.c.l.b16 %v3651
        %v3997 = vunpack.c.l.b16 %v3652
        %v3998 = vunpack.c.l.b16 %v3653
        %v3999 = vunpack.c.l.b16 %v3654
        %v4000 = vunpack.c.l.b16 %v3655
        %v4001 = vunpack.c.l.b16 %v3656
        %v4002 = vunpack.c.l.b16 %v3657
        %v4003 = vunpack.c.l.b16 %v3658
        %v4004 = vunpack.c.l.b16 %v3659
        %v4005 = vpack.c.b16 %v3973, %v3972
        %v4006 = vpack.c.b16 %v3975, %v3974
        %v4007 = vpack.c.b16 %v3977, %v3976
        %v4008 = vpack.c.b16 %v3979, %v3978
        %v4009 = vpack.c.b16 %v3981, %v3980
        %v4010 = vpack.c.b16 %v3983, %v3982
        %v4011 = vpack.c.b16 %v3985, %v3984
        %v4012 = vpack.c.b16 %v3987, %v3986
        %v4013 = vpack.c.b16 %v3989, %v3988
        %v4014 = vpack.c.b16 %v3991, %v3990
        %v4015 = vpack.c.b16 %v3993, %v3992
        %v4016 = vpack.c.b16 %v3995, %v3994
        %v4017 = vpack.c.b16 %v3997, %v3996
        %v4018 = vpack.c.b16 %v3999, %v3998
        %v4019 = vpack.c.b16 %v4001, %v4000
        %v4020 = vpack.c.b16 %v4003, %v4002
        %v4021 = vpack.c.b16 %v4004, %v4004
        %v4023 = vshrl.u32 %v4005, 16
        %v4025 = vshll.u32 %v4005, 16
        %v4027 = vrot.slane %v4025, 1
        %v4028 = vor.u32 %v4023, %v4027
        %v4030 = vshll.u32 %v4006, 16
        %v4032 = vrot.slane %v4030, 1
        %v4033 = vsel %vm1838, %v4028, %v4032
        %v4034 = vshrl.u32 %v4006, 16
        %v4036 = vor.u32 %v4034, %v4032
        %v4038 = vshll.u32 %v4007, 16
        %v4040 = vrot.slane %v4038, 1
        %v4041 = vsel %vm1838, %v4036, %v4040
        %v4042 = vshrl.u32 %v4007, 16
        %v4044 = vor.u32 %v4042, %v4040
        %v4046 = vshll.u32 %v4008, 16
        %v4048 = vrot.slane %v4046, 1
        %v4049 = vsel %vm1838, %v4044, %v4048
        %v4050 = vshrl.u32 %v4008, 16
        %v4052 = vor.u32 %v4050, %v4048
        %v4054 = vshll.u32 %v4009, 16
        %v4056 = vrot.slane %v4054, 1
        %v4057 = vsel %vm1838, %v4052, %v4056
        %v4058 = vshrl.u32 %v4009, 16
        %v4060 = vor.u32 %v4058, %v4056
        %v4062 = vshll.u32 %v4010, 16
        %v4064 = vrot.slane %v4062, 1
        %v4065 = vsel %vm1838, %v4060, %v4064
        %v4066 = vshrl.u32 %v4010, 16
        %v4068 = vor.u32 %v4066, %v4064
        %v4070 = vshll.u32 %v4011, 16
        %v4072 = vrot.slane %v4070, 1
        %v4073 = vsel %vm1838, %v4068, %v4072
        %v4074 = vshrl.u32 %v4011, 16
        %v4076 = vor.u32 %v4074, %v4072
        %v4078 = vshll.u32 %v4012, 16
        %v4080 = vrot.slane %v4078, 1
        %v4081 = vsel %vm1838, %v4076, %v4080
        %v4082 = vshrl.u32 %v4012, 16
        %v4084 = vor.u32 %v4082, %v4080
        %v4086 = vshll.u32 %v4013, 16
        %v4088 = vrot.slane %v4086, 1
        %v4089 = vsel %vm1838, %v4084, %v4088
        %v4090 = vshrl.u32 %v4013, 16
        %v4092 = vor.u32 %v4090, %v4088
        %v4094 = vshll.u32 %v4014, 16
        %v4096 = vrot.slane %v4094, 1
        %v4097 = vsel %vm1838, %v4092, %v4096
        %v4098 = vshrl.u32 %v4014, 16
        %v4100 = vor.u32 %v4098, %v4096
        %v4102 = vshll.u32 %v4015, 16
        %v4104 = vrot.slane %v4102, 1
        %v4105 = vsel %vm1838, %v4100, %v4104
        %v4106 = vshrl.u32 %v4015, 16
        %v4108 = vor.u32 %v4106, %v4104
        %v4110 = vshll.u32 %v4016, 16
        %v4112 = vrot.slane %v4110, 1
        %v4113 = vsel %vm1838, %v4108, %v4112
        %v4114 = vshrl.u32 %v4016, 16
        %v4116 = vor.u32 %v4114, %v4112
        %v4118 = vshll.u32 %v4017, 16
        %v4120 = vrot.slane %v4118, 1
        %v4121 = vsel %vm1838, %v4116, %v4120
        %v4122 = vshrl.u32 %v4017, 16
        %v4124 = vor.u32 %v4122, %v4120
        %v4126 = vshll.u32 %v4018, 16
        %v4128 = vrot.slane %v4126, 1
        %v4129 = vsel %vm1838, %v4124, %v4128
        %v4130 = vshrl.u32 %v4018, 16
        %v4132 = vor.u32 %v4130, %v4128
        %v4134 = vshll.u32 %v4019, 16
        %v4136 = vrot.slane %v4134, 1
        %v4137 = vsel %vm1838, %v4132, %v4136
        %v4138 = vshrl.u32 %v4019, 16
        %v4140 = vor.u32 %v4138, %v4136
        %v4142 = vshll.u32 %v4020, 16
        %v4144 = vrot.slane %v4142, 1
        %v4145 = vsel %vm1838, %v4140, %v4144
        %v4146 = vshrl.u32 %v4020, 16
        %v4148 = vor.u32 %v4146, %v4144
        %v4150 = vshll.u32 %v4021, 16
        %v4152 = vrot.slane %v4150, 1
        %v4153 = vsel %vm1838, %v4148, %v4152
        %4154 = vrot.lane.b32.xlu0 %v4033, 8
        %v4155 = vpop.permute.xlu0 %4154
        %4156 = vrot.lane.b32.xlu0 %v4041, 8
        %v4157 = vpop.permute.xlu0 %4156
        %4158 = vrot.lane.b32.xlu0 %v4049, 8
        %v4159 = vpop.permute.xlu0 %4158
        %4160 = vrot.lane.b32.xlu0 %v4057, 8
        %v4161 = vpop.permute.xlu0 %4160
        %4162 = vrot.lane.b32.xlu0 %v4065, 8
        %v4163 = vpop.permute.xlu0 %4162
        %4164 = vrot.lane.b32.xlu0 %v4073, 8
        %v4165 = vpop.permute.xlu0 %4164
        %4166 = vrot.lane.b32.xlu0 %v4081, 8
        %v4167 = vpop.permute.xlu0 %4166
        %4168 = vrot.lane.b32.xlu0 %v4089, 8
        %v4169 = vpop.permute.xlu0 %4168
        %4170 = vrot.lane.b32.xlu0 %v4097, 8
        %v4171 = vpop.permute.xlu0 %4170
        %4172 = vrot.lane.b32.xlu0 %v4105, 8
        %v4173 = vpop.permute.xlu0 %4172
        %4174 = vrot.lane.b32.xlu0 %v4113, 8
        %v4175 = vpop.permute.xlu0 %4174
        %4176 = vrot.lane.b32.xlu0 %v4121, 8
        %v4177 = vpop.permute.xlu0 %4176
        %4178 = vrot.lane.b32.xlu0 %v4129, 8
        %v4179 = vpop.permute.xlu0 %4178
        %4180 = vrot.lane.b32.xlu0 %v4137, 8
        %v4181 = vpop.permute.xlu0 %4180
        %4182 = vrot.lane.b32.xlu0 %v4145, 8
        %v4183 = vpop.permute.xlu0 %4182
        %4184 = vrot.lane.b32.xlu0 %v4153, 8
        %v4185 = vpop.permute.xlu0 %4184
        %v4219 = vunpack.c.l.b16 %v3696
        %v4220 = vunpack.c.l.b16 %v3697
        %v4221 = vunpack.c.l.b16 %v3698
        %v4222 = vunpack.c.l.b16 %v3699
        %v4223 = vunpack.c.l.b16 %v3700
        %v4224 = vunpack.c.l.b16 %v3701
        %v4225 = vunpack.c.l.b16 %v3702
        %v4226 = vunpack.c.l.b16 %v3703
        %v4227 = vunpack.c.l.b16 %v3704
        %v4228 = vunpack.c.l.b16 %v3705
        %v4229 = vunpack.c.l.b16 %v3706
        %v4230 = vunpack.c.l.b16 %v3707
        %v4231 = vunpack.c.l.b16 %v3708
        %v4232 = vunpack.c.l.b16 %v3709
        %v4233 = vunpack.c.l.b16 %v3710
        %v4234 = vunpack.c.l.b16 %v3711
        %v4235 = vunpack.c.l.b16 %v3712
        %v4236 = vunpack.c.l.b16 %v3713
        %v4237 = vunpack.c.l.b16 %v3714
        %v4238 = vunpack.c.l.b16 %v3715
        %v4239 = vunpack.c.l.b16 %v3716
        %v4240 = vunpack.c.l.b16 %v3717
        %v4241 = vunpack.c.l.b16 %v3718
        %v4242 = vunpack.c.l.b16 %v3719
        %v4243 = vunpack.c.l.b16 %v3720
        %v4244 = vunpack.c.l.b16 %v3721
        %v4245 = vunpack.c.l.b16 %v3722
        %v4246 = vunpack.c.l.b16 %v3723
        %v4247 = vunpack.c.l.b16 %v3724
        %v4248 = vunpack.c.l.b16 %v3725
        %v4249 = vunpack.c.l.b16 %v3726
        %v4250 = vunpack.c.l.b16 %v3727
        %v4251 = vunpack.c.l.b16 %v3728
        %v4252 = vpack.c.b16 %v4220, %v4219
        %v4253 = vpack.c.b16 %v4222, %v4221
        %v4254 = vpack.c.b16 %v4224, %v4223
        %v4255 = vpack.c.b16 %v4226, %v4225
        %v4256 = vpack.c.b16 %v4228, %v4227
        %v4257 = vpack.c.b16 %v4230, %v4229
        %v4258 = vpack.c.b16 %v4232, %v4231
        %v4259 = vpack.c.b16 %v4234, %v4233
        %v4260 = vpack.c.b16 %v4236, %v4235
        %v4261 = vpack.c.b16 %v4238, %v4237
        %v4262 = vpack.c.b16 %v4240, %v4239
        %v4263 = vpack.c.b16 %v4242, %v4241
        %v4264 = vpack.c.b16 %v4244, %v4243
        %v4265 = vpack.c.b16 %v4246, %v4245
        %v4266 = vpack.c.b16 %v4248, %v4247
        %v4267 = vpack.c.b16 %v4250, %v4249
        %v4268 = vpack.c.b16 %v4251, %v4251
        %v4269 = vrot.slane %v4252, 1
        %v4270 = vrot.slane %v4253, 1
        %v4271 = vsel %vm2086, %v4269, %v4270
        %v4272 = vrot.slane %v4254, 1
        %v4273 = vsel %vm2086, %v4270, %v4272
        %v4274 = vrot.slane %v4255, 1
        %v4275 = vsel %vm2086, %v4272, %v4274
        %v4276 = vrot.slane %v4256, 1
        %v4277 = vsel %vm2086, %v4274, %v4276
        %v4278 = vrot.slane %v4257, 1
        %v4279 = vsel %vm2086, %v4276, %v4278
        %v4280 = vrot.slane %v4258, 1
        %v4281 = vsel %vm2086, %v4278, %v4280
        %v4282 = vrot.slane %v4259, 1
        %v4283 = vsel %vm2086, %v4280, %v4282
        %v4284 = vrot.slane %v4260, 1
        %v4285 = vsel %vm2086, %v4282, %v4284
        %v4286 = vrot.slane %v4261, 1
        %v4287 = vsel %vm2086, %v4284, %v4286
        %v4288 = vrot.slane %v4262, 1
        %v4289 = vsel %vm2086, %v4286, %v4288
        %v4290 = vrot.slane %v4263, 1
        %v4291 = vsel %vm2086, %v4288, %v4290
        %v4292 = vrot.slane %v4264, 1
        %v4293 = vsel %vm2086, %v4290, %v4292
        %v4294 = vrot.slane %v4265, 1
        %v4295 = vsel %vm2086, %v4292, %v4294
        %v4296 = vrot.slane %v4266, 1
        %v4297 = vsel %vm2086, %v4294, %v4296
        %v4298 = vrot.slane %v4267, 1
        %v4299 = vsel %vm2086, %v4296, %v4298
        %v4300 = vrot.slane %v4268, 1
        %v4301 = vsel %vm2086, %v4298, %v4300
        %4302 = vrot.lane.b32.xlu0 %v4271, 16
        %v4303 = vpop.permute.xlu0 %4302
        %4304 = vrot.lane.b32.xlu0 %v4273, 16
        %v4305 = vpop.permute.xlu0 %4304
        %4306 = vrot.lane.b32.xlu0 %v4275, 16
        %v4307 = vpop.permute.xlu0 %4306
        %4308 = vrot.lane.b32.xlu0 %v4277, 16
        %v4309 = vpop.permute.xlu0 %4308
        %4310 = vrot.lane.b32.xlu0 %v4279, 16
        %v4311 = vpop.permute.xlu0 %4310
        %4312 = vrot.lane.b32.xlu0 %v4281, 16
        %v4313 = vpop.permute.xlu0 %4312
        %4314 = vrot.lane.b32.xlu0 %v4283, 16
        %v4315 = vpop.permute.xlu0 %4314
        %4316 = vrot.lane.b32.xlu0 %v4285, 16
        %v4317 = vpop.permute.xlu0 %4316
        %4318 = vrot.lane.b32.xlu0 %v4287, 16
        %v4319 = vpop.permute.xlu0 %4318
        %4320 = vrot.lane.b32.xlu0 %v4289, 16
        %v4321 = vpop.permute.xlu0 %4320
        %4322 = vrot.lane.b32.xlu0 %v4291, 16
        %v4323 = vpop.permute.xlu0 %4322
        %4324 = vrot.lane.b32.xlu0 %v4293, 16
        %v4325 = vpop.permute.xlu0 %4324
        %4326 = vrot.lane.b32.xlu0 %v4295, 16
        %v4327 = vpop.permute.xlu0 %4326
        %4328 = vrot.lane.b32.xlu0 %v4297, 16
        %v4329 = vpop.permute.xlu0 %4328
        %4330 = vrot.lane.b32.xlu0 %v4299, 16
        %v4331 = vpop.permute.xlu0 %4330
        %4332 = vrot.lane.b32.xlu0 %v4301, 16
        %v4333 = vpop.permute.xlu0 %4332
        %v4366 = vunpack.c.l.b16 %v3729
        %v4367 = vunpack.c.l.b16 %v3730
        %v4368 = vunpack.c.l.b16 %v3731
        %v4369 = vunpack.c.l.b16 %v3732
        %v4370 = vunpack.c.l.b16 %v3733
        %v4371 = vunpack.c.l.b16 %v3734
        %v4372 = vunpack.c.l.b16 %v3735
        %v4373 = vunpack.c.l.b16 %v3736
        %v4374 = vunpack.c.l.b16 %v3737
        %v4375 = vunpack.c.l.b16 %v3738
        %v4376 = vunpack.c.l.b16 %v3739
        %v4377 = vunpack.c.l.b16 %v3740
        %v4378 = vunpack.c.l.b16 %v3741
        %v4379 = vunpack.c.l.b16 %v3742
        %v4380 = vunpack.c.l.b16 %v3743
        %v4381 = vunpack.c.l.b16 %v3744
        %v4382 = vunpack.c.l.b16 %v3745
        %v4383 = vunpack.c.l.b16 %v3746
        %v4384 = vunpack.c.l.b16 %v3747
        %v4385 = vunpack.c.l.b16 %v3748
        %v4386 = vunpack.c.l.b16 %v3749
        %v4387 = vunpack.c.l.b16 %v3750
        %v4388 = vunpack.c.l.b16 %v3751
        %v4389 = vunpack.c.l.b16 %v3752
        %v4390 = vunpack.c.l.b16 %v3753
        %v4391 = vunpack.c.l.b16 %v3754
        %v4392 = vunpack.c.l.b16 %v3755
        %v4393 = vunpack.c.l.b16 %v3756
        %v4394 = vunpack.c.l.b16 %v3757
        %v4395 = vunpack.c.l.b16 %v3758
        %v4396 = vunpack.c.l.b16 %v3759
        %v4397 = vunpack.c.l.b16 %v3760
        %v4398 = vpack.c.b16 %v4367, %v4366
        %v4399 = vpack.c.b16 %v4369, %v4368
        %v4400 = vpack.c.b16 %v4371, %v4370
        %v4401 = vpack.c.b16 %v4373, %v4372
        %v4402 = vpack.c.b16 %v4375, %v4374
        %v4403 = vpack.c.b16 %v4377, %v4376
        %v4404 = vpack.c.b16 %v4379, %v4378
        %v4405 = vpack.c.b16 %v4381, %v4380
        %v4406 = vpack.c.b16 %v4383, %v4382
        %v4407 = vpack.c.b16 %v4385, %v4384
        %v4408 = vpack.c.b16 %v4387, %v4386
        %v4409 = vpack.c.b16 %v4389, %v4388
        %v4410 = vpack.c.b16 %v4391, %v4390
        %v4411 = vpack.c.b16 %v4393, %v4392
        %v4412 = vpack.c.b16 %v4395, %v4394
        %v4413 = vpack.c.b16 %v4397, %v4396
        %4414 = vrot.lane.b32.xlu0 %v4398, 24
        %v4415 = vpop.permute.xlu0 %4414
        %4416 = vrot.lane.b32.xlu0 %v4399, 24
        %v4417 = vpop.permute.xlu0 %4416
        %4418 = vrot.lane.b32.xlu0 %v4400, 24
        %v4419 = vpop.permute.xlu0 %4418
        %4420 = vrot.lane.b32.xlu0 %v4401, 24
        %v4421 = vpop.permute.xlu0 %4420
        %4422 = vrot.lane.b32.xlu0 %v4402, 24
        %v4423 = vpop.permute.xlu0 %4422
        %4424 = vrot.lane.b32.xlu0 %v4403, 24
        %v4425 = vpop.permute.xlu0 %4424
        %4426 = vrot.lane.b32.xlu0 %v4404, 24
        %v4427 = vpop.permute.xlu0 %4426
        %4428 = vrot.lane.b32.xlu0 %v4405, 24
        %v4429 = vpop.permute.xlu0 %4428
        %4430 = vrot.lane.b32.xlu0 %v4406, 24
        %v4431 = vpop.permute.xlu0 %4430
        %4432 = vrot.lane.b32.xlu0 %v4407, 24
        %v4433 = vpop.permute.xlu0 %4432
        %4434 = vrot.lane.b32.xlu0 %v4408, 24
        %v4435 = vpop.permute.xlu0 %4434
        %4436 = vrot.lane.b32.xlu0 %v4409, 24
        %v4437 = vpop.permute.xlu0 %4436
        %4438 = vrot.lane.b32.xlu0 %v4410, 24
        %v4439 = vpop.permute.xlu0 %4438
        %4440 = vrot.lane.b32.xlu0 %v4411, 24
        %v4441 = vpop.permute.xlu0 %4440
        %4442 = vrot.lane.b32.xlu0 %v4412, 24
        %v4443 = vpop.permute.xlu0 %4442
        %4444 = vrot.lane.b32.xlu0 %v4413, 24
        %v4445 = vpop.permute.xlu0 %4444
        %v4448 = vunpack.c.l.b16 %v3660
        %v4449 = vunpack.c.l.b16 %v3661
        %v4450 = vpack.c.b16 %v4448, %v4004
        %v4451 = vpack.c.b16 %v4449, %v4449
        %v4453 = vshll.u32 %v4450, 16
        %v4455 = vrot.slane %v4453, 1
        %v4456 = vsel %vm1838, %v4148, %v4455
        %v4457 = vshrl.u32 %v4450, 16
        %v4459 = vor.u32 %v4457, %v4455
        %v4461 = vshll.u32 %v4451, 16
        %v4463 = vrot.slane %v4461, 1
        %v4464 = vsel %vm1838, %v4459, %v4463
        %4465 = vrot.lane.b32.xlu0 %v4041, 32
        %v4466 = vpop.permute.xlu0 %4465
        %4467 = vrot.lane.b32.xlu0 %v4049, 32
        %v4468 = vpop.permute.xlu0 %4467
        %4469 = vrot.lane.b32.xlu0 %v4057, 32
        %v4470 = vpop.permute.xlu0 %4469
        %4471 = vrot.lane.b32.xlu0 %v4065, 32
        %v4472 = vpop.permute.xlu0 %4471
        %4473 = vrot.lane.b32.xlu0 %v4073, 32
        %v4474 = vpop.permute.xlu0 %4473
        %4475 = vrot.lane.b32.xlu0 %v4081, 32
        %v4476 = vpop.permute.xlu0 %4475
        %4477 = vrot.lane.b32.xlu0 %v4089, 32
        %v4478 = vpop.permute.xlu0 %4477
        %4479 = vrot.lane.b32.xlu0 %v4097, 32
        %v4480 = vpop.permute.xlu0 %4479
        %4481 = vrot.lane.b32.xlu0 %v4105, 32
        %v4482 = vpop.permute.xlu0 %4481
        %4483 = vrot.lane.b32.xlu0 %v4113, 32
        %v4484 = vpop.permute.xlu0 %4483
        %4485 = vrot.lane.b32.xlu0 %v4121, 32
        %v4486 = vpop.permute.xlu0 %4485
        %4487 = vrot.lane.b32.xlu0 %v4129, 32
        %v4488 = vpop.permute.xlu0 %4487
        %4489 = vrot.lane.b32.xlu0 %v4137, 32
        %v4490 = vpop.permute.xlu0 %4489
        %4491 = vrot.lane.b32.xlu0 %v4145, 32
        %v4492 = vpop.permute.xlu0 %4491
        %4493 = vrot.lane.b32.xlu0 %v4456, 32
        %v4494 = vpop.permute.xlu0 %4493
        %4495 = vrot.lane.b32.xlu0 %v4464, 32
        %v4496 = vpop.permute.xlu0 %4495
        %v4530 = vunpack.c.l.b16 %v3761
        %v4531 = vunpack.c.l.b16 %v3762
        %v4532 = vunpack.c.l.b16 %v3763
        %v4533 = vunpack.c.l.b16 %v3764
        %v4534 = vunpack.c.l.b16 %v3765
        %v4535 = vunpack.c.l.b16 %v3766
        %v4536 = vunpack.c.l.b16 %v3767
        %v4537 = vunpack.c.l.b16 %v3768
        %v4538 = vunpack.c.l.b16 %v3769
        %v4539 = vunpack.c.l.b16 %v3770
        %v4540 = vunpack.c.l.b16 %v3771
        %v4541 = vunpack.c.l.b16 %v3772
        %v4542 = vunpack.c.l.b16 %v3773
        %v4543 = vunpack.c.l.b16 %v3774
        %v4544 = vunpack.c.l.b16 %v3775
        %v4545 = vunpack.c.l.b16 %v3776
        %v4546 = vunpack.c.l.b16 %v3777
        %v4547 = vunpack.c.l.b16 %v3778
        %v4548 = vunpack.c.l.b16 %v3779
        %v4549 = vunpack.c.l.b16 %v3780
        %v4550 = vunpack.c.l.b16 %v3781
        %v4551 = vunpack.c.l.b16 %v3782
        %v4552 = vunpack.c.l.b16 %v3783
        %v4553 = vunpack.c.l.b16 %v3784
        %v4554 = vunpack.c.l.b16 %v3785
        %v4555 = vunpack.c.l.b16 %v3786
        %v4556 = vunpack.c.l.b16 %v3787
        %v4557 = vunpack.c.l.b16 %v3788
        %v4558 = vunpack.c.l.b16 %v3789
        %v4559 = vunpack.c.l.b16 %v3790
        %v4560 = vunpack.c.l.b16 %v3791
        %v4561 = vunpack.c.l.b16 %v3792
        %v4562 = vunpack.c.l.b16 %v3793
        %v4563 = vpack.c.b16 %v4531, %v4530
        %v4564 = vpack.c.b16 %v4533, %v4532
        %v4565 = vpack.c.b16 %v4535, %v4534
        %v4566 = vpack.c.b16 %v4537, %v4536
        %v4567 = vpack.c.b16 %v4539, %v4538
        %v4568 = vpack.c.b16 %v4541, %v4540
        %v4569 = vpack.c.b16 %v4543, %v4542
        %v4570 = vpack.c.b16 %v4545, %v4544
        %v4571 = vpack.c.b16 %v4547, %v4546
        %v4572 = vpack.c.b16 %v4549, %v4548
        %v4573 = vpack.c.b16 %v4551, %v4550
        %v4574 = vpack.c.b16 %v4553, %v4552
        %v4575 = vpack.c.b16 %v4555, %v4554
        %v4576 = vpack.c.b16 %v4557, %v4556
        %v4577 = vpack.c.b16 %v4559, %v4558
        %v4578 = vpack.c.b16 %v4561, %v4560
        %v4579 = vpack.c.b16 %v4562, %v4562
        %v4580 = vrot.slane %v4563, 1
        %v4581 = vrot.slane %v4564, 1
        %v4582 = vsel %vm2086, %v4580, %v4581
        %v4583 = vrot.slane %v4565, 1
        %v4584 = vsel %vm2086, %v4581, %v4583
        %v4585 = vrot.slane %v4566, 1
        %v4586 = vsel %vm2086, %v4583, %v4585
        %v4587 = vrot.slane %v4567, 1
        %v4588 = vsel %vm2086, %v4585, %v4587
        %v4589 = vrot.slane %v4568, 1
        %v4590 = vsel %vm2086, %v4587, %v4589
        %v4591 = vrot.slane %v4569, 1
        %v4592 = vsel %vm2086, %v4589, %v4591
        %v4593 = vrot.slane %v4570, 1
        %v4594 = vsel %vm2086, %v4591, %v4593
        %v4595 = vrot.slane %v4571, 1
        %v4596 = vsel %vm2086, %v4593, %v4595
        %v4597 = vrot.slane %v4572, 1
        %v4598 = vsel %vm2086, %v4595, %v4597
        %v4599 = vrot.slane %v4573, 1
        %v4600 = vsel %vm2086, %v4597, %v4599
        %v4601 = vrot.slane %v4574, 1
        %v4602 = vsel %vm2086, %v4599, %v4601
        %v4603 = vrot.slane %v4575, 1
        %v4604 = vsel %vm2086, %v4601, %v4603
        %v4605 = vrot.slane %v4576, 1
        %v4606 = vsel %vm2086, %v4603, %v4605
        %v4607 = vrot.slane %v4577, 1
        %v4608 = vsel %vm2086, %v4605, %v4607
        %v4609 = vrot.slane %v4578, 1
        %v4610 = vsel %vm2086, %v4607, %v4609
        %v4611 = vrot.slane %v4579, 1
        %v4612 = vsel %vm2086, %v4609, %v4611
        %4613 = vrot.lane.b32.xlu0 %v4582, 40
        %v4614 = vpop.permute.xlu0 %4613
        %4615 = vrot.lane.b32.xlu0 %v4584, 40
        %v4616 = vpop.permute.xlu0 %4615
        %4617 = vrot.lane.b32.xlu0 %v4586, 40
        %v4618 = vpop.permute.xlu0 %4617
        %4619 = vrot.lane.b32.xlu0 %v4588, 40
        %v4620 = vpop.permute.xlu0 %4619
        %4621 = vrot.lane.b32.xlu0 %v4590, 40
        %v4622 = vpop.permute.xlu0 %4621
        %4623 = vrot.lane.b32.xlu0 %v4592, 40
        %v4624 = vpop.permute.xlu0 %4623
        %4625 = vrot.lane.b32.xlu0 %v4594, 40
        %v4626 = vpop.permute.xlu0 %4625
        %4627 = vrot.lane.b32.xlu0 %v4596, 40
        %v4628 = vpop.permute.xlu0 %4627
        %4629 = vrot.lane.b32.xlu0 %v4598, 40
        %v4630 = vpop.permute.xlu0 %4629
        %4631 = vrot.lane.b32.xlu0 %v4600, 40
        %v4632 = vpop.permute.xlu0 %4631
        %4633 = vrot.lane.b32.xlu0 %v4602, 40
        %v4634 = vpop.permute.xlu0 %4633
        %4635 = vrot.lane.b32.xlu0 %v4604, 40
        %v4636 = vpop.permute.xlu0 %4635
        %4637 = vrot.lane.b32.xlu0 %v4606, 40
        %v4638 = vpop.permute.xlu0 %4637
        %4639 = vrot.lane.b32.xlu0 %v4608, 40
        %v4640 = vpop.permute.xlu0 %4639
        %4641 = vrot.lane.b32.xlu0 %v4610, 40
        %v4642 = vpop.permute.xlu0 %4641
        %4643 = vrot.lane.b32.xlu0 %v4612, 40
        %v4644 = vpop.permute.xlu0 %4643
        %v4677 = vunpack.c.l.b16 %v3794
        %v4678 = vunpack.c.l.b16 %v3795
        %v4679 = vunpack.c.l.b16 %v3796
        %v4680 = vunpack.c.l.b16 %v3797
        %v4681 = vunpack.c.l.b16 %v3798
        %v4682 = vunpack.c.l.b16 %v3799
        %v4683 = vunpack.c.l.b16 %v3800
        %v4684 = vunpack.c.l.b16 %v3801
        %v4685 = vunpack.c.l.b16 %v3802
        %v4686 = vunpack.c.l.b16 %v3803
        %v4687 = vunpack.c.l.b16 %v3804
        %v4688 = vunpack.c.l.b16 %v3805
        %v4689 = vunpack.c.l.b16 %v3806
        %v4690 = vunpack.c.l.b16 %v3807
        %v4691 = vunpack.c.l.b16 %v3808
        %v4692 = vunpack.c.l.b16 %v3809
        %v4693 = vunpack.c.l.b16 %v3810
        %v4694 = vunpack.c.l.b16 %v3811
        %v4695 = vunpack.c.l.b16 %v3812
        %v4696 = vunpack.c.l.b16 %v3813
        %v4697 = vunpack.c.l.b16 %v3814
        %v4698 = vunpack.c.l.b16 %v3815
        %v4699 = vunpack.c.l.b16 %v3816
        %v4700 = vunpack.c.l.b16 %v3817
        %v4701 = vunpack.c.l.b16 %v3818
        %v4702 = vunpack.c.l.b16 %v3819
        %v4703 = vunpack.c.l.b16 %v3820
        %v4704 = vunpack.c.l.b16 %v3821
        %v4705 = vunpack.c.l.b16 %v3822
        %v4706 = vunpack.c.l.b16 %v3823
        %v4707 = vunpack.c.l.b16 %v3824
        %v4708 = vunpack.c.l.b16 %v3825
        %v4709 = vpack.c.b16 %v4678, %v4677
        %v4710 = vpack.c.b16 %v4680, %v4679
        %v4711 = vpack.c.b16 %v4682, %v4681
        %v4712 = vpack.c.b16 %v4684, %v4683
        %v4713 = vpack.c.b16 %v4686, %v4685
        %v4714 = vpack.c.b16 %v4688, %v4687
        %v4715 = vpack.c.b16 %v4690, %v4689
        %v4716 = vpack.c.b16 %v4692, %v4691
        %v4717 = vpack.c.b16 %v4694, %v4693
        %v4718 = vpack.c.b16 %v4696, %v4695
        %v4719 = vpack.c.b16 %v4698, %v4697
        %v4720 = vpack.c.b16 %v4700, %v4699
        %v4721 = vpack.c.b16 %v4702, %v4701
        %v4722 = vpack.c.b16 %v4704, %v4703
        %v4723 = vpack.c.b16 %v4706, %v4705
        %v4724 = vpack.c.b16 %v4708, %v4707
        %4725 = vrot.lane.b32.xlu0 %v4709, 48
        %v4726 = vpop.permute.xlu0 %4725
        %4727 = vrot.lane.b32.xlu0 %v4710, 48
        %v4728 = vpop.permute.xlu0 %4727
        %4729 = vrot.lane.b32.xlu0 %v4711, 48
        %v4730 = vpop.permute.xlu0 %4729
        %4731 = vrot.lane.b32.xlu0 %v4712, 48
        %v4732 = vpop.permute.xlu0 %4731
        %4733 = vrot.lane.b32.xlu0 %v4713, 48
        %v4734 = vpop.permute.xlu0 %4733
        %4735 = vrot.lane.b32.xlu0 %v4714, 48
        %v4736 = vpop.permute.xlu0 %4735
        %4737 = vrot.lane.b32.xlu0 %v4715, 48
        %v4738 = vpop.permute.xlu0 %4737
        %4739 = vrot.lane.b32.xlu0 %v4716, 48
        %v4740 = vpop.permute.xlu0 %4739
        %4741 = vrot.lane.b32.xlu0 %v4717, 48
        %v4742 = vpop.permute.xlu0 %4741
        %4743 = vrot.lane.b32.xlu0 %v4718, 48
        %v4744 = vpop.permute.xlu0 %4743
        %4745 = vrot.lane.b32.xlu0 %v4719, 48
        %v4746 = vpop.permute.xlu0 %4745
        %4747 = vrot.lane.b32.xlu0 %v4720, 48
        %v4748 = vpop.permute.xlu0 %4747
        %4749 = vrot.lane.b32.xlu0 %v4721, 48
        %v4750 = vpop.permute.xlu0 %4749
        %4751 = vrot.lane.b32.xlu0 %v4722, 48
        %v4752 = vpop.permute.xlu0 %4751
        %4753 = vrot.lane.b32.xlu0 %v4723, 48
        %v4754 = vpop.permute.xlu0 %4753
        %4755 = vrot.lane.b32.xlu0 %v4724, 48
        %v4756 = vpop.permute.xlu0 %4755
        %v4759 = vunpack.c.l.b16 %v3662
        %v4760 = vunpack.c.l.b16 %v3663
        %v4761 = vpack.c.b16 %v4759, %v4449
        %v4762 = vpack.c.b16 %v4760, %v4760
        %v4764 = vshll.u32 %v4761, 16
        %v4766 = vrot.slane %v4764, 1
        %v4767 = vsel %vm1838, %v4459, %v4766
        %v4768 = vshrl.u32 %v4761, 16
        %v4770 = vor.u32 %v4768, %v4766
        %v4772 = vshll.u32 %v4762, 16
        %v4774 = vrot.slane %v4772, 1
        %v4775 = vsel %vm1838, %v4770, %v4774
        %4776 = vrot.lane.b32.xlu0 %v4049, 56
        %v4777 = vpop.permute.xlu0 %4776
        %4778 = vrot.lane.b32.xlu0 %v4057, 56
        %v4779 = vpop.permute.xlu0 %4778
        %4780 = vrot.lane.b32.xlu0 %v4065, 56
        %v4781 = vpop.permute.xlu0 %4780
        %4782 = vrot.lane.b32.xlu0 %v4073, 56
        %v4783 = vpop.permute.xlu0 %4782
        %4784 = vrot.lane.b32.xlu0 %v4081, 56
        %v4785 = vpop.permute.xlu0 %4784
        %4786 = vrot.lane.b32.xlu0 %v4089, 56
        %v4787 = vpop.permute.xlu0 %4786
        %4788 = vrot.lane.b32.xlu0 %v4097, 56
        %v4789 = vpop.permute.xlu0 %4788
        %4790 = vrot.lane.b32.xlu0 %v4105, 56
        %v4791 = vpop.permute.xlu0 %4790
        %4792 = vrot.lane.b32.xlu0 %v4113, 56
        %v4793 = vpop.permute.xlu0 %4792
        %4794 = vrot.lane.b32.xlu0 %v4121, 56
        %v4795 = vpop.permute.xlu0 %4794
        %4796 = vrot.lane.b32.xlu0 %v4129, 56
        %v4797 = vpop.permute.xlu0 %4796
        %4798 = vrot.lane.b32.xlu0 %v4137, 56
        %v4799 = vpop.permute.xlu0 %4798
        %4800 = vrot.lane.b32.xlu0 %v4145, 56
        %v4801 = vpop.permute.xlu0 %4800
        %4802 = vrot.lane.b32.xlu0 %v4456, 56
        %v4803 = vpop.permute.xlu0 %4802
        %4804 = vrot.lane.b32.xlu0 %v4767, 56
        %v4805 = vpop.permute.xlu0 %4804
        %4806 = vrot.lane.b32.xlu0 %v4775, 56
        %v4807 = vpop.permute.xlu0 %4806
        %v4841 = vunpack.c.l.b16 %v3826
        %v4842 = vunpack.c.l.b16 %v3827
        %v4843 = vunpack.c.l.b16 %v3828
        %v4844 = vunpack.c.l.b16 %v3829
        %v4845 = vunpack.c.l.b16 %v3830
        %v4846 = vunpack.c.l.b16 %v3831
        %v4847 = vunpack.c.l.b16 %v3832
        %v4848 = vunpack.c.l.b16 %v3833
        %v4849 = vunpack.c.l.b16 %v3834
        %v4850 = vunpack.c.l.b16 %v3835
        %v4851 = vunpack.c.l.b16 %v3836
        %v4852 = vunpack.c.l.b16 %v3837
        %v4853 = vunpack.c.l.b16 %v3838
        %v4854 = vunpack.c.l.b16 %v3839
        %v4855 = vunpack.c.l.b16 %v3840
        %v4856 = vunpack.c.l.b16 %v3841
        %v4857 = vunpack.c.l.b16 %v3842
        %v4858 = vunpack.c.l.b16 %v3843
        %v4859 = vunpack.c.l.b16 %v3844
        %v4860 = vunpack.c.l.b16 %v3845
        %v4861 = vunpack.c.l.b16 %v3846
        %v4862 = vunpack.c.l.b16 %v3847
        %v4863 = vunpack.c.l.b16 %v3848
        %v4864 = vunpack.c.l.b16 %v3849
        %v4865 = vunpack.c.l.b16 %v3850
        %v4866 = vunpack.c.l.b16 %v3851
        %v4867 = vunpack.c.l.b16 %v3852
        %v4868 = vunpack.c.l.b16 %v3853
        %v4869 = vunpack.c.l.b16 %v3854
        %v4870 = vunpack.c.l.b16 %v3855
        %v4871 = vunpack.c.l.b16 %v3856
        %v4872 = vunpack.c.l.b16 %v3857
        %v4873 = vunpack.c.l.b16 %v3858
        %v4874 = vpack.c.b16 %v4842, %v4841
        %v4875 = vpack.c.b16 %v4844, %v4843
        %v4876 = vpack.c.b16 %v4846, %v4845
        %v4877 = vpack.c.b16 %v4848, %v4847
        %v4878 = vpack.c.b16 %v4850, %v4849
        %v4879 = vpack.c.b16 %v4852, %v4851
        %v4880 = vpack.c.b16 %v4854, %v4853
        %v4881 = vpack.c.b16 %v4856, %v4855
        %v4882 = vpack.c.b16 %v4858, %v4857
        %v4883 = vpack.c.b16 %v4860, %v4859
        %v4884 = vpack.c.b16 %v4862, %v4861
        %v4885 = vpack.c.b16 %v4864, %v4863
        %v4886 = vpack.c.b16 %v4866, %v4865
        %v4887 = vpack.c.b16 %v4868, %v4867
        %v4888 = vpack.c.b16 %v4870, %v4869
        %v4889 = vpack.c.b16 %v4872, %v4871
        %v4890 = vpack.c.b16 %v4873, %v4873
        %v4891 = vrot.slane %v4874, 1
        %v4892 = vrot.slane %v4875, 1
        %v4893 = vsel %vm2086, %v4891, %v4892
        %v4894 = vrot.slane %v4876, 1
        %v4895 = vsel %vm2086, %v4892, %v4894
        %v4896 = vrot.slane %v4877, 1
        %v4897 = vsel %vm2086, %v4894, %v4896
        %v4898 = vrot.slane %v4878, 1
        %v4899 = vsel %vm2086, %v4896, %v4898
        %v4900 = vrot.slane %v4879, 1
        %v4901 = vsel %vm2086, %v4898, %v4900
        %v4902 = vrot.slane %v4880, 1
        %v4903 = vsel %vm2086, %v4900, %v4902
        %v4904 = vrot.slane %v4881, 1
        %v4905 = vsel %vm2086, %v4902, %v4904
        %v4906 = vrot.slane %v4882, 1
        %v4907 = vsel %vm2086, %v4904, %v4906
        %v4908 = vrot.slane %v4883, 1
        %v4909 = vsel %vm2086, %v4906, %v4908
        %v4910 = vrot.slane %v4884, 1
        %v4911 = vsel %vm2086, %v4908, %v4910
        %v4912 = vrot.slane %v4885, 1
        %v4913 = vsel %vm2086, %v4910, %v4912
        %v4914 = vrot.slane %v4886, 1
        %v4915 = vsel %vm2086, %v4912, %v4914
        %v4916 = vrot.slane %v4887, 1
        %v4917 = vsel %vm2086, %v4914, %v4916
        %v4918 = vrot.slane %v4888, 1
        %v4919 = vsel %vm2086, %v4916, %v4918
        %v4920 = vrot.slane %v4889, 1
        %v4921 = vsel %vm2086, %v4918, %v4920
        %v4922 = vrot.slane %v4890, 1
        %v4923 = vsel %vm2086, %v4920, %v4922
        %4924 = vrot.lane.b32.xlu0 %v4893, 64
        %v4925 = vpop.permute.xlu0 %4924
        %4926 = vrot.lane.b32.xlu0 %v4895, 64
        %v4927 = vpop.permute.xlu0 %4926
        %4928 = vrot.lane.b32.xlu0 %v4897, 64
        %v4929 = vpop.permute.xlu0 %4928
        %4930 = vrot.lane.b32.xlu0 %v4899, 64
        %v4931 = vpop.permute.xlu0 %4930
        %4932 = vrot.lane.b32.xlu0 %v4901, 64
        %v4933 = vpop.permute.xlu0 %4932
        %4934 = vrot.lane.b32.xlu0 %v4903, 64
        %v4935 = vpop.permute.xlu0 %4934
        %4936 = vrot.lane.b32.xlu0 %v4905, 64
        %v4937 = vpop.permute.xlu0 %4936
        %4938 = vrot.lane.b32.xlu0 %v4907, 64
        %v4939 = vpop.permute.xlu0 %4938
        %4940 = vrot.lane.b32.xlu0 %v4909, 64
        %v4941 = vpop.permute.xlu0 %4940
        %4942 = vrot.lane.b32.xlu0 %v4911, 64
        %v4943 = vpop.permute.xlu0 %4942
        %4944 = vrot.lane.b32.xlu0 %v4913, 64
        %v4945 = vpop.permute.xlu0 %4944
        %4946 = vrot.lane.b32.xlu0 %v4915, 64
        %v4947 = vpop.permute.xlu0 %4946
        %4948 = vrot.lane.b32.xlu0 %v4917, 64
        %v4949 = vpop.permute.xlu0 %4948
        %4950 = vrot.lane.b32.xlu0 %v4919, 64
        %v4951 = vpop.permute.xlu0 %4950
        %4952 = vrot.lane.b32.xlu0 %v4921, 64
        %v4953 = vpop.permute.xlu0 %4952
        %4954 = vrot.lane.b32.xlu0 %v4923, 64
        %v4955 = vpop.permute.xlu0 %4954
        %v4958 = vsel %vm2823, %v3923, %v4155
        %v4961 = vsel %vm2823, %v3924, %v4157
        %v4964 = vsel %vm2823, %v3925, %v4159
        %v4967 = vsel %vm2823, %v3926, %v4161
        %v4970 = vsel %vm2823, %v3927, %v4163
        %v4973 = vsel %vm2823, %v3928, %v4165
        %v4976 = vsel %vm2823, %v3929, %v4167
        %v4979 = vsel %vm2823, %v3930, %v4169
        %v4982 = vsel %vm2823, %v3931, %v4171
        %v4985 = vsel %vm2823, %v3932, %v4173
        %v4988 = vsel %vm2823, %v3933, %v4175
        %v4991 = vsel %vm2823, %v3934, %v4177
        %v4994 = vsel %vm2823, %v3935, %v4179
        %v4997 = vsel %vm2823, %v3936, %v4181
        %v5000 = vsel %vm2823, %v3937, %v4183
        %v5003 = vsel %vm2823, %v3938, %v4185
        %v5005 = vsel %vm2889, %v4958, %v4303
        %v5007 = vsel %vm2889, %v4961, %v4305
        %v5009 = vsel %vm2889, %v4964, %v4307
        %v5011 = vsel %vm2889, %v4967, %v4309
        %v5013 = vsel %vm2889, %v4970, %v4311
        %v5015 = vsel %vm2889, %v4973, %v4313
        %v5017 = vsel %vm2889, %v4976, %v4315
        %v5019 = vsel %vm2889, %v4979, %v4317
        %v5021 = vsel %vm2889, %v4982, %v4319
        %v5023 = vsel %vm2889, %v4985, %v4321
        %v5025 = vsel %vm2889, %v4988, %v4323
        %v5027 = vsel %vm2889, %v4991, %v4325
        %v5029 = vsel %vm2889, %v4994, %v4327
        %v5031 = vsel %vm2889, %v4997, %v4329
        %v5033 = vsel %vm2889, %v5000, %v4331
        %v5035 = vsel %vm2889, %v5003, %v4333
        %v5037 = vsel %vm2955, %v5005, %v4415
        %v5039 = vsel %vm2955, %v5007, %v4417
        %v5041 = vsel %vm2955, %v5009, %v4419
        %v5043 = vsel %vm2955, %v5011, %v4421
        %v5045 = vsel %vm2955, %v5013, %v4423
        %v5047 = vsel %vm2955, %v5015, %v4425
        %v5049 = vsel %vm2955, %v5017, %v4427
        %v5051 = vsel %vm2955, %v5019, %v4429
        %v5053 = vsel %vm2955, %v5021, %v4431
        %v5055 = vsel %vm2955, %v5023, %v4433
        %v5057 = vsel %vm2955, %v5025, %v4435
        %v5059 = vsel %vm2955, %v5027, %v4437
        %v5061 = vsel %vm2955, %v5029, %v4439
        %v5063 = vsel %vm2955, %v5031, %v4441
        %v5065 = vsel %vm2955, %v5033, %v4443
        %v5067 = vsel %vm2955, %v5035, %v4445
        %v5069 = vsel %vm3021, %v5037, %v4466
        %v5071 = vsel %vm3021, %v5039, %v4468
        %v5073 = vsel %vm3021, %v5041, %v4470
        %v5075 = vsel %vm3021, %v5043, %v4472
        %v5077 = vsel %vm3021, %v5045, %v4474
        %v5079 = vsel %vm3021, %v5047, %v4476
        %v5081 = vsel %vm3021, %v5049, %v4478
        %v5083 = vsel %vm3021, %v5051, %v4480
        %v5085 = vsel %vm3021, %v5053, %v4482
        %v5087 = vsel %vm3021, %v5055, %v4484
        %v5089 = vsel %vm3021, %v5057, %v4486
        %v5091 = vsel %vm3021, %v5059, %v4488
        %v5093 = vsel %vm3021, %v5061, %v4490
        %v5095 = vsel %vm3021, %v5063, %v4492
        %v5097 = vsel %vm3021, %v5065, %v4494
        %v5099 = vsel %vm3021, %v5067, %v4496
        %vm5100 = vcmask 326656
        %v5102 = vsel %vm5100, %v5069, %v4614
        %v5104 = vsel %vm5100, %v5071, %v4616
        %v5106 = vsel %vm5100, %v5073, %v4618
        %v5108 = vsel %vm5100, %v5075, %v4620
        %v5110 = vsel %vm5100, %v5077, %v4622
        %v5112 = vsel %vm5100, %v5079, %v4624
        %v5114 = vsel %vm5100, %v5081, %v4626
        %v5116 = vsel %vm5100, %v5083, %v4628
        %v5118 = vsel %vm5100, %v5085, %v4630
        %v5120 = vsel %vm5100, %v5087, %v4632
        %v5122 = vsel %vm5100, %v5089, %v4634
        %v5124 = vsel %vm5100, %v5091, %v4636
        %v5126 = vsel %vm5100, %v5093, %v4638
        %v5128 = vsel %vm5100, %v5095, %v4640
        %v5130 = vsel %vm5100, %v5097, %v4642
        %v5132 = vsel %vm5100, %v5099, %v4644
        %vm5133 = vcmask 392192
        %v5135 = vsel %vm5133, %v5102, %v4726
        %v5137 = vsel %vm5133, %v5104, %v4728
        %v5139 = vsel %vm5133, %v5106, %v4730
        %v5141 = vsel %vm5133, %v5108, %v4732
        %v5143 = vsel %vm5133, %v5110, %v4734
        %v5145 = vsel %vm5133, %v5112, %v4736
        %v5147 = vsel %vm5133, %v5114, %v4738
        %v5149 = vsel %vm5133, %v5116, %v4740
        %v5151 = vsel %vm5133, %v5118, %v4742
        %v5153 = vsel %vm5133, %v5120, %v4744
        %v5155 = vsel %vm5133, %v5122, %v4746
        %v5157 = vsel %vm5133, %v5124, %v4748
        %v5159 = vsel %vm5133, %v5126, %v4750
        %v5161 = vsel %vm5133, %v5128, %v4752
        %v5163 = vsel %vm5133, %v5130, %v4754
        %v5165 = vsel %vm5133, %v5132, %v4756
        %vm5166 = vcmask 457728
        %v5168 = vsel %vm5166, %v5135, %v4777
        %v5170 = vsel %vm5166, %v5137, %v4779
        %v5172 = vsel %vm5166, %v5139, %v4781
        %v5174 = vsel %vm5166, %v5141, %v4783
        %v5176 = vsel %vm5166, %v5143, %v4785
        %v5178 = vsel %vm5166, %v5145, %v4787
        %v5180 = vsel %vm5166, %v5147, %v4789
        %v5182 = vsel %vm5166, %v5149, %v4791
        %v5184 = vsel %vm5166, %v5151, %v4793
        %v5186 = vsel %vm5166, %v5153, %v4795
        %v5188 = vsel %vm5166, %v5155, %v4797
        %v5190 = vsel %vm5166, %v5157, %v4799
        %v5192 = vsel %vm5166, %v5159, %v4801
        %v5194 = vsel %vm5166, %v5161, %v4803
        %v5196 = vsel %vm5166, %v5163, %v4805
        %v5198 = vsel %vm5166, %v5165, %v4807
        %vm5199 = vcmask 523264
        %v5201 = vsel %vm5199, %v5168, %v4925
        %v5203 = vsel %vm5199, %v5170, %v4927
        %v5205 = vsel %vm5199, %v5172, %v4929
        %v5207 = vsel %vm5199, %v5174, %v4931
        %v5209 = vsel %vm5199, %v5176, %v4933
        %v5211 = vsel %vm5199, %v5178, %v4935
        %v5213 = vsel %vm5199, %v5180, %v4937
        %v5215 = vsel %vm5199, %v5182, %v4939
        %v5217 = vsel %vm5199, %v5184, %v4941
        %v5219 = vsel %vm5199, %v5186, %v4943
        %v5221 = vsel %vm5199, %v5188, %v4945
        %v5223 = vsel %vm5199, %v5190, %v4947
        %v5225 = vsel %vm5199, %v5192, %v4949
        %v5227 = vsel %vm5199, %v5194, %v4951
        %v5229 = vsel %vm5199, %v5196, %v4953
        %v5231 = vsel %vm5199, %v5198, %v4955
        %v5232 = vld [vmem:[%s3] sm:$0xf]
        %v5233 = vld [vmem:[%s3 + $0x4] sm:$0xf]
        %v5234 = vld [vmem:[%s3 + $0x8] sm:$0xf]
        %v5235 = vld [vmem:[%s3 + $0xc] sm:$0xf]
        %v5236 = vld [vmem:[%s3 + $0x10] sm:$0xf]
        %v5237 = vld [vmem:[%s3 + $0x14] sm:$0xf]
        %v5238 = vld [vmem:[%s3 + $0x18] sm:$0xf]
        %v5239 = vld [vmem:[%s3 + $0x1c] sm:$0xf]
        %v5240 = vld [vmem:[%s3 + $0x20] sm:$0xf]
        %v5241 = vld [vmem:[%s4] sm:$0x1]
        %v5243 = vperm.slane %v5241, 0
        %v5254 = vunpack.c.l.b16 %v5232
        %v5255 = vunpack.c.l.b16 %v5233
        %v5256 = vunpack.c.l.b16 %v5234
        %v5257 = vunpack.c.l.b16 %v5235
        %v5258 = vunpack.c.l.b16 %v5236
        %v5259 = vunpack.c.l.b16 %v5237
        %v5260 = vunpack.c.l.b16 %v5238
        %v5261 = vunpack.c.l.b16 %v5239
        %v5262 = vunpack.c.l.b16 %v5240
        %v5263 = vpack.c.b16 %v5255, %v5254
        %v5264 = vpack.c.b16 %v5257, %v5256
        %v5265 = vpack.c.b16 %v5259, %v5258
        %v5266 = vpack.c.b16 %v5261, %v5260
        %v5267 = vpack.c.b16 %v5262, %v5262
        %vm5272 = vcmask 588800
        %v5273 = vsel %vm5272, %v5201, 0
        %v5275 = vsel %vm5272, %v5203, 0
        %v5277 = vsel %vm5272, %v5205, 0
        %v5279 = vsel %vm5272, %v5207, 0
        %v5281 = vsel %vm5272, %v5209, 0
        %v5283 = vsel %vm5272, %v5211, 0
        %v5285 = vsel %vm5272, %v5213, 0
        %v5287 = vsel %vm5272, %v5215, 0
        %v5289 = vsel %vm5272, %v5217, 0
        %v5291 = vsel %vm5272, %v5219, 0
        %v5293 = vsel %vm5272, %v5221, 0
        %v5295 = vsel %vm5272, %v5223, 0
        %v5297 = vsel %vm5272, %v5225, 0
        %v5299 = vsel %vm5272, %v5227, 0
        %v5301 = vsel %vm5272, %v5229, 0
        %v5303 = vsel %vm5272, %v5231, 0
        %vm5305 = vcmask 1043456
        %v5307 = vsel %vm5305, %v5267, 0
        %5309 = vmatpush.bf16.msra.mxu0 0
        %5310 = vmatpush.bf16.msra.mxu0 0
        %5311 = vmatpush.bf16.msra.mxu0 0
        %5312 = vmatpush.bf16.msra.mxu0 %v5307
        %5313 = vmatpush.bf16.msra.mxu0 %v5266
        %5314 = vmatpush.bf16.msra.mxu0 %v5265
        %5315 = vmatpush.bf16.msra.mxu0 %v5264
        %5316 = vmatpush.bf16.msra.mxu0 %v5263
        %5317 = vmatmul.bf16.gmra.mxu0 %v5273
        %v5318 = vpop.f32.mrf.mxu0
        %v5319 = vadd.f32 %v5243, %v5318
        %v5320 = vpop.f32.mrf.mxu0
        %v5321 = vadd.f32 %v5243, %v5320
        %5322 = vmatmul.bf16.gmra.mxu0 %v5275
        %v5323 = vpop.f32.mrf.mxu0
        %v5324 = vadd.f32 %v5243, %v5323
        %v5325 = vpop.f32.mrf.mxu0
        %v5326 = vadd.f32 %v5243, %v5325
        %5327 = vmatmul.bf16.gmra.mxu0 %v5277
        %v5328 = vpop.f32.mrf.mxu0
        %v5329 = vadd.f32 %v5243, %v5328
        %v5330 = vpop.f32.mrf.mxu0
        %v5331 = vadd.f32 %v5243, %v5330
        %5332 = vmatmul.bf16.gmra.mxu0 %v5279
        %v5333 = vpop.f32.mrf.mxu0
        %v5334 = vadd.f32 %v5243, %v5333
        %v5335 = vpop.f32.mrf.mxu0
        %v5336 = vadd.f32 %v5243, %v5335
        %5337 = vmatmul.bf16.gmra.mxu0 %v5281
        %v5338 = vpop.f32.mrf.mxu0
        %v5339 = vadd.f32 %v5243, %v5338
        %v5340 = vpop.f32.mrf.mxu0
        %v5341 = vadd.f32 %v5243, %v5340
        %5342 = vmatmul.bf16.gmra.mxu0 %v5283
        %v5343 = vpop.f32.mrf.mxu0
        %v5344 = vadd.f32 %v5243, %v5343
        %v5345 = vpop.f32.mrf.mxu0
        %v5346 = vadd.f32 %v5243, %v5345
        %5347 = vmatmul.bf16.gmra.mxu0 %v5285
        %v5348 = vpop.f32.mrf.mxu0
        %v5349 = vadd.f32 %v5243, %v5348
        %v5350 = vpop.f32.mrf.mxu0
        %v5351 = vadd.f32 %v5243, %v5350
        %5352 = vmatmul.bf16.gmra.mxu0 %v5287
        %v5353 = vpop.f32.mrf.mxu0
        %v5354 = vadd.f32 %v5243, %v5353
        %v5355 = vpop.f32.mrf.mxu0
        %v5356 = vadd.f32 %v5243, %v5355
        %5357 = vmatmul.bf16.gmra.mxu0 %v5289
        %v5358 = vpop.f32.mrf.mxu0
        %v5359 = vadd.f32 %v5243, %v5358
        %v5360 = vpop.f32.mrf.mxu0
        %v5361 = vadd.f32 %v5243, %v5360
        %5362 = vmatmul.bf16.gmra.mxu0 %v5291
        %v5363 = vpop.f32.mrf.mxu0
        %v5364 = vadd.f32 %v5243, %v5363
        %v5365 = vpop.f32.mrf.mxu0
        %v5366 = vadd.f32 %v5243, %v5365
        %5367 = vmatmul.bf16.gmra.mxu0 %v5293
        %v5368 = vpop.f32.mrf.mxu0
        %v5369 = vadd.f32 %v5243, %v5368
        %v5370 = vpop.f32.mrf.mxu0
        %v5371 = vadd.f32 %v5243, %v5370
        %5372 = vmatmul.bf16.gmra.mxu0 %v5295
        %v5373 = vpop.f32.mrf.mxu0
        %v5374 = vadd.f32 %v5243, %v5373
        %v5375 = vpop.f32.mrf.mxu0
        %v5376 = vadd.f32 %v5243, %v5375
        %5377 = vmatmul.bf16.gmra.mxu0 %v5297
        %v5378 = vpop.f32.mrf.mxu0
        %v5379 = vadd.f32 %v5243, %v5378
        %v5380 = vpop.f32.mrf.mxu0
        %v5381 = vadd.f32 %v5243, %v5380
        %5382 = vmatmul.bf16.gmra.mxu0 %v5299
        %v5383 = vpop.f32.mrf.mxu0
        %v5384 = vadd.f32 %v5243, %v5383
        %v5385 = vpop.f32.mrf.mxu0
        %v5386 = vadd.f32 %v5243, %v5385
        %5387 = vmatmul.bf16.gmra.mxu0 %v5301
        %v5388 = vpop.f32.mrf.mxu0
        %v5389 = vadd.f32 %v5243, %v5388
        %v5390 = vpop.f32.mrf.mxu0
        %v5391 = vadd.f32 %v5243, %v5390
        %5392 = vmatmul.bf16.gmra.mxu0 %v5303
        %v5393 = vpop.f32.mrf.mxu0
        %v5394 = vadd.f32 %v5243, %v5393
        %v5395 = vpop.f32.mrf.mxu0
        %v5396 = vadd.f32 %v5243, %v5395
        %5397 = vdwg.mxu0
        %v5398 = vld [vmem:[%s5] sm:$0x3]
        %v5399 = vld [vmem:[%s6] sm:$0x1]
        %v5401 = vperm.slane %v5399, 0
        %v5436 = vunpack.c.l.b16 %v781
        %v5437 = vunpack.c.l.b16 %v782
        %v5438 = vunpack.c.l.b16 %v783
        %v5439 = vunpack.c.l.b16 %v784
        %v5440 = vunpack.c.l.b16 %v785
        %v5441 = vunpack.c.l.b16 %v786
        %v5442 = vunpack.c.l.b16 %v787
        %v5443 = vunpack.c.l.b16 %v788
        %v5444 = vunpack.c.l.b16 %v789
        %v5445 = vunpack.c.l.b16 %v790
        %v5446 = vunpack.c.l.b16 %v791
        %v5447 = vunpack.c.l.b16 %v792
        %v5448 = vunpack.c.l.b16 %v793
        %v5449 = vunpack.c.l.b16 %v794
        %v5450 = vunpack.c.l.b16 %v795
        %v5451 = vunpack.c.l.b16 %v796
        %v5452 = vunpack.c.l.b16 %v797
        %v5453 = vunpack.c.l.b16 %v798
        %v5454 = vunpack.c.l.b16 %v799
        %v5455 = vunpack.c.l.b16 %v800
        %v5456 = vunpack.c.l.b16 %v801
        %v5457 = vunpack.c.l.b16 %v802
        %v5458 = vunpack.c.l.b16 %v803
        %v5459 = vunpack.c.l.b16 %v804
        %v5460 = vunpack.c.l.b16 %v805
        %v5461 = vunpack.c.l.b16 %v806
        %v5462 = vunpack.c.l.b16 %v807
        %v5463 = vunpack.c.l.b16 %v808
        %v5464 = vunpack.c.l.b16 %v809
        %v5465 = vunpack.c.l.b16 %v810
        %v5466 = vunpack.c.l.b16 %v811
        %v5467 = vunpack.c.l.b16 %v812
        %v5468 = vunpack.c.l.b16 %v813
        %v5469 = vpack.c.b16 %v5437, %v5436
        %v5470 = vpack.c.b16 %v5439, %v5438
        %v5471 = vpack.c.b16 %v5441, %v5440
        %v5472 = vpack.c.b16 %v5443, %v5442
        %v5473 = vpack.c.b16 %v5445, %v5444
        %v5474 = vpack.c.b16 %v5447, %v5446
        %v5475 = vpack.c.b16 %v5449, %v5448
        %v5476 = vpack.c.b16 %v5451, %v5450
        %v5477 = vpack.c.b16 %v5453, %v5452
        %v5478 = vpack.c.b16 %v5455, %v5454
        %v5479 = vpack.c.b16 %v5457, %v5456
        %v5480 = vpack.c.b16 %v5459, %v5458
        %v5481 = vpack.c.b16 %v5461, %v5460
        %v5482 = vpack.c.b16 %v5463, %v5462
        %v5483 = vpack.c.b16 %v5465, %v5464
        %v5484 = vpack.c.b16 %v5467, %v5466
        %v5485 = vpack.c.b16 %v5468, %v5468
        %v5487 = vshrl.u32 %v5469, 16
        %v5489 = vshll.u32 %v5469, 16
        %v5491 = vrot.slane %v5489, 1
        %v5492 = vor.u32 %v5487, %v5491
        %v5494 = vshll.u32 %v5470, 16
        %v5496 = vrot.slane %v5494, 1
        %v5497 = vsel %vm1838, %v5492, %v5496
        %v5498 = vshrl.u32 %v5470, 16
        %v5500 = vor.u32 %v5498, %v5496
        %v5502 = vshll.u32 %v5471, 16
        %v5504 = vrot.slane %v5502, 1
        %v5505 = vsel %vm1838, %v5500, %v5504
        %v5506 = vshrl.u32 %v5471, 16
        %v5508 = vor.u32 %v5506, %v5504
        %v5510 = vshll.u32 %v5472, 16
        %v5512 = vrot.slane %v5510, 1
        %v5513 = vsel %vm1838, %v5508, %v5512
        %v5514 = vshrl.u32 %v5472, 16
        %v5516 = vor.u32 %v5514, %v5512
        %v5518 = vshll.u32 %v5473, 16
        %v5520 = vrot.slane %v5518, 1
        %v5521 = vsel %vm1838, %v5516, %v5520
        %v5522 = vshrl.u32 %v5473, 16
        %v5524 = vor.u32 %v5522, %v5520
        %v5526 = vshll.u32 %v5474, 16
        %v5528 = vrot.slane %v5526, 1
        %v5529 = vsel %vm1838, %v5524, %v5528
        %v5530 = vshrl.u32 %v5474, 16
        %v5532 = vor.u32 %v5530, %v5528
        %v5534 = vshll.u32 %v5475, 16
        %v5536 = vrot.slane %v5534, 1
        %v5537 = vsel %vm1838, %v5532, %v5536
        %v5538 = vshrl.u32 %v5475, 16
        %v5540 = vor.u32 %v5538, %v5536
        %v5542 = vshll.u32 %v5476, 16
        %v5544 = vrot.slane %v5542, 1
        %v5545 = vsel %vm1838, %v5540, %v5544
        %v5546 = vshrl.u32 %v5476, 16
        %v5548 = vor.u32 %v5546, %v5544
        %v5550 = vshll.u32 %v5477, 16
        %v5552 = vrot.slane %v5550, 1
        %v5553 = vsel %vm1838, %v5548, %v5552
        %v5554 = vshrl.u32 %v5477, 16
        %v5556 = vor.u32 %v5554, %v5552
        %v5558 = vshll.u32 %v5478, 16
        %v5560 = vrot.slane %v5558, 1
        %v5561 = vsel %vm1838, %v5556, %v5560
        %v5562 = vshrl.u32 %v5478, 16
        %v5564 = vor.u32 %v5562, %v5560
        %v5566 = vshll.u32 %v5479, 16
        %v5568 = vrot.slane %v5566, 1
        %v5569 = vsel %vm1838, %v5564, %v5568
        %v5570 = vshrl.u32 %v5479, 16
        %v5572 = vor.u32 %v5570, %v5568
        %v5574 = vshll.u32 %v5480, 16
        %v5576 = vrot.slane %v5574, 1
        %v5577 = vsel %vm1838, %v5572, %v5576
        %v5578 = vshrl.u32 %v5480, 16
        %v5580 = vor.u32 %v5578, %v5576
        %v5582 = vshll.u32 %v5481, 16
        %v5584 = vrot.slane %v5582, 1
        %v5585 = vsel %vm1838, %v5580, %v5584
        %v5586 = vshrl.u32 %v5481, 16
        %v5588 = vor.u32 %v5586, %v5584
        %v5590 = vshll.u32 %v5482, 16
        %v5592 = vrot.slane %v5590, 1
        %v5593 = vsel %vm1838, %v5588, %v5592
        %v5594 = vshrl.u32 %v5482, 16
        %v5596 = vor.u32 %v5594, %v5592
        %v5598 = vshll.u32 %v5483, 16
        %v5600 = vrot.slane %v5598, 1
        %v5601 = vsel %vm1838, %v5596, %v5600
        %v5602 = vshrl.u32 %v5483, 16
        %v5604 = vor.u32 %v5602, %v5600
        %v5606 = vshll.u32 %v5484, 16
        %v5608 = vrot.slane %v5606, 1
        %v5609 = vsel %vm1838, %v5604, %v5608
        %v5610 = vshrl.u32 %v5484, 16
        %v5612 = vor.u32 %v5610, %v5608
        %v5614 = vshll.u32 %v5485, 16
        %v5616 = vrot.slane %v5614, 1
        %v5617 = vsel %vm1838, %v5612, %v5616
        %v5619 = vsel %vm2774, %v5497, 0
        %v5622 = vsel %vm2774, %v5505, 0
        %v5625 = vsel %vm2774, %v5513, 0
        %v5628 = vsel %vm2774, %v5521, 0
        %v5631 = vsel %vm2774, %v5529, 0
        %v5634 = vsel %vm2774, %v5537, 0
        %v5637 = vsel %vm2774, %v5545, 0
        %v5640 = vsel %vm2774, %v5553, 0
        %v5643 = vsel %vm2774, %v5561, 0
        %v5646 = vsel %vm2774, %v5569, 0
        %v5649 = vsel %vm2774, %v5577, 0
        %v5652 = vsel %vm2774, %v5585, 0
        %v5655 = vsel %vm2774, %v5593, 0
        %v5658 = vsel %vm2774, %v5601, 0
        %v5661 = vsel %vm2774, %v5609, 0
        %v5664 = vsel %vm2774, %v5617, 0
        %v5667 = vsel %vm3111, %v5398, 0
        %5669 = vmatpush.bf16.msra.mxu0 0
        %5670 = vmatpush.bf16.msra.mxu0 0
        %5671 = vmatpush.bf16.msra.mxu0 0
        %5672 = vmatpush.bf16.msra.mxu0 0
        %5673 = vmatpush.bf16.msra.mxu0 0
        %5674 = vmatpush.bf16.msra.mxu0 0
        %5675 = vmatpush.bf16.msra.mxu0 0
        %5676 = vmatpush.bf16.msra.mxu0 %v5667
        %5677 = vmatmul.bf16.gmra.mxu0 %v5619
        %v5678 = vpop.f32.mrf.mxu0
        %v5679 = vadd.f32 %v5401, %v5678
        %v5680 = vpop.f32.mrf.mxu0
        %v5681 = vadd.f32 %v5401, %v5680
        %5682 = vmatmul.bf16.gmra.mxu0 %v5622
        %v5683 = vpop.f32.mrf.mxu0
        %v5684 = vadd.f32 %v5401, %v5683
        %v5685 = vpop.f32.mrf.mxu0
        %v5686 = vadd.f32 %v5401, %v5685
        %5687 = vmatmul.bf16.gmra.mxu0 %v5625
        %v5688 = vpop.f32.mrf.mxu0
        %v5689 = vadd.f32 %v5401, %v5688
        %v5690 = vpop.f32.mrf.mxu0
        %v5691 = vadd.f32 %v5401, %v5690
        %5692 = vmatmul.bf16.gmra.mxu0 %v5628
        %v5693 = vpop.f32.mrf.mxu0
        %v5694 = vadd.f32 %v5401, %v5693
        %v5695 = vpop.f32.mrf.mxu0
        %v5696 = vadd.f32 %v5401, %v5695
        %5697 = vmatmul.bf16.gmra.mxu0 %v5631
        %v5698 = vpop.f32.mrf.mxu0
        %v5699 = vadd.f32 %v5401, %v5698
        %v5700 = vpop.f32.mrf.mxu0
        %v5701 = vadd.f32 %v5401, %v5700
        %5702 = vmatmul.bf16.gmra.mxu0 %v5634
        %v5703 = vpop.f32.mrf.mxu0
        %v5704 = vadd.f32 %v5401, %v5703
        %v5705 = vpop.f32.mrf.mxu0
        %v5706 = vadd.f32 %v5401, %v5705
        %5707 = vmatmul.bf16.gmra.mxu0 %v5637
        %v5708 = vpop.f32.mrf.mxu0
        %v5709 = vadd.f32 %v5401, %v5708
        %v5710 = vpop.f32.mrf.mxu0
        %v5711 = vadd.f32 %v5401, %v5710
        %5712 = vmatmul.bf16.gmra.mxu0 %v5640
        %v5713 = vpop.f32.mrf.mxu0
        %v5714 = vadd.f32 %v5401, %v5713
        %v5715 = vpop.f32.mrf.mxu0
        %v5716 = vadd.f32 %v5401, %v5715
        %5717 = vmatmul.bf16.gmra.mxu0 %v5643
        %v5718 = vpop.f32.mrf.mxu0
        %v5719 = vadd.f32 %v5401, %v5718
        %v5720 = vpop.f32.mrf.mxu0
        %v5721 = vadd.f32 %v5401, %v5720
        %5722 = vmatmul.bf16.gmra.mxu0 %v5646
        %v5723 = vpop.f32.mrf.mxu0
        %v5724 = vadd.f32 %v5401, %v5723
        %v5725 = vpop.f32.mrf.mxu0
        %v5726 = vadd.f32 %v5401, %v5725
        %5727 = vmatmul.bf16.gmra.mxu0 %v5649
        %v5728 = vpop.f32.mrf.mxu0
        %v5729 = vadd.f32 %v5401, %v5728
        %v5730 = vpop.f32.mrf.mxu0
        %v5731 = vadd.f32 %v5401, %v5730
        %5732 = vmatmul.bf16.gmra.mxu0 %v5652
        %v5733 = vpop.f32.mrf.mxu0
        %v5734 = vadd.f32 %v5401, %v5733
        %v5735 = vpop.f32.mrf.mxu0
        %v5736 = vadd.f32 %v5401, %v5735
        %5737 = vmatmul.bf16.gmra.mxu0 %v5655
        %v5738 = vpop.f32.mrf.mxu0
        %v5739 = vadd.f32 %v5401, %v5738
        %v5740 = vpop.f32.mrf.mxu0
        %v5741 = vadd.f32 %v5401, %v5740
        %5742 = vmatmul.bf16.gmra.mxu0 %v5658
        %v5743 = vpop.f32.mrf.mxu0
        %v5744 = vadd.f32 %v5401, %v5743
        %v5745 = vpop.f32.mrf.mxu0
        %v5746 = vadd.f32 %v5401, %v5745
        %5747 = vmatmul.bf16.gmra.mxu0 %v5661
        %v5748 = vpop.f32.mrf.mxu0
        %v5749 = vadd.f32 %v5401, %v5748
        %v5750 = vpop.f32.mrf.mxu0
        %v5751 = vadd.f32 %v5401, %v5750
        %5752 = vmatmul.bf16.gmra.mxu0 %v5664
        %v5753 = vpop.f32.mrf.mxu0
        %v5754 = vadd.f32 %v5401, %v5753
        %v5755 = vpop.f32.mrf.mxu0
        %v5756 = vadd.f32 %v5401, %v5755
        %5757 = vdwg.mxu0
        %v5758 = vadd.f32 %v5319, %v5679
        %v5759 = vadd.f32 %v5321, %v5681
        %v5760 = vadd.f32 %v5324, %v5684
        %v5761 = vadd.f32 %v5326, %v5686
        %v5762 = vadd.f32 %v5329, %v5689
        %v5763 = vadd.f32 %v5331, %v5691
        %v5764 = vadd.f32 %v5334, %v5694
        %v5765 = vadd.f32 %v5336, %v5696
        %v5766 = vadd.f32 %v5339, %v5699
        %v5767 = vadd.f32 %v5341, %v5701
        %v5768 = vadd.f32 %v5344, %v5704
        %v5769 = vadd.f32 %v5346, %v5706
        %v5770 = vadd.f32 %v5349, %v5709
        %v5771 = vadd.f32 %v5351, %v5711
        %v5772 = vadd.f32 %v5354, %v5714
        %v5773 = vadd.f32 %v5356, %v5716
        %v5774 = vadd.f32 %v5359, %v5719
        %v5775 = vadd.f32 %v5361, %v5721
        %v5776 = vadd.f32 %v5364, %v5724
        %v5777 = vadd.f32 %v5366, %v5726
        %v5778 = vadd.f32 %v5369, %v5729
        %v5779 = vadd.f32 %v5371, %v5731
        %v5780 = vadd.f32 %v5374, %v5734
        %v5781 = vadd.f32 %v5376, %v5736
        %v5782 = vadd.f32 %v5379, %v5739
        %v5783 = vadd.f32 %v5381, %v5741
        %v5784 = vadd.f32 %v5384, %v5744
        %v5785 = vadd.f32 %v5386, %v5746
        %v5786 = vadd.f32 %v5389, %v5749
        %v5787 = vadd.f32 %v5391, %v5751
        %v5788 = vadd.f32 %v5394, %v5754
        %v5789 = vadd.f32 %v5396, %v5756
        %5790 = vst.msk [vmem:[#allocation3] sm:$0xff] %vm2823, %v5758
        %5791 = vst.msk [vmem:[#allocation3 + $0x8] sm:$0xff] %vm2823, %v5759
        %5792 = vst.msk [vmem:[#allocation3 + $0x10] sm:$0xff] %vm2823, %v5760
        %5793 = vst.msk [vmem:[#allocation3 + $0x18] sm:$0xff] %vm2823, %v5761
        %s5794 = scalar_lea.vmem [#allocation3], 32
        %5795 = vst.msk [vmem:[%s5794] sm:$0xff] %vm2823, %v5762
        %5796 = vst.msk [vmem:[%s5794 + $0x8] sm:$0xff] %vm2823, %v5763
        %5797 = vst.msk [vmem:[%s5794 + $0x10] sm:$0xff] %vm2823, %v5764
        %5798 = vst.msk [vmem:[%s5794 + $0x18] sm:$0xff] %vm2823, %v5765
        %s5799 = scalar_lea.vmem [#allocation3], 64
        %5800 = vst.msk [vmem:[%s5799] sm:$0xff] %vm2823, %v5766
        %5801 = vst.msk [vmem:[%s5799 + $0x8] sm:$0xff] %vm2823, %v5767
        %5802 = vst.msk [vmem:[%s5799 + $0x10] sm:$0xff] %vm2823, %v5768
        %5803 = vst.msk [vmem:[%s5799 + $0x18] sm:$0xff] %vm2823, %v5769
        %s5804 = scalar_lea.vmem [#allocation3], 96
        %5805 = vst.msk [vmem:[%s5804] sm:$0xff] %vm2823, %v5770
        %5806 = vst.msk [vmem:[%s5804 + $0x8] sm:$0xff] %vm2823, %v5771
        %5807 = vst.msk [vmem:[%s5804 + $0x10] sm:$0xff] %vm2823, %v5772
        %5808 = vst.msk [vmem:[%s5804 + $0x18] sm:$0xff] %vm2823, %v5773
        %s5809 = scalar_lea.vmem [#allocation3], 128
        %5810 = vst.msk [vmem:[%s5809] sm:$0xff] %vm2823, %v5774
        %5811 = vst.msk [vmem:[%s5809 + $0x8] sm:$0xff] %vm2823, %v5775
        %5812 = vst.msk [vmem:[%s5809 + $0x10] sm:$0xff] %vm2823, %v5776
        %5813 = vst.msk [vmem:[%s5809 + $0x18] sm:$0xff] %vm2823, %v5777
        %s5814 = scalar_lea.vmem [#allocation3], 160
        %5815 = vst.msk [vmem:[%s5814] sm:$0xff] %vm2823, %v5778
        %5816 = vst.msk [vmem:[%s5814 + $0x8] sm:$0xff] %vm2823, %v5779
        %5817 = vst.msk [vmem:[%s5814 + $0x10] sm:$0xff] %vm2823, %v5780
        %5818 = vst.msk [vmem:[%s5814 + $0x18] sm:$0xff] %vm2823, %v5781
        %s5819 = scalar_lea.vmem [#allocation3], 192
        %5820 = vst.msk [vmem:[%s5819] sm:$0xff] %vm2823, %v5782
        %5821 = vst.msk [vmem:[%s5819 + $0x8] sm:$0xff] %vm2823, %v5783
        %5822 = vst.msk [vmem:[%s5819 + $0x10] sm:$0xff] %vm2823, %v5784
        %5823 = vst.msk [vmem:[%s5819 + $0x18] sm:$0xff] %vm2823, %v5785
        %s5824 = scalar_lea.vmem [#allocation3], 224
        %5825 = vst.msk [vmem:[%s5824] sm:$0xff] %vm2823, %v5786
        %5826 = vst.msk [vmem:[%s5824 + $0x8] sm:$0xff] %vm2823, %v5787
        %5827 = vst.msk [vmem:[%s5824 + $0x10] sm:$0xff] %vm2823, %v5788
        %5828 = vst.msk [vmem:[%s5824 + $0x18] sm:$0xff] %vm2823, %v5789
        %v5829 = vld [vmem:[#allocation3] ss:$2 sm:$0xff]
        %s5830 = scalar_lea.vmem [#allocation3], 32
        %v5831 = vld [vmem:[%s5830] ss:$2 sm:$0xff]
        %s5832 = scalar_lea.vmem [#allocation3], 64
        %v5833 = vld [vmem:[%s5832] ss:$2 sm:$0xff]
        %s5834 = scalar_lea.vmem [#allocation3], 96
        %v5835 = vld [vmem:[%s5834] ss:$2 sm:$0xff]
        %s5836 = scalar_lea.vmem [#allocation3], 128
        %v5837 = vld [vmem:[%s5836] ss:$2 sm:$0xff]
        %s5838 = scalar_lea.vmem [#allocation3], 160
        %v5839 = vld [vmem:[%s5838] ss:$2 sm:$0xff]
        %s5840 = scalar_lea.vmem [#allocation3], 192
        %v5841 = vld [vmem:[%s5840] ss:$2 sm:$0xff]
        %s5842 = scalar_lea.vmem [#allocation3], 224
        %v5843 = vld [vmem:[%s5842] ss:$2 sm:$0xff]
        %s5844 = scalar_lea.vmem [#allocation3], 1
        %v5845 = vld [vmem:[%s5844] ss:$2 sm:$0xff]
        %s5846 = scalar_lea.vmem [#allocation3], 33
        %v5847 = vld [vmem:[%s5846] ss:$2 sm:$0xff]
        %s5848 = scalar_lea.vmem [#allocation3], 65
        %v5849 = vld [vmem:[%s5848] ss:$2 sm:$0xff]
        %s5850 = scalar_lea.vmem [#allocation3], 97
        %v5851 = vld [vmem:[%s5850] ss:$2 sm:$0xff]
        %s5852 = scalar_lea.vmem [#allocation3], 129
        %v5853 = vld [vmem:[%s5852] ss:$2 sm:$0xff]
        %s5854 = scalar_lea.vmem [#allocation3], 161
        %v5855 = vld [vmem:[%s5854] ss:$2 sm:$0xff]
        %s5856 = scalar_lea.vmem [#allocation3], 193
        %v5857 = vld [vmem:[%s5856] ss:$2 sm:$0xff]
        %s5858 = scalar_lea.vmem [#allocation3], 225
        %v5859 = vld [vmem:[%s5858] ss:$2 sm:$0xff]
        %v5860 = vadd.f32 %v5829, %v5845
        %v5861 = vadd.f32 %v5831, %v5847
        %v5862 = vadd.f32 %v5833, %v5849
        %v5863 = vadd.f32 %v5835, %v5851
        %v5864 = vadd.f32 %v5837, %v5853
        %v5865 = vadd.f32 %v5839, %v5855
        %v5866 = vadd.f32 %v5841, %v5857
        %v5867 = vadd.f32 %v5843, %v5859
        %s5868 = scalar_lea.vmem [#allocation3], 16
        %v5869 = vld [vmem:[%s5868] ss:$2 sm:$0xff]
        %s5870 = scalar_lea.vmem [#allocation3], 48
        %v5871 = vld [vmem:[%s5870] ss:$2 sm:$0xff]
        %s5872 = scalar_lea.vmem [#allocation3], 80
        %v5873 = vld [vmem:[%s5872] ss:$2 sm:$0xff]
        %s5874 = scalar_lea.vmem [#allocation3], 112
        %v5875 = vld [vmem:[%s5874] ss:$2 sm:$0xff]
        %s5876 = scalar_lea.vmem [#allocation3], 144
        %v5877 = vld [vmem:[%s5876] ss:$2 sm:$0xff]
        %s5878 = scalar_lea.vmem [#allocation3], 176
        %v5879 = vld [vmem:[%s5878] ss:$2 sm:$0xff]
        %s5880 = scalar_lea.vmem [#allocation3], 208
        %v5881 = vld [vmem:[%s5880] ss:$2 sm:$0xff]
        %s5882 = scalar_lea.vmem [#allocation3], 240
        %v5883 = vld [vmem:[%s5882] ss:$2 sm:$0xff]
        %v5884 = vadd.f32 %v5860, %v5869
        %v5885 = vadd.f32 %v5861, %v5871
        %v5886 = vadd.f32 %v5862, %v5873
        %v5887 = vadd.f32 %v5863, %v5875
        %v5888 = vadd.f32 %v5864, %v5877
        %v5889 = vadd.f32 %v5865, %v5879
        %v5890 = vadd.f32 %v5866, %v5881
        %v5891 = vadd.f32 %v5867, %v5883
        %s5892 = scalar_lea.vmem [#allocation3], 17
        %v5893 = vld [vmem:[%s5892] ss:$2 sm:$0xff]
        %s5894 = scalar_lea.vmem [#allocation3], 49
        %v5895 = vld [vmem:[%s5894] ss:$2 sm:$0xff]
        %s5896 = scalar_lea.vmem [#allocation3], 81
        %v5897 = vld [vmem:[%s5896] ss:$2 sm:$0xff]
        %s5898 = scalar_lea.vmem [#allocation3], 113
        %v5899 = vld [vmem:[%s5898] ss:$2 sm:$0xff]
        %s5900 = scalar_lea.vmem [#allocation3], 145
        %v5901 = vld [vmem:[%s5900] ss:$2 sm:$0xff]
        %s5902 = scalar_lea.vmem [#allocation3], 177
        %v5903 = vld [vmem:[%s5902] ss:$2 sm:$0xff]
        %s5904 = scalar_lea.vmem [#allocation3], 209
        %v5905 = vld [vmem:[%s5904] ss:$2 sm:$0xff]
        %s5906 = scalar_lea.vmem [#allocation3], 241
        %v5907 = vld [vmem:[%s5906] ss:$2 sm:$0xff]
        %v5908 = vadd.f32 %v5884, %v5893
        %v5909 = vadd.f32 %v5885, %v5895
        %v5910 = vadd.f32 %v5886, %v5897
        %v5911 = vadd.f32 %v5887, %v5899
        %v5912 = vadd.f32 %v5888, %v5901
        %v5913 = vadd.f32 %v5889, %v5903
        %v5914 = vadd.f32 %v5890, %v5905
        %v5915 = vadd.f32 %v5891, %v5907
        %v5916 = vmul.f32 %v5908, 0.25
        %v5917 = vmul.f32 %v5909, 0.25
        %v5918 = vmul.f32 %v5910, 0.25
        %v5919 = vmul.f32 %v5911, 0.25
        %v5920 = vmul.f32 %v5912, 0.25
        %v5921 = vmul.f32 %v5913, 0.25
        %v5922 = vmul.f32 %v5914, 0.25
        %v5923 = vmul.f32 %v5915, 0.25
        %5924 = vst.msk [vmem:[%s271] sm:$0xff] %vm2823, %v5916
        %5925 = vst.msk [vmem:[%s271 + $0x8] sm:$0xff] %vm2823, %v5917
        %5926 = vst.msk [vmem:[%s271 + $0x10] sm:$0xff] %vm2823, %v5918
        %5927 = vst.msk [vmem:[%s271 + $0x18] sm:$0xff] %vm2823, %v5919
        %5928 = vst.msk [vmem:[%s271 + $0x20] sm:$0xff] %vm2823, %v5920
        %5929 = vst.msk [vmem:[%s271 + $0x28] sm:$0xff] %vm2823, %v5921
        %5930 = vst.msk [vmem:[%s271 + $0x30] sm:$0xff] %vm2823, %v5922
        %5931 = vst.msk [vmem:[%s271 + $0x38] sm:$0xff] %vm2823, %v5923
        %s5932 = sand.u32 %s181, 1
        %s5933 = scalar_lea.sflag [#allocation5], %s5932
        %s5934 = sand.u32 %s181, 1
        %s5935 = smul.addr %s5934, 64
        %s5936 = scalar_lea.vmem [#allocation4], %s5935
        // Predicated region
        $region49: #{tpu_custom_call.1} parent=47 // pred_check
          %p5937 = pneg %p191
        $region50: #{tpu_custom_call.1} parent=47 // pred_check_branch
          %5939 = sbr.rel (%p5937) target = $region52
        $region51: #{tpu_custom_call.1} parent=47 // pred_region
          %5941 = vsyncadd %s5933, 0
          %s5942 = smul.addr %s21, 8
          %s5943 = smul.addr %s5942, 8
          %s5944 = scalar_lea.hbm %s7, %s5943
          %s5945 = sshll.u32 %s5936, 4
          %s5946 = int_to_ptr.vmem [resolvable:$true] %s5945
          %s5947 = sshll.u32 %s5944, 4
          %s5948 = int_to_ptr.hbm [resolvable:$true] %s5947
          %5953 = dma.vmem_to_hbm [thread:$0]  %s5946, 1024, %s5948, %s5933, 128, 128, 8
        $region52: #{tpu_custom_call.1} parent=47 // pred_fallthru
          _
      $region48: #{tpu_custom_call.1} parent=5 // pred_fallthru
        _
      %p5954 = scmp.le.s32.totalorder 2, %s16
      // Predicated region
      $region53: #{tpu_custom_call.1} parent=5 // pred_check
        %p5955 = pneg %p5954
      $region54: #{tpu_custom_call.1} parent=5 // pred_check_branch
        %5957 = sbr.rel (%p5955) target = $region56
      $region55: #{tpu_custom_call.1} parent=5 // pred_region
        %s5958 = ssub.s32 %s16, 2
        // Predicated region
        $region57: #{tpu_custom_call.1} parent=55 // pred_check
          %p5959 = pneg %p197
        $region58: #{tpu_custom_call.1} parent=55 // pred_check_branch
          %5961 = sbr.rel (%p5959) target = $region60
        $region59: #{tpu_custom_call.1} parent=55 // pred_region
          %s5962 = sand.u32 %s182, 1
          %s5963 = scalar_lea.sflag [#allocation5], %s5962
          %s5964 = sand.u32 %s182, 1
          %s5965 = smul.addr %s5964, 64
          %s5966 = scalar_lea.vmem [#allocation4], %s5965
          %5968 = dma.done %s5963, 1024
        $region60: #{tpu_custom_call.1} parent=55 // pred_fallthru
          _
      $region56: #{tpu_custom_call.1} parent=5 // pred_fallthru
        _
    $region6: #{tpu_custom_call.1} parent=1 // loop_footer
      %s20 = sadd.s32 1, %s16
    $region7: #{tpu_custom_call.1} parent=1 // loop_footer_branch
      %15 = sbr.rel target = $region3
    $region8: #{tpu_custom_call.1} parent=1 // loop_exit
      _
    %5969 = vsyncpa [#allocation5], 1
    %s5970 = scalar_lea.sflag [#allocation5], 1
    %5971 = vsyncpa %s5970, 1

</llo_original>
